<compile_context>
chip_gen: v7x
topology: tpu7x:2x2x1
jax: 0.10.0
libtpu: 0.0.40
codegen_flags: <defaults>
</compile_context>

<pallas_src>
import functools

import jax
import jax.numpy as jnp
from jax.experimental import pallas as pl
from jax.experimental.pallas import tpu as pltpu


def _round_up(x, m):
    return ((x + m - 1) // m) * m


# 48 MiB: > v5e's 16 MiB scoped-VMEM default (needed for full-K tiles),
# < v7x's 64 MiB physical VMEM.
_MM_VMEM_LIMIT = 48 * 1024 * 1024


# ---------------------------------------------------------------------------
# Kernel 1: full-K matmul + bias + activation (layers without BatchNorm).
#   grid = (M_tiles,).  Weight block index is constant -> fetched once.
# ---------------------------------------------------------------------------
def _matmul_bias_act_kernel(p_ref, w_ref, b_ref, out_ref, *, act):
    y = jnp.dot(p_ref[...], w_ref[...], preferred_element_type=jnp.float32)
    y = y + b_ref[...]
    if act == "leaky_relu":
        y = jnp.where(y >= 0.0, y, 0.2 * y)
    elif act == "sigmoid":
        # Exact sigmoid keeps the output strictly inside [0, 1].
        y = 1.0 / (1.0 + jnp.exp(-y))
    out_ref[...] = y.astype(out_ref.dtype)


# ---------------------------------------------------------------------------
# Kernel 2 (BN pass 1): full-K matmul that also emits per-M-tile partial
# per-channel sum / sum-of-squares (rows 0/1 of an (8, N_pad) block indexed by
# m).  Partial blocks keep the M axis "parallel" (megacore-friendly on v7x);
# the wrapper sums them.  No conv bias: it is cancelled by BN mean subtraction.
# Padded (zero) patch rows produce zero output rows and do not perturb the
# sums — the divisor in pass 2 is the true valid-row count M.
# ---------------------------------------------------------------------------
def _matmul_stats_kernel(p_ref, w_ref, y_ref, stats_ref):
    y = jnp.dot(p_ref[...], w_ref[...], preferred_element_type=jnp.float32)
    y_ref[...] = y.astype(y_ref.dtype)          # bf16 HBM writeback
    stats_ref[...] = jnp.zeros_like(stats_ref)  # rows 2..7 must be zero
    stats_ref[0:1, :] = jnp.sum(y, axis=0, keepdims=True)
    stats_ref[1:2, :] = jnp.sum(y * y, axis=0, keepdims=True)


# ---------------------------------------------------------------------------
# Kernel 3 (BN pass 2): normalize + affine + LeakyReLU, tiled over M.
# Output is aliased onto the pass-1 activation buffer by the wrapper.
# Note: var = E[y^2]-E[y]^2 in f32 (clamped at 0) can drift from PyTorch for
# very large M with large means; acceptable at bf16 activation precision.
# ---------------------------------------------------------------------------
def _bn_act_kernel(y_ref, stats_ref, gamma_ref, beta_ref, out_ref, *, count, eps):
    y = y_ref[...].astype(jnp.float32)
    inv_cnt = 1.0 / count
    mean = stats_ref[0:1, :] * inv_cnt
    var = stats_ref[1:2, :] * inv_cnt - mean * mean      # biased variance
    var = jnp.maximum(var, 0.0)
    # Padded channel columns give var=0 -> rsqrt(eps); their y is 0, so the
    # result is 0 and is sliced away by the wrapper.  Do not "fix" the slice.
    scale = jax.lax.rsqrt(var + eps) * gamma_ref[...]
    shift = beta_ref[...] - mean * scale
    y = y * scale + shift
    y = jnp.where(y >= 0.0, y, 0.2 * y)
    out_ref[...] = y.astype(out_ref.dtype)


# ---------------------------------------------------------------------------
# One Conv2d(+BN)(+act) layer.  x_nhwc: (N,H,W,Cin); w_oihw: (Cout,Cin,KH,KW).
# ---------------------------------------------------------------------------
def conv2d_layer(x_nhwc, w_oihw, bias, gamma, beta, *, stride, pad, use_bn,
                 act, out_dtype=jnp.bfloat16):
    N, H, W, Cin = x_nhwc.shape
    Cout, _, KH, KW = w_oihw.shape
    Ho = (H + 2 * pad - KH) // stride + 1
    Wo = (W + 2 * pad - KW) // stride + 1

    # --- glue: im2col in plain JAX, directly in bf16 (see file-top TODO) ---
    x_bf = x_nhwc.astype(jnp.bfloat16)
    xp = jnp.pad(x_bf, ((0, 0), (pad, pad), (pad, pad), (0, 0)))
    cols = []
    for dh in range(KH):
        for dw in range(KW):
            cols.append(xp[:, dh:dh + stride * Ho:stride,
                           dw:dw + stride * Wo:stride, :])
    patches = jnp.concatenate(cols, axis=-1)             # (N, Ho, Wo, KH*KW*Cin)
    K = KH * KW * Cin
    M = N * Ho * Wo
    patches = patches.reshape(M, K)

    # Weight -> (KH, KW, Cin, Cout) -> (K, Cout), matching patch column order.
    w_mat = jnp.transpose(w_oihw, (2, 3, 1, 0)).reshape(K, Cout)

    # --- tile sizing: full-K blocks, TM <= 512 (fits all generations) ---
    N_pad = _round_up(Cout, 128)
    K_pad = _round_up(K, 128)        # <= 8192 for this architecture
    M16 = _round_up(M, 16)           # bf16 sublane packing
    TM = M16 if M16 <= 512 else 512  # v6e (128 MiB VMEM) could go to 1024
    M_pad = _round_up(M16, TM)
    num_m = M_pad // TM

    patches_p = jnp.pad(patches, ((0, M_pad - M), (0, K_pad - K)))        # bf16
    w_p = jnp.pad(w_mat.astype(jnp.bfloat16),
                  ((0, K_pad - K), (0, N_pad - Cout)))                    # bf16

    mm_params = pltpu.CompilerParams(
        dimension_semantics=("parallel",),
        vmem_limit_bytes=_MM_VMEM_LIMIT)

    if use_bn:
        # ---- pass 1: matmul + per-M-tile partial sum / sumsq ----
        y_bf, stats_part = pl.pallas_call(
            _matmul_stats_kernel,
            out_shape=(jax.ShapeDtypeStruct((M_pad, N_pad), jnp.bfloat16),
                       jax.ShapeDtypeStruct((num_m * 8, N_pad), jnp.float32)),
            grid=(num_m,),
            in_specs=[
                pl.BlockSpec((TM, K_pad), lambda m: (m, 0)),
                pl.BlockSpec((K_pad, N_pad), lambda m: (0, 0)),   # resident
            ],
            out_specs=(
                pl.BlockSpec((TM, N_pad), lambda m: (m, 0)),
                pl.BlockSpec((8, N_pad), lambda m: (m, 0)),       # partials
            ),
            compiler_params=mm_params,
        )(patches_p, w_p)

        # Tiny partial-stats reduction (rows 2..7 are zeros).
        stats = jnp.sum(stats_part.reshape(num_m, 8, N_pad), axis=0)

        g_p = jnp.pad(gamma.astype(jnp.float32), (0, N_pad - Cout),
                      constant_values=1.0).reshape(1, N_pad)
        be_p = jnp.pad(beta.astype(jnp.float32),
                       (0, N_pad - Cout)).reshape(1, N_pad)

        # ---- pass 2: normalize + affine + LeakyReLU (in place over y_bf) ----
        out = pl.pallas_call(
            functools.partial(_bn_act_kernel, count=float(M), eps=1e-5),
            out_shape=jax.ShapeDtypeStruct((M_pad, N_pad), jnp.bfloat16),
            grid=(num_m,),
            in_specs=[
                pl.BlockSpec((TM, N_pad), lambda m: (m, 0)),
                pl.BlockSpec((8, N_pad), lambda m: (0, 0)),
                pl.BlockSpec((1, N_pad), lambda m: (0, 0)),
                pl.BlockSpec((1, N_pad), lambda m: (0, 0)),
            ],
            out_specs=pl.BlockSpec((TM, N_pad), lambda m: (m, 0)),
            input_output_aliases={0: 0},        # overwrite y_bf in place
            compiler_params=pltpu.CompilerParams(
                dimension_semantics=("parallel",)),
        )(y_bf, stats, g_p, be_p)
    else:
        b_p = jnp.pad(bias.astype(jnp.float32),
                      (0, N_pad - Cout)).reshape(1, N_pad)
        out = pl.pallas_call(
            functools.partial(_matmul_bias_act_kernel, act=act),
            out_shape=jax.ShapeDtypeStruct((M_pad, N_pad), out_dtype),
            grid=(num_m,),
            in_specs=[
                pl.BlockSpec((TM, K_pad), lambda m: (m, 0)),
                pl.BlockSpec((K_pad, N_pad), lambda m: (0, 0)),   # resident
                pl.BlockSpec((1, N_pad), lambda m: (0, 0)),
            ],
            out_specs=pl.BlockSpec((TM, N_pad), lambda m: (m, 0)),
            compiler_params=mm_params,
        )(patches_p, w_p, b_p)

    return out[:M, :Cout].reshape(N, Ho, Wo, Cout)


# ---------------------------------------------------------------------------
# Parameter construction (deterministic, mirrors weights_init)
# ---------------------------------------------------------------------------
def init_discriminator_params(key, in_dim, out_dim):
    dims = [(in_dim, out_dim), (out_dim, 2 * out_dim),
            (2 * out_dim, 4 * out_dim), (4 * out_dim, 8 * out_dim)]
    params = []
    for (ci, co) in dims:
        key, k1 = jax.random.split(key)
        w = 0.02 * jax.random.normal(k1, (co, ci, 5, 5), jnp.float32)   # Conv: N(0, 0.02)
        b = jnp.zeros((co,), jnp.float32)
        key, k2 = jax.random.split(key)
        gamma = 1.0 + 0.02 * jax.random.normal(k2, (co,), jnp.float32)  # BN: N(1, 0.02)
        beta = jnp.zeros((co,), jnp.float32)
        params.append(dict(w=w, b=b, gamma=gamma, beta=beta))
    key, k3 = jax.random.split(key)
    w_last = 0.02 * jax.random.normal(k3, (1, 8 * out_dim, 4, 4), jnp.float32)
    b_last = jnp.zeros((1,), jnp.float32)
    params.append(dict(w=w_last, b=b_last, gamma=jnp.ones((1,)), beta=jnp.zeros((1,))))
    return params


# ---------------------------------------------------------------------------
# Full forward pass (matches Discriminator.forward)
# ---------------------------------------------------------------------------
def discriminator_forward(x_nchw, params):
    # Input is NCHW (PyTorch convention); converted once to NHWC.
    x = jnp.transpose(x_nchw, (0, 2, 3, 1))

    # Conv(in,64,5,2,2) + LeakyReLU(0.2)                 (no BN on first block)
    p = params[0]
    x = conv2d_layer(x, p["w"], p["b"], p["gamma"], p["beta"],
                     stride=2, pad=2, use_bn=False, act="leaky_relu",
                     out_dtype=jnp.bfloat16)
    # 3x dconv_bn_relu: Conv(.,.,5,2,2) + BatchNorm + LeakyReLU(0.2)
    for p in params[1:4]:
        x = conv2d_layer(x, p["w"], p["b"], p["gamma"], p["beta"],
                         stride=2, pad=2, use_bn=True, act="leaky_relu")
    # Conv(8*out_dim, 1, 4) + Sigmoid
    p = params[4]
    x = conv2d_layer(x, p["w"], p["b"], p["gamma"], p["beta"],
                     stride=1, pad=0, use_bn=False, act="sigmoid",
                     out_dtype=jnp.float32)
    # y.view(-1)
    return x.reshape(-1)


if __name__ == "__main__":
    key = jax.random.PRNGKey(0)
    in_dim = 3
    out_dim = 8          # small version of the default 64 channels
    batch = 2
    spatial = 64         # architecture requires 64x64 input (64->32->16->8->4->1)

    k_in, k_par = jax.random.split(key)
    x = jax.random.normal(k_in, (batch, in_dim, spatial, spatial), jnp.float32)
    params = init_discriminator_params(k_par, in_dim, out_dim)

    fwd = jax.jit(discriminator_forward)
    y = fwd(x, params)
    y = jax.block_until_ready(y)

    assert y.shape == (batch,), y.shape
    assert bool(jnp.all(jnp.isfinite(y)))
    assert bool(jnp.all((y >= 0.0) & (y <= 1.0)))   # sigmoid output range
    print("KERNEL_OK")
</pallas_src>

<mosaic_0001>
module attributes {stable_mosaic.version = 11 : i64} {
  func.func @_matmul_bias_act_kernel(%arg0: i32, %arg1: memref<512x128xbf16, #tpu.memory_space<vmem>>, %arg2: memref<128x128xbf16, #tpu.memory_space<vmem>>, %arg3: memref<1x128xf32, #tpu.memory_space<vmem>>, %arg4: memref<512x128xbf16, #tpu.memory_space<vmem>>) attributes {dimension_semantics = [#tpu.dimension_semantics<parallel>], iteration_bounds = array<i64: 4>, scalar_prefetch = 0 : i64, scratch_operands = 0 : i64, tpu.core_type = #tpu.core_type<tc>, window_params = [{transform_indices = @transform_0, window_bounds = array<i64: 512, 128>}, {pipeline_mode = #tpu.pipeline_mode<synchronous>, transform_indices = @transform_1, window_bounds = array<i64: 128, 128>}, {pipeline_mode = #tpu.pipeline_mode<synchronous>, transform_indices = @transform_2, window_bounds = array<i64: 1, 128>}, {transform_indices = @transform_3, window_bounds = array<i64: 512, 128>}]} {
    %c0 = arith.constant 0 : index
    %c0_0 = arith.constant 0 : index
    %0 = vector.load %arg1[%c0, %c0_0] : memref<512x128xbf16, #tpu.memory_space<vmem>>, vector<512x128xbf16>
    %c0_1 = arith.constant 0 : index
    %c0_2 = arith.constant 0 : index
    %1 = vector.load %arg2[%c0_1, %c0_2] : memref<128x128xbf16, #tpu.memory_space<vmem>>, vector<128x128xbf16>
    %cst = arith.constant dense<0.000000e+00> : vector<512x128xf32>
    %2 = tpu.matmul %0, %1, %cst {dimension_numbers = #tpu.dot_dimension_numbers<[1], [0], [0], [1], [0, 0, 1, 1], [], []>} : vector<512x128xbf16>, vector<128x128xbf16>, vector<512x128xf32> -> vector<512x128xf32>
    %c0_3 = arith.constant 0 : index
    %c0_4 = arith.constant 0 : index
    %3 = vector.load %arg3[%c0_3, %c0_4] : memref<1x128xf32, #tpu.memory_space<vmem>>, vector<1x128xf32>
    %4 = vector.broadcast %3 : vector<1x128xf32> to vector<512x128xf32>
    %5 = arith.addf %2, %4 : vector<512x128xf32>
    %cst_5 = arith.constant 0.000000e+00 : f32
    %6 = vector.broadcast %cst_5 : f32 to vector<512x128xf32>
    %7 = arith.cmpf oge, %5, %6 : vector<512x128xf32>
    %cst_6 = arith.constant 2.000000e-01 : f32
    %8 = vector.broadcast %cst_6 : f32 to vector<512x128xf32>
    %9 = arith.mulf %8, %5 : vector<512x128xf32>
    %10 = arith.select %7, %5, %9 : vector<512x128xi1>, vector<512x128xf32>
    %11 = arith.truncf %10 : vector<512x128xf32> to vector<512x128xbf16>
    %c0_7 = arith.constant 0 : index
    %c0_8 = arith.constant 0 : index
    %12 = vector.load %arg4[%c0_7, %c0_8] : memref<512x128xbf16, #tpu.memory_space<vmem>>, vector<512x128xbf16>
    tpu.vector_store %arg4[%c0_7, %c0_8], %11 {strides = array<i32>} : memref<512x128xbf16, #tpu.memory_space<vmem>>, vector<512x128xbf16>,
    return
  }
  func.func @transform_0(%arg0: i32) -> (i32, i32) {
    %c0_i32 = arith.constant 0 : i32
    %c0_i32_0 = arith.constant 0 : i32
    return %arg0, %c0_i32 : i32, i32
  }
  func.func @transform_1(%arg0: i32) -> (i32, i32) {
    %c0_i32 = arith.constant 0 : i32
    %c0_i32_0 = arith.constant 0 : i32
    %c0_i32_1 = arith.constant 0 : i32
    return %c0_i32, %c0_i32_0 : i32, i32
  }
  func.func @transform_2(%arg0: i32) -> (i32, i32) {
    %c0_i32 = arith.constant 0 : i32
    %c0_i32_0 = arith.constant 0 : i32
    %c0_i32_1 = arith.constant 0 : i32
    return %c0_i32, %c0_i32_0 : i32, i32
  }
  func.func @transform_3(%arg0: i32) -> (i32, i32) {
    %c0_i32 = arith.constant 0 : i32
    %c0_i32_0 = arith.constant 0 : i32
    return %arg0, %c0_i32 : i32, i32
  }
}

module attributes {stable_mosaic.version = 11 : i64} {
  func.func @_bn_act_kernel(%arg0: i32, %arg1: memref<512x128xbf16, #tpu.memory_space<vmem>>, %arg2: memref<8x128xf32, #tpu.memory_space<vmem>>, %arg3: memref<1x128xf32, #tpu.memory_space<vmem>>, %arg4: memref<1x128xf32, #tpu.memory_space<vmem>>, %arg5: memref<512x128xbf16, #tpu.memory_space<vmem>>) attributes {dimension_semantics = [#tpu.dimension_semantics<parallel>], iteration_bounds = array<i64: 1>, scalar_prefetch = 0 : i64, scratch_operands = 0 : i64, tpu.core_type = #tpu.core_type<tc>, window_params = [{transform_indices = @transform_0, window_bounds = array<i64: 512, 128>}, {pipeline_mode = #tpu.pipeline_mode<synchronous>, transform_indices = @transform_1, window_bounds = array<i64: 8, 128>}, {pipeline_mode = #tpu.pipeline_mode<synchronous>, transform_indices = @transform_2, window_bounds = array<i64: 1, 128>}, {pipeline_mode = #tpu.pipeline_mode<synchronous>, transform_indices = @transform_3, window_bounds = array<i64: 1, 128>}, {transform_indices = @transform_4, window_bounds = array<i64: 512, 128>}]} {
    %c0 = arith.constant 0 : index
    %c0_0 = arith.constant 0 : index
    %0 = vector.load %arg1[%c0, %c0_0] : memref<512x128xbf16, #tpu.memory_space<vmem>>, vector<512x128xbf16>
    %1 = arith.extf %0 : vector<512x128xbf16> to vector<512x128xf32>
    %c0_1 = arith.constant 0 : index
    %c0_2 = arith.constant 0 : index
    %2 = vector.load %arg2[%c0_1, %c0_2] : memref<8x128xf32, #tpu.memory_space<vmem>>, vector<1x128xf32>
    %cst = arith.constant 0.001953125 : f32
    %3 = vector.broadcast %cst : f32 to vector<1x128xf32>
    %4 = arith.mulf %2, %3 : vector<1x128xf32>
    %c1 = arith.constant 1 : index
    %c0_3 = arith.constant 0 : index
    %5 = vector.load %arg2[%c1, %c0_3] : memref<8x128xf32, #tpu.memory_space<vmem>>, vector<1x128xf32>
    %cst_4 = arith.constant 0.001953125 : f32
    %6 = vector.broadcast %cst_4 : f32 to vector<1x128xf32>
    %7 = arith.mulf %5, %6 : vector<1x128xf32>
    %8 = arith.mulf %4, %4 : vector<1x128xf32>
    %9 = arith.subf %7, %8 : vector<1x128xf32>
    %cst_5 = arith.constant 0.000000e+00 : f32
    %10 = vector.broadcast %cst_5 : f32 to vector<1x128xf32>
    %11 = arith.maximumf %9, %10 : vector<1x128xf32>
    %cst_6 = arith.constant 9.99999974E-6 : f32
    %12 = vector.broadcast %cst_6 : f32 to vector<1x128xf32>
    %13 = arith.addf %11, %12 : vector<1x128xf32>
    %14 = math.rsqrt %13 : vector<1x128xf32>
    %c0_7 = arith.constant 0 : index
    %c0_8 = arith.constant 0 : index
    %15 = vector.load %arg3[%c0_7, %c0_8] : memref<1x128xf32, #tpu.memory_space<vmem>>, vector<1x128xf32>
    %16 = arith.mulf %14, %15 : vector<1x128xf32>
    %c0_9 = arith.constant 0 : index
    %c0_10 = arith.constant 0 : index
    %17 = vector.load %arg4[%c0_9, %c0_10] : memref<1x128xf32, #tpu.memory_space<vmem>>, vector<1x128xf32>
    %18 = arith.mulf %4, %16 : vector<1x128xf32>
    %19 = arith.subf %17, %18 : vector<1x128xf32>
    %20 = vector.broadcast %16 : vector<1x128xf32> to vector<512x128xf32>
    %21 = arith.mulf %1, %20 : vector<512x128xf32>
    %22 = vector.broadcast %19 : vector<1x128xf32> to vector<512x128xf32>
    %23 = arith.addf %21, %22 : vector<512x128xf32>
    %cst_11 = arith.constant 0.000000e+00 : f32
    %24 = vector.broadcast %cst_11 : f32 to vector<512x128xf32>
    %25 = arith.cmpf oge, %23, %24 : vector<512x128xf32>
    %cst_12 = arith.constant 2.000000e-01 : f32
    %26 = vector.broadcast %cst_12 : f32 to vector<512x128xf32>
    %27 = arith.mulf %26, %23 : vector<512x128xf32>
    %28 = arith.select %25, %23, %27 : vector<512x128xi1>, vector<512x128xf32>
    %29 = arith.truncf %28 : vector<512x128xf32> to vector<512x128xbf16>
    %c0_13 = arith.constant 0 : index
    %c0_14 = arith.constant 0 : index
    %30 = vector.load %arg5[%c0_13, %c0_14] : memref<512x128xbf16, #tpu.memory_space<vmem>>, vector<512x128xbf16>
    tpu.vector_store %arg5[%c0_13, %c0_14], %29 {strides = array<i32>} : memref<512x128xbf16, #tpu.memory_space<vmem>>, vector<512x128xbf16>,
    return
  }
  func.func @transform_0(%arg0: i32) -> (i32, i32) {
    %c0_i32 = arith.constant 0 : i32
    %c0_i32_0 = arith.constant 0 : i32
    return %arg0, %c0_i32 : i32, i32
  }
  func.func @transform_1(%arg0: i32) -> (i32, i32) {
    %c0_i32 = arith.constant 0 : i32
    %c0_i32_0 = arith.constant 0 : i32
    %c0_i32_1 = arith.constant 0 : i32
    return %c0_i32, %c0_i32_0 : i32, i32
  }
  func.func @transform_2(%arg0: i32) -> (i32, i32) {
    %c0_i32 = arith.constant 0 : i32
    %c0_i32_0 = arith.constant 0 : i32
    %c0_i32_1 = arith.constant 0 : i32
    return %c0_i32, %c0_i32_0 : i32, i32
  }
  func.func @transform_3(%arg0: i32) -> (i32, i32) {
    %c0_i32 = arith.constant 0 : i32
    %c0_i32_0 = arith.constant 0 : i32
    %c0_i32_1 = arith.constant 0 : i32
    return %c0_i32, %c0_i32_0 : i32, i32
  }
  func.func @transform_4(%arg0: i32) -> (i32, i32) {
    %c0_i32 = arith.constant 0 : i32
    %c0_i32_0 = arith.constant 0 : i32
    return %arg0, %c0_i32 : i32, i32
  }
}

module attributes {stable_mosaic.version = 11 : i64} {
  func.func @_matmul_stats_kernel(%arg0: i32, %arg1: memref<512x256xbf16, #tpu.memory_space<vmem>>, %arg2: memref<256x128xbf16, #tpu.memory_space<vmem>>, %arg3: memref<512x128xbf16, #tpu.memory_space<vmem>>, %arg4: memref<8x128xf32, #tpu.memory_space<vmem>>) attributes {dimension_semantics = [#tpu.dimension_semantics<parallel>], iteration_bounds = array<i64: 1>, scalar_prefetch = 0 : i64, scratch_operands = 0 : i64, tpu.core_type = #tpu.core_type<tc>, window_params = [{transform_indices = @transform_0, window_bounds = array<i64: 512, 256>}, {pipeline_mode = #tpu.pipeline_mode<synchronous>, transform_indices = @transform_1, window_bounds = array<i64: 256, 128>}, {transform_indices = @transform_2, window_bounds = array<i64: 512, 128>}, {transform_indices = @transform_3, window_bounds = array<i64: 8, 128>}]} {
    %c0 = arith.constant 0 : index
    %c0_0 = arith.constant 0 : index
    %0 = vector.load %arg1[%c0, %c0_0] : memref<512x256xbf16, #tpu.memory_space<vmem>>, vector<512x256xbf16>
    %c0_1 = arith.constant 0 : index
    %c0_2 = arith.constant 0 : index
    %1 = vector.load %arg2[%c0_1, %c0_2] : memref<256x128xbf16, #tpu.memory_space<vmem>>, vector<256x128xbf16>
    %cst = arith.constant dense<0.000000e+00> : vector<512x128xf32>
    %2 = tpu.matmul %0, %1, %cst {dimension_numbers = #tpu.dot_dimension_numbers<[1], [0], [0], [1], [0, 0, 1, 1], [], []>} : vector<512x256xbf16>, vector<256x128xbf16>, vector<512x128xf32> -> vector<512x128xf32>
    %3 = arith.truncf %2 : vector<512x128xf32> to vector<512x128xbf16>
    %c0_3 = arith.constant 0 : index
    %c0_4 = arith.constant 0 : index
    %4 = vector.load %arg3[%c0_3, %c0_4] : memref<512x128xbf16, #tpu.memory_space<vmem>>, vector<512x128xbf16>
    tpu.vector_store %arg3[%c0_3, %c0_4], %3 {strides = array<i32>} : memref<512x128xbf16, #tpu.memory_space<vmem>>, vector<512x128xbf16>,
    %cst_5 = arith.constant 0.000000e+00 : f32
    %5 = vector.broadcast %cst_5 : f32 to vector<8x128xf32>
    %c0_6 = arith.constant 0 : index
    %c0_7 = arith.constant 0 : index
    %6 = vector.load %arg4[%c0_6, %c0_7] : memref<8x128xf32, #tpu.memory_space<vmem>>, vector<8x128xf32>
    tpu.vector_store %arg4[%c0_6, %c0_7], %5 {strides = array<i32>} : memref<8x128xf32, #tpu.memory_space<vmem>>, vector<8x128xf32>,
    %cst_8 = arith.constant dense<0.000000e+00> : vector<128xf32>
    %7 = vector.multi_reduction <add>, %2, %cst_8 [0] : vector<512x128xf32> to vector<128xf32>
    %8 = vector.shape_cast %7 : vector<128xf32> to vector<1x128xf32>
    %c0_9 = arith.constant 0 : index
    %c0_10 = arith.constant 0 : index
    %9 = vector.load %arg4[%c0_9, %c0_10] : memref<8x128xf32, #tpu.memory_space<vmem>>, vector<1x128xf32>
    tpu.vector_store %arg4[%c0_9, %c0_10], %8 {strides = array<i32>} : memref<8x128xf32, #tpu.memory_space<vmem>>, vector<1x128xf32>,
    %10 = arith.mulf %2, %2 : vector<512x128xf32>
    %cst_11 = arith.constant dense<0.000000e+00> : vector<128xf32>
    %11 = vector.multi_reduction <add>, %10, %cst_11 [0] : vector<512x128xf32> to vector<128xf32>
    %12 = vector.shape_cast %11 : vector<128xf32> to vector<1x128xf32>
    %c1 = arith.constant 1 : index
    %c0_12 = arith.constant 0 : index
    %13 = vector.load %arg4[%c1, %c0_12] : memref<8x128xf32, #tpu.memory_space<vmem>>, vector<1x128xf32>
    tpu.vector_store %arg4[%c1, %c0_12], %12 {strides = array<i32>} : memref<8x128xf32, #tpu.memory_space<vmem>>, vector<1x128xf32>,
    return
  }
  func.func @transform_0(%arg0: i32) -> (i32, i32) {
    %c0_i32 = arith.constant 0 : i32
    %c0_i32_0 = arith.constant 0 : i32
    return %arg0, %c0_i32 : i32, i32
  }
  func.func @transform_1(%arg0: i32) -> (i32, i32) {
    %c0_i32 = arith.constant 0 : i32
    %c0_i32_0 = arith.constant 0 : i32
    %c0_i32_1 = arith.constant 0 : i32
    return %c0_i32, %c0_i32_0 : i32, i32
  }
  func.func @transform_2(%arg0: i32) -> (i32, i32) {
    %c0_i32 = arith.constant 0 : i32
    %c0_i32_0 = arith.constant 0 : i32
    return %arg0, %c0_i32 : i32, i32
  }
  func.func @transform_3(%arg0: i32) -> (i32, i32) {
    %c0_i32 = arith.constant 0 : i32
    %c0_i32_0 = arith.constant 0 : i32
    return %arg0, %c0_i32 : i32, i32
  }
}

module attributes {stable_mosaic.version = 11 : i64} {
  func.func @_bn_act_kernel(%arg0: i32, %arg1: memref<128x128xbf16, #tpu.memory_space<vmem>>, %arg2: memref<8x128xf32, #tpu.memory_space<vmem>>, %arg3: memref<1x128xf32, #tpu.memory_space<vmem>>, %arg4: memref<1x128xf32, #tpu.memory_space<vmem>>, %arg5: memref<128x128xbf16, #tpu.memory_space<vmem>>) attributes {dimension_semantics = [#tpu.dimension_semantics<parallel>], iteration_bounds = array<i64: 1>, scalar_prefetch = 0 : i64, scratch_operands = 0 : i64, tpu.core_type = #tpu.core_type<tc>, window_params = [{transform_indices = @transform_0, window_bounds = array<i64: 128, 128>}, {pipeline_mode = #tpu.pipeline_mode<synchronous>, transform_indices = @transform_1, window_bounds = array<i64: 8, 128>}, {pipeline_mode = #tpu.pipeline_mode<synchronous>, transform_indices = @transform_2, window_bounds = array<i64: 1, 128>}, {pipeline_mode = #tpu.pipeline_mode<synchronous>, transform_indices = @transform_3, window_bounds = array<i64: 1, 128>}, {transform_indices = @transform_4, window_bounds = array<i64: 128, 128>}]} {
    %c0 = arith.constant 0 : index
    %c0_0 = arith.constant 0 : index
    %0 = vector.load %arg1[%c0, %c0_0] : memref<128x128xbf16, #tpu.memory_space<vmem>>, vector<128x128xbf16>
    %1 = arith.extf %0 : vector<128x128xbf16> to vector<128x128xf32>
    %c0_1 = arith.constant 0 : index
    %c0_2 = arith.constant 0 : index
    %2 = vector.load %arg2[%c0_1, %c0_2] : memref<8x128xf32, #tpu.memory_space<vmem>>, vector<1x128xf32>
    %cst = arith.constant 7.812500e-03 : f32
    %3 = vector.broadcast %cst : f32 to vector<1x128xf32>
    %4 = arith.mulf %2, %3 : vector<1x128xf32>
    %c1 = arith.constant 1 : index
    %c0_3 = arith.constant 0 : index
    %5 = vector.load %arg2[%c1, %c0_3] : memref<8x128xf32, #tpu.memory_space<vmem>>, vector<1x128xf32>
    %cst_4 = arith.constant 7.812500e-03 : f32
    %6 = vector.broadcast %cst_4 : f32 to vector<1x128xf32>
    %7 = arith.mulf %5, %6 : vector<1x128xf32>
    %8 = arith.mulf %4, %4 : vector<1x128xf32>
    %9 = arith.subf %7, %8 : vector<1x128xf32>
    %cst_5 = arith.constant 0.000000e+00 : f32
    %10 = vector.broadcast %cst_5 : f32 to vector<1x128xf32>
    %11 = arith.maximumf %9, %10 : vector<1x128xf32>
    %cst_6 = arith.constant 9.99999974E-6 : f32
    %12 = vector.broadcast %cst_6 : f32 to vector<1x128xf32>
    %13 = arith.addf %11, %12 : vector<1x128xf32>
    %14 = math.rsqrt %13 : vector<1x128xf32>
    %c0_7 = arith.constant 0 : index
    %c0_8 = arith.constant 0 : index
    %15 = vector.load %arg3[%c0_7, %c0_8] : memref<1x128xf32, #tpu.memory_space<vmem>>, vector<1x128xf32>
    %16 = arith.mulf %14, %15 : vector<1x128xf32>
    %c0_9 = arith.constant 0 : index
    %c0_10 = arith.constant 0 : index
    %17 = vector.load %arg4[%c0_9, %c0_10] : memref<1x128xf32, #tpu.memory_space<vmem>>, vector<1x128xf32>
    %18 = arith.mulf %4, %16 : vector<1x128xf32>
    %19 = arith.subf %17, %18 : vector<1x128xf32>
    %20 = vector.broadcast %16 : vector<1x128xf32> to vector<128x128xf32>
    %21 = arith.mulf %1, %20 : vector<128x128xf32>
    %22 = vector.broadcast %19 : vector<1x128xf32> to vector<128x128xf32>
    %23 = arith.addf %21, %22 : vector<128x128xf32>
    %cst_11 = arith.constant 0.000000e+00 : f32
    %24 = vector.broadcast %cst_11 : f32 to vector<128x128xf32>
    %25 = arith.cmpf oge, %23, %24 : vector<128x128xf32>
    %cst_12 = arith.constant 2.000000e-01 : f32
    %26 = vector.broadcast %cst_12 : f32 to vector<128x128xf32>
    %27 = arith.mulf %26, %23 : vector<128x128xf32>
    %28 = arith.select %25, %23, %27 : vector<128x128xi1>, vector<128x128xf32>
    %29 = arith.truncf %28 : vector<128x128xf32> to vector<128x128xbf16>
    %c0_13 = arith.constant 0 : index
    %c0_14 = arith.constant 0 : index
    %30 = vector.load %arg5[%c0_13, %c0_14] : memref<128x128xbf16, #tpu.memory_space<vmem>>, vector<128x128xbf16>
    tpu.vector_store %arg5[%c0_13, %c0_14], %29 {strides = array<i32>} : memref<128x128xbf16, #tpu.memory_space<vmem>>, vector<128x128xbf16>,
    return
  }
  func.func @transform_0(%arg0: i32) -> (i32, i32) {
    %c0_i32 = arith.constant 0 : i32
    %c0_i32_0 = arith.constant 0 : i32
    return %arg0, %c0_i32 : i32, i32
  }
  func.func @transform_1(%arg0: i32) -> (i32, i32) {
    %c0_i32 = arith.constant 0 : i32
    %c0_i32_0 = arith.constant 0 : i32
    %c0_i32_1 = arith.constant 0 : i32
    return %c0_i32, %c0_i32_0 : i32, i32
  }
  func.func @transform_2(%arg0: i32) -> (i32, i32) {
    %c0_i32 = arith.constant 0 : i32
    %c0_i32_0 = arith.constant 0 : i32
    %c0_i32_1 = arith.constant 0 : i32
    return %c0_i32, %c0_i32_0 : i32, i32
  }
  func.func @transform_3(%arg0: i32) -> (i32, i32) {
    %c0_i32 = arith.constant 0 : i32
    %c0_i32_0 = arith.constant 0 : i32
    %c0_i32_1 = arith.constant 0 : i32
    return %c0_i32, %c0_i32_0 : i32, i32
  }
  func.func @transform_4(%arg0: i32) -> (i32, i32) {
    %c0_i32 = arith.constant 0 : i32
    %c0_i32_0 = arith.constant 0 : i32
    return %arg0, %c0_i32 : i32, i32
  }
}

module attributes {stable_mosaic.version = 11 : i64} {
  func.func @_matmul_stats_kernel(%arg0: i32, %arg1: memref<128x512xbf16, #tpu.memory_space<vmem>>, %arg2: memref<512x128xbf16, #tpu.memory_space<vmem>>, %arg3: memref<128x128xbf16, #tpu.memory_space<vmem>>, %arg4: memref<8x128xf32, #tpu.memory_space<vmem>>) attributes {dimension_semantics = [#tpu.dimension_semantics<parallel>], iteration_bounds = array<i64: 1>, scalar_prefetch = 0 : i64, scratch_operands = 0 : i64, tpu.core_type = #tpu.core_type<tc>, window_params = [{transform_indices = @transform_0, window_bounds = array<i64: 128, 512>}, {pipeline_mode = #tpu.pipeline_mode<synchronous>, transform_indices = @transform_1, window_bounds = array<i64: 512, 128>}, {transform_indices = @transform_2, window_bounds = array<i64: 128, 128>}, {transform_indices = @transform_3, window_bounds = array<i64: 8, 128>}]} {
    %c0 = arith.constant 0 : index
    %c0_0 = arith.constant 0 : index
    %0 = vector.load %arg1[%c0, %c0_0] : memref<128x512xbf16, #tpu.memory_space<vmem>>, vector<128x512xbf16>
    %c0_1 = arith.constant 0 : index
    %c0_2 = arith.constant 0 : index
    %1 = vector.load %arg2[%c0_1, %c0_2] : memref<512x128xbf16, #tpu.memory_space<vmem>>, vector<512x128xbf16>
    %cst = arith.constant dense<0.000000e+00> : vector<128x128xf32>
    %2 = tpu.matmul %0, %1, %cst {dimension_numbers = #tpu.dot_dimension_numbers<[1], [0], [0], [1], [0, 0, 1, 1], [], []>} : vector<128x512xbf16>, vector<512x128xbf16>, vector<128x128xf32> -> vector<128x128xf32>
    %3 = arith.truncf %2 : vector<128x128xf32> to vector<128x128xbf16>
    %c0_3 = arith.constant 0 : index
    %c0_4 = arith.constant 0 : index
    %4 = vector.load %arg3[%c0_3, %c0_4] : memref<128x128xbf16, #tpu.memory_space<vmem>>, vector<128x128xbf16>
    tpu.vector_store %arg3[%c0_3, %c0_4], %3 {strides = array<i32>} : memref<128x128xbf16, #tpu.memory_space<vmem>>, vector<128x128xbf16>,
    %cst_5 = arith.constant 0.000000e+00 : f32
    %5 = vector.broadcast %cst_5 : f32 to vector<8x128xf32>
    %c0_6 = arith.constant 0 : index
    %c0_7 = arith.constant 0 : index
    %6 = vector.load %arg4[%c0_6, %c0_7] : memref<8x128xf32, #tpu.memory_space<vmem>>, vector<8x128xf32>
    tpu.vector_store %arg4[%c0_6, %c0_7], %5 {strides = array<i32>} : memref<8x128xf32, #tpu.memory_space<vmem>>, vector<8x128xf32>,
    %cst_8 = arith.constant dense<0.000000e+00> : vector<128xf32>
    %7 = vector.multi_reduction <add>, %2, %cst_8 [0] : vector<128x128xf32> to vector<128xf32>
    %8 = vector.shape_cast %7 : vector<128xf32> to vector<1x128xf32>
    %c0_9 = arith.constant 0 : index
    %c0_10 = arith.constant 0 : index
    %9 = vector.load %arg4[%c0_9, %c0_10] : memref<8x128xf32, #tpu.memory_space<vmem>>, vector<1x128xf32>
    tpu.vector_store %arg4[%c0_9, %c0_10], %8 {strides = array<i32>} : memref<8x128xf32, #tpu.memory_space<vmem>>, vector<1x128xf32>,
    %10 = arith.mulf %2, %2 : vector<128x128xf32>
    %cst_11 = arith.constant dense<0.000000e+00> : vector<128xf32>
    %11 = vector.multi_reduction <add>, %10, %cst_11 [0] : vector<128x128xf32> to vector<128xf32>
    %12 = vector.shape_cast %11 : vector<128xf32> to vector<1x128xf32>
    %c1 = arith.constant 1 : index
    %c0_12 = arith.constant 0 : index
    %13 = vector.load %arg4[%c1, %c0_12] : memref<8x128xf32, #tpu.memory_space<vmem>>, vector<1x128xf32>
    tpu.vector_store %arg4[%c1, %c0_12], %12 {strides = array<i32>} : memref<8x128xf32, #tpu.memory_space<vmem>>, vector<1x128xf32>,
    return
  }
  func.func @transform_0(%arg0: i32) -> (i32, i32) {
    %c0_i32 = arith.constant 0 : i32
    %c0_i32_0 = arith.constant 0 : i32
    return %arg0, %c0_i32 : i32, i32
  }
  func.func @transform_1(%arg0: i32) -> (i32, i32) {
    %c0_i32 = arith.constant 0 : i32
    %c0_i32_0 = arith.constant 0 : i32
    %c0_i32_1 = arith.constant 0 : i32
    return %c0_i32, %c0_i32_0 : i32, i32
  }
  func.func @transform_2(%arg0: i32) -> (i32, i32) {
    %c0_i32 = arith.constant 0 : i32
    %c0_i32_0 = arith.constant 0 : i32
    return %arg0, %c0_i32 : i32, i32
  }
  func.func @transform_3(%arg0: i32) -> (i32, i32) {
    %c0_i32 = arith.constant 0 : i32
    %c0_i32_0 = arith.constant 0 : i32
    return %arg0, %c0_i32 : i32, i32
  }
}

module attributes {stable_mosaic.version = 11 : i64} {
  func.func @_bn_act_kernel(%arg0: i32, %arg1: memref<32x128xbf16, #tpu.memory_space<vmem>>, %arg2: memref<8x128xf32, #tpu.memory_space<vmem>>, %arg3: memref<1x128xf32, #tpu.memory_space<vmem>>, %arg4: memref<1x128xf32, #tpu.memory_space<vmem>>, %arg5: memref<32x128xbf16, #tpu.memory_space<vmem>>) attributes {dimension_semantics = [#tpu.dimension_semantics<parallel>], iteration_bounds = array<i64: 1>, scalar_prefetch = 0 : i64, scratch_operands = 0 : i64, tpu.core_type = #tpu.core_type<tc>, window_params = [{transform_indices = @transform_0, window_bounds = array<i64: 32, 128>}, {pipeline_mode = #tpu.pipeline_mode<synchronous>, transform_indices = @transform_1, window_bounds = array<i64: 8, 128>}, {pipeline_mode = #tpu.pipeline_mode<synchronous>, transform_indices = @transform_2, window_bounds = array<i64: 1, 128>}, {pipeline_mode = #tpu.pipeline_mode<synchronous>, transform_indices = @transform_3, window_bounds = array<i64: 1, 128>}, {transform_indices = @transform_4, window_bounds = array<i64: 32, 128>}]} {
    %c0 = arith.constant 0 : index
    %c0_0 = arith.constant 0 : index
    %0 = vector.load %arg1[%c0, %c0_0] : memref<32x128xbf16, #tpu.memory_space<vmem>>, vector<32x128xbf16>
    %1 = arith.extf %0 : vector<32x128xbf16> to vector<32x128xf32>
    %c0_1 = arith.constant 0 : index
    %c0_2 = arith.constant 0 : index
    %2 = vector.load %arg2[%c0_1, %c0_2] : memref<8x128xf32, #tpu.memory_space<vmem>>, vector<1x128xf32>
    %cst = arith.constant 3.125000e-02 : f32
    %3 = vector.broadcast %cst : f32 to vector<1x128xf32>
    %4 = arith.mulf %2, %3 : vector<1x128xf32>
    %c1 = arith.constant 1 : index
    %c0_3 = arith.constant 0 : index
    %5 = vector.load %arg2[%c1, %c0_3] : memref<8x128xf32, #tpu.memory_space<vmem>>, vector<1x128xf32>
    %cst_4 = arith.constant 3.125000e-02 : f32
    %6 = vector.broadcast %cst_4 : f32 to vector<1x128xf32>
    %7 = arith.mulf %5, %6 : vector<1x128xf32>
    %8 = arith.mulf %4, %4 : vector<1x128xf32>
    %9 = arith.subf %7, %8 : vector<1x128xf32>
    %cst_5 = arith.constant 0.000000e+00 : f32
    %10 = vector.broadcast %cst_5 : f32 to vector<1x128xf32>
    %11 = arith.maximumf %9, %10 : vector<1x128xf32>
    %cst_6 = arith.constant 9.99999974E-6 : f32
    %12 = vector.broadcast %cst_6 : f32 to vector<1x128xf32>
    %13 = arith.addf %11, %12 : vector<1x128xf32>
    %14 = math.rsqrt %13 : vector<1x128xf32>
    %c0_7 = arith.constant 0 : index
    %c0_8 = arith.constant 0 : index
    %15 = vector.load %arg3[%c0_7, %c0_8] : memref<1x128xf32, #tpu.memory_space<vmem>>, vector<1x128xf32>
    %16 = arith.mulf %14, %15 : vector<1x128xf32>
    %c0_9 = arith.constant 0 : index
    %c0_10 = arith.constant 0 : index
    %17 = vector.load %arg4[%c0_9, %c0_10] : memref<1x128xf32, #tpu.memory_space<vmem>>, vector<1x128xf32>
    %18 = arith.mulf %4, %16 : vector<1x128xf32>
    %19 = arith.subf %17, %18 : vector<1x128xf32>
    %20 = vector.broadcast %16 : vector<1x128xf32> to vector<32x128xf32>
    %21 = arith.mulf %1, %20 : vector<32x128xf32>
    %22 = vector.broadcast %19 : vector<1x128xf32> to vector<32x128xf32>
    %23 = arith.addf %21, %22 : vector<32x128xf32>
    %cst_11 = arith.constant 0.000000e+00 : f32
    %24 = vector.broadcast %cst_11 : f32 to vector<32x128xf32>
    %25 = arith.cmpf oge, %23, %24 : vector<32x128xf32>
    %cst_12 = arith.constant 2.000000e-01 : f32
    %26 = vector.broadcast %cst_12 : f32 to vector<32x128xf32>
    %27 = arith.mulf %26, %23 : vector<32x128xf32>
    %28 = arith.select %25, %23, %27 : vector<32x128xi1>, vector<32x128xf32>
    %29 = arith.truncf %28 : vector<32x128xf32> to vector<32x128xbf16>
    %c0_13 = arith.constant 0 : index
    %c0_14 = arith.constant 0 : index
    %30 = vector.load %arg5[%c0_13, %c0_14] : memref<32x128xbf16, #tpu.memory_space<vmem>>, vector<32x128xbf16>
    tpu.vector_store %arg5[%c0_13, %c0_14], %29 {strides = array<i32>} : memref<32x128xbf16, #tpu.memory_space<vmem>>, vector<32x128xbf16>,
    return
  }
  func.func @transform_0(%arg0: i32) -> (i32, i32) {
    %c0_i32 = arith.constant 0 : i32
    %c0_i32_0 = arith.constant 0 : i32
    return %arg0, %c0_i32 : i32, i32
  }
  func.func @transform_1(%arg0: i32) -> (i32, i32) {
    %c0_i32 = arith.constant 0 : i32
    %c0_i32_0 = arith.constant 0 : i32
    %c0_i32_1 = arith.constant 0 : i32
    return %c0_i32, %c0_i32_0 : i32, i32
  }
  func.func @transform_2(%arg0: i32) -> (i32, i32) {
    %c0_i32 = arith.constant 0 : i32
    %c0_i32_0 = arith.constant 0 : i32
    %c0_i32_1 = arith.constant 0 : i32
    return %c0_i32, %c0_i32_0 : i32, i32
  }
  func.func @transform_3(%arg0: i32) -> (i32, i32) {
    %c0_i32 = arith.constant 0 : i32
    %c0_i32_0 = arith.constant 0 : i32
    %c0_i32_1 = arith.constant 0 : i32
    return %c0_i32, %c0_i32_0 : i32, i32
  }
  func.func @transform_4(%arg0: i32) -> (i32, i32) {
    %c0_i32 = arith.constant 0 : i32
    %c0_i32_0 = arith.constant 0 : i32
    return %arg0, %c0_i32 : i32, i32
  }
}

module attributes {stable_mosaic.version = 11 : i64} {
  func.func @_matmul_stats_kernel(%arg0: i32, %arg1: memref<32x896xbf16, #tpu.memory_space<vmem>>, %arg2: memref<896x128xbf16, #tpu.memory_space<vmem>>, %arg3: memref<32x128xbf16, #tpu.memory_space<vmem>>, %arg4: memref<8x128xf32, #tpu.memory_space<vmem>>) attributes {dimension_semantics = [#tpu.dimension_semantics<parallel>], iteration_bounds = array<i64: 1>, scalar_prefetch = 0 : i64, scratch_operands = 0 : i64, tpu.core_type = #tpu.core_type<tc>, window_params = [{transform_indices = @transform_0, window_bounds = array<i64: 32, 896>}, {pipeline_mode = #tpu.pipeline_mode<synchronous>, transform_indices = @transform_1, window_bounds = array<i64: 896, 128>}, {transform_indices = @transform_2, window_bounds = array<i64: 32, 128>}, {transform_indices = @transform_3, window_bounds = array<i64: 8, 128>}]} {
    %c0 = arith.constant 0 : index
    %c0_0 = arith.constant 0 : index
    %0 = vector.load %arg1[%c0, %c0_0] : memref<32x896xbf16, #tpu.memory_space<vmem>>, vector<32x896xbf16>
    %c0_1 = arith.constant 0 : index
    %c0_2 = arith.constant 0 : index
    %1 = vector.load %arg2[%c0_1, %c0_2] : memref<896x128xbf16, #tpu.memory_space<vmem>>, vector<896x128xbf16>
    %cst = arith.constant dense<0.000000e+00> : vector<32x128xf32>
    %2 = tpu.matmul %0, %1, %cst {dimension_numbers = #tpu.dot_dimension_numbers<[1], [0], [0], [1], [0, 0, 1, 1], [], []>} : vector<32x896xbf16>, vector<896x128xbf16>, vector<32x128xf32> -> vector<32x128xf32>
    %3 = arith.truncf %2 : vector<32x128xf32> to vector<32x128xbf16>
    %c0_3 = arith.constant 0 : index
    %c0_4 = arith.constant 0 : index
    %4 = vector.load %arg3[%c0_3, %c0_4] : memref<32x128xbf16, #tpu.memory_space<vmem>>, vector<32x128xbf16>
    tpu.vector_store %arg3[%c0_3, %c0_4], %3 {strides = array<i32>} : memref<32x128xbf16, #tpu.memory_space<vmem>>, vector<32x128xbf16>,
    %cst_5 = arith.constant 0.000000e+00 : f32
    %5 = vector.broadcast %cst_5 : f32 to vector<8x128xf32>
    %c0_6 = arith.constant 0 : index
    %c0_7 = arith.constant 0 : index
    %6 = vector.load %arg4[%c0_6, %c0_7] : memref<8x128xf32, #tpu.memory_space<vmem>>, vector<8x128xf32>
    tpu.vector_store %arg4[%c0_6, %c0_7], %5 {strides = array<i32>} : memref<8x128xf32, #tpu.memory_space<vmem>>, vector<8x128xf32>,
    %cst_8 = arith.constant dense<0.000000e+00> : vector<128xf32>
    %7 = vector.multi_reduction <add>, %2, %cst_8 [0] : vector<32x128xf32> to vector<128xf32>
    %8 = vector.shape_cast %7 : vector<128xf32> to vector<1x128xf32>
    %c0_9 = arith.constant 0 : index
    %c0_10 = arith.constant 0 : index
    %9 = vector.load %arg4[%c0_9, %c0_10] : memref<8x128xf32, #tpu.memory_space<vmem>>, vector<1x128xf32>
    tpu.vector_store %arg4[%c0_9, %c0_10], %8 {strides = array<i32>} : memref<8x128xf32, #tpu.memory_space<vmem>>, vector<1x128xf32>,
    %10 = arith.mulf %2, %2 : vector<32x128xf32>
    %cst_11 = arith.constant dense<0.000000e+00> : vector<128xf32>
    %11 = vector.multi_reduction <add>, %10, %cst_11 [0] : vector<32x128xf32> to vector<128xf32>
    %12 = vector.shape_cast %11 : vector<128xf32> to vector<1x128xf32>
    %c1 = arith.constant 1 : index
    %c0_12 = arith.constant 0 : index
    %13 = vector.load %arg4[%c1, %c0_12] : memref<8x128xf32, #tpu.memory_space<vmem>>, vector<1x128xf32>
    tpu.vector_store %arg4[%c1, %c0_12], %12 {strides = array<i32>} : memref<8x128xf32, #tpu.memory_space<vmem>>, vector<1x128xf32>,
    return
  }
  func.func @transform_0(%arg0: i32) -> (i32, i32) {
    %c0_i32 = arith.constant 0 : i32
    %c0_i32_0 = arith.constant 0 : i32
    return %arg0, %c0_i32 : i32, i32
  }
  func.func @transform_1(%arg0: i32) -> (i32, i32) {
    %c0_i32 = arith.constant 0 : i32
    %c0_i32_0 = arith.constant 0 : i32
    %c0_i32_1 = arith.constant 0 : i32
    return %c0_i32, %c0_i32_0 : i32, i32
  }
  func.func @transform_2(%arg0: i32) -> (i32, i32) {
    %c0_i32 = arith.constant 0 : i32
    %c0_i32_0 = arith.constant 0 : i32
    return %arg0, %c0_i32 : i32, i32
  }
  func.func @transform_3(%arg0: i32) -> (i32, i32) {
    %c0_i32 = arith.constant 0 : i32
    %c0_i32_0 = arith.constant 0 : i32
    return %arg0, %c0_i32 : i32, i32
  }
}

module attributes {stable_mosaic.version = 11 : i64} {
  func.func @_matmul_bias_act_kernel(%arg0: i32, %arg1: memref<16x1024xbf16, #tpu.memory_space<vmem>>, %arg2: memref<1024x128xbf16, #tpu.memory_space<vmem>>, %arg3: memref<1x128xf32, #tpu.memory_space<vmem>>, %arg4: memref<16x128xf32, #tpu.memory_space<vmem>>) attributes {dimension_semantics = [#tpu.dimension_semantics<parallel>], iteration_bounds = array<i64: 1>, scalar_prefetch = 0 : i64, scratch_operands = 0 : i64, tpu.core_type = #tpu.core_type<tc>, window_params = [{transform_indices = @transform_0, window_bounds = array<i64: 16, 1024>}, {pipeline_mode = #tpu.pipeline_mode<synchronous>, transform_indices = @transform_1, window_bounds = array<i64: 1024, 128>}, {pipeline_mode = #tpu.pipeline_mode<synchronous>, transform_indices = @transform_2, window_bounds = array<i64: 1, 128>}, {transform_indices = @transform_3, window_bounds = array<i64: 16, 128>}]} {
    %c0 = arith.constant 0 : index
    %c0_0 = arith.constant 0 : index
    %0 = vector.load %arg1[%c0, %c0_0] : memref<16x1024xbf16, #tpu.memory_space<vmem>>, vector<16x1024xbf16>
    %c0_1 = arith.constant 0 : index
    %c0_2 = arith.constant 0 : index
    %1 = vector.load %arg2[%c0_1, %c0_2] : memref<1024x128xbf16, #tpu.memory_space<vmem>>, vector<1024x128xbf16>
    %cst = arith.constant dense<0.000000e+00> : vector<16x128xf32>
    %2 = tpu.matmul %0, %1, %cst {dimension_numbers = #tpu.dot_dimension_numbers<[1], [0], [0], [1], [0, 0, 1, 1], [], []>} : vector<16x1024xbf16>, vector<1024x128xbf16>, vector<16x128xf32> -> vector<16x128xf32>
    %c0_3 = arith.constant 0 : index
    %c0_4 = arith.constant 0 : index
    %3 = vector.load %arg3[%c0_3, %c0_4] : memref<1x128xf32, #tpu.memory_space<vmem>>, vector<1x128xf32>
    %4 = vector.broadcast %3 : vector<1x128xf32> to vector<16x128xf32>
    %5 = arith.addf %2, %4 : vector<16x128xf32>
    %cst_5 = arith.constant 0.000000e+00 : f32
    %6 = vector.broadcast %cst_5 : f32 to vector<16x128xf32>
    %7 = arith.subf %6, %5 : vector<16x128xf32>
    %8 = math.exp %7 : vector<16x128xf32>
    %cst_6 = arith.constant 1.000000e+00 : f32
    %9 = vector.broadcast %cst_6 : f32 to vector<16x128xf32>
    %10 = arith.addf %9, %8 : vector<16x128xf32>
    %cst_7 = arith.constant 1.000000e+00 : f32
    %11 = vector.broadcast %cst_7 : f32 to vector<16x128xf32>
    %12 = arith.divf %11, %10 : vector<16x128xf32>
    %c0_8 = arith.constant 0 : index
    %c0_9 = arith.constant 0 : index
    %13 = vector.load %arg4[%c0_8, %c0_9] : memref<16x128xf32, #tpu.memory_space<vmem>>, vector<16x128xf32>
    tpu.vector_store %arg4[%c0_8, %c0_9], %12 {strides = array<i32>} : memref<16x128xf32, #tpu.memory_space<vmem>>, vector<16x128xf32>,
    return
  }
  func.func @transform_0(%arg0: i32) -> (i32, i32) {
    %c0_i32 = arith.constant 0 : i32
    %c0_i32_0 = arith.constant 0 : i32
    return %arg0, %c0_i32 : i32, i32
  }
  func.func @transform_1(%arg0: i32) -> (i32, i32) {
    %c0_i32 = arith.constant 0 : i32
    %c0_i32_0 = arith.constant 0 : i32
    %c0_i32_1 = arith.constant 0 : i32
    return %c0_i32, %c0_i32_0 : i32, i32
  }
  func.func @transform_2(%arg0: i32) -> (i32, i32) {
    %c0_i32 = arith.constant 0 : i32
    %c0_i32_0 = arith.constant 0 : i32
    %c0_i32_1 = arith.constant 0 : i32
    return %c0_i32, %c0_i32_0 : i32, i32
  }
  func.func @transform_3(%arg0: i32) -> (i32, i32) {
    %c0_i32 = arith.constant 0 : i32
    %c0_i32_0 = arith.constant 0 : i32
    return %arg0, %c0_i32 : i32, i32
  }
}

</mosaic_0001>

<llo_original>
// kernel: discriminator_forward.8
$region0: #{discriminator_forward.8}
  #allocation0 [shape = 'u32[]', space=smem, size = 0x4, offset = 0x4, fixed_abs, tag = 'smem constant byte address 0x4 - core index']
  #allocation1 [shape = 'u32[144,128]{1,0:T(1,128)}', space=vmem, size = 0x12000, scoped, tag = 'internal scratch']
  %s0 = inlined_call_operand.vmem [shape: bf16[2048,128], index: 0, kind: input, shape index: {}]
  %s1 = inlined_call_operand.vmem [shape: bf16[128,128], index: 1, kind: input, shape index: {}]
  %s2 = inlined_call_operand.vmem [shape: f32[1,128], index: 2, kind: input, shape index: {}]
  %s3 = inlined_call_operand.vmem [shape: bf16[2048,128], index: 3, kind: output, shape index: {}]
  %s4 = sld [smem:[#allocation0]]
  $region45: #{discriminator_forward.8} parent=0
    _
  %s6 = ssub.s32 1, %s4
  %s7 = scalar_select 0, %s6, %s4
  loop: start=0, step=1, limit=6
  $region2: #{discriminator_forward.8} parent=0 // loop_pre_header
    _
  $region3: #{discriminator_forward.8} parent=0 // loop_header
    %s9 = sphi 0, %s13
    %p10 = scmp.ge.s32.totalorder %s9, 6
    %s19 = sphi 0, %s21
    %s22 = sphi 0, %s19
    %s23 = sphi 0, %s22
    %s39 = sphi 0, %s23
    %s43 = sphi 0, %s43
    %s45 = sphi 0, %s43
    %s46 = sphi 0, %s45
    %s60 = sphi 0, %s46
    %s64 = sphi 0, %s64
    %s66 = sphi 0, %s64
    %s67 = sphi 0, %s66
    %s81 = sphi 0, %s67
    %s87 = sphi 0, %s89
    %s90 = sphi 0, %s87
    %s91 = sphi 0, %s90
    %s107 = sphi 0, %s91
  $region4: #{discriminator_forward.8} parent=0 // loop_header_branch
    %12 = sbr.rel (%p10) target = $region8
  $region5: #{discriminator_forward.8} parent=0 // loop_body
    %s14 = ssub.s32 %s9, 1
    %s15 = ssub.s32 %s9, 2
    %s16 = sadd.s32 %s9, 1
    %s17 = ssub.s32 %s9, %s16
    %p18 = scmp.eq.s32.totalorder %s17, 0
    %s20 = sadd.s32 %s19, 1
    %s21 = scalar_select %p18, %s19, %s20
    %p24 = pneg %p18
    %p25 = scmp.eq.s32.totalorder %s9, 3
    %p26 = por %p24, %p25
    %p27 = scmp.ne.s32.totalorder %s19, %s22
    %p28 = scmp.eq.s32.totalorder %s9, 0
    %p29 = por %p27, %p28
    %p30 = scmp.ne.s32.totalorder %s19, %s22
    %p31 = scmp.eq.s32.totalorder %s14, 3
    %p32 = por %p30, %p31
    %p33 = scmp.ne.s32.totalorder %s22, %s23
    %p34 = scmp.eq.s32.totalorder %s14, 0
    %p35 = por %p33, %p34
    %p36 = scmp.ne.s32.totalorder %s22, %s23
    %p37 = scmp.eq.s32.totalorder %s15, 3
    %p38 = por %p36, %p37
    %p40 = scmp.ne.s32.totalorder %s23, %s39
    %p41 = scmp.eq.s32.totalorder %s15, 0
    %p42 = por %p40, %p41
    %s44 = sadd.s32 %s43, 1
    %p47 = scmp.eq.s32.totalorder %s9, 3
    %p48 = scmp.ne.s32.totalorder %s43, %s45
    %p49 = scmp.eq.s32.totalorder %s9, 0
    %p50 = por %p48, %p49
    %p51 = scmp.ne.s32.totalorder %s43, %s45
    %p52 = scmp.eq.s32.totalorder %s14, 3
    %p53 = por %p51, %p52
    %p54 = scmp.ne.s32.totalorder %s45, %s46
    %p55 = scmp.eq.s32.totalorder %s14, 0
    %p56 = por %p54, %p55
    %p57 = scmp.ne.s32.totalorder %s45, %s46
    %p58 = scmp.eq.s32.totalorder %s15, 3
    %p59 = por %p57, %p58
    %p61 = scmp.ne.s32.totalorder %s46, %s60
    %p62 = scmp.eq.s32.totalorder %s15, 0
    %p63 = por %p61, %p62
    %s65 = sadd.s32 %s64, 1
    %p68 = scmp.eq.s32.totalorder %s9, 3
    %p69 = scmp.ne.s32.totalorder %s64, %s66
    %p70 = scmp.eq.s32.totalorder %s9, 0
    %p71 = por %p69, %p70
    %p72 = scmp.ne.s32.totalorder %s64, %s66
    %p73 = scmp.eq.s32.totalorder %s14, 3
    %p74 = por %p72, %p73
    %p75 = scmp.ne.s32.totalorder %s66, %s67
    %p76 = scmp.eq.s32.totalorder %s14, 0
    %p77 = por %p75, %p76
    %p78 = scmp.ne.s32.totalorder %s66, %s67
    %p79 = scmp.eq.s32.totalorder %s15, 3
    %p80 = por %p78, %p79
    %p82 = scmp.ne.s32.totalorder %s67, %s81
    %p83 = scmp.eq.s32.totalorder %s15, 0
    %p84 = por %p82, %p83
    %s85 = ssub.s32 %s9, %s16
    %p86 = scmp.eq.s32.totalorder %s85, 0
    %s88 = sadd.s32 %s87, 1
    %s89 = scalar_select %p86, %s87, %s88
    %p92 = pneg %p86
    %p93 = scmp.eq.s32.totalorder %s9, 3
    %p94 = por %p92, %p93
    %p95 = scmp.ne.s32.totalorder %s87, %s90
    %p96 = scmp.eq.s32.totalorder %s9, 0
    %p97 = por %p95, %p96
    %p98 = scmp.ne.s32.totalorder %s87, %s90
    %p99 = scmp.eq.s32.totalorder %s14, 3
    %p100 = por %p98, %p99
    %p101 = scmp.ne.s32.totalorder %s90, %s91
    %p102 = scmp.eq.s32.totalorder %s14, 0
    %p103 = por %p101, %p102
    %p104 = scmp.ne.s32.totalorder %s90, %s91
    %p105 = scmp.eq.s32.totalorder %s15, 3
    %p106 = por %p104, %p105
    %p108 = scmp.ne.s32.totalorder %s91, %s107
    %p109 = scmp.eq.s32.totalorder %s15, 0
    %p110 = por %p108, %p109
    %p111 = scmp.le.s32.totalorder 1, %s9
    %p112 = scmp.lt.s32.totalorder %s9, 5
    %p113 = pnand %p111, %p112
    %p114 = pneg %p113
    // Predicated region
    $region9: #{discriminator_forward.8} parent=5 // pred_check
      _
    $region10: #{discriminator_forward.8} parent=5 // pred_check_branch
      %116 = sbr.rel (%p113) target = $region12
    $region11: #{discriminator_forward.8} parent=5 // pred_region
      %s117 = ssub.s32 %s9, 1
      // Predicated region
      $region13: #{discriminator_forward.8} parent=11 // pred_check
        %p118 = pneg %p56
      $region14: #{discriminator_forward.8} parent=11 // pred_check_branch
        %120 = sbr.rel (%p118) target = $region16
      $region15: #{discriminator_forward.8} parent=11 // pred_region
        _
      $region16: #{discriminator_forward.8} parent=11 // pred_fallthru
        _
      // Predicated region
      $region17: #{discriminator_forward.8} parent=11 // pred_check
        %p121 = pneg %p77
      $region18: #{discriminator_forward.8} parent=11 // pred_check_branch
        %123 = sbr.rel (%p121) target = $region20
      $region19: #{discriminator_forward.8} parent=11 // pred_region
        _
      $region20: #{discriminator_forward.8} parent=11 // pred_fallthru
        _
    $region12: #{discriminator_forward.8} parent=5 // pred_fallthru
      _
    %p124 = scmp.lt.s32.totalorder %s9, 4
    // Predicated region
    $region21: #{discriminator_forward.8} parent=5 // pred_check
      %p125 = pneg %p124
    $region22: #{discriminator_forward.8} parent=5 // pred_check_branch
      %127 = sbr.rel (%p125) target = $region24
    $region23: #{discriminator_forward.8} parent=5 // pred_region
      // Predicated region
      $region25: #{discriminator_forward.8} parent=23 // pred_check
        %p128 = pneg %p29
      $region26: #{discriminator_forward.8} parent=23 // pred_check_branch
        %130 = sbr.rel (%p128) target = $region28
      $region27: #{discriminator_forward.8} parent=23 // pred_region
        %s131 = smul.u32 64, %s9
        %p132 = scmp.lt.s32.totalorder %s131, 255
        %s133 = scalar_select %p132, %s131, 255
        %s134 = smul.addr %s133, 4
        %s135 = scalar_lea.vmem %s0, %s134
        %s136 = smul.u32 64, %s9
      $region28: #{discriminator_forward.8} parent=23 // pred_fallthru
        _
    $region24: #{discriminator_forward.8} parent=5 // pred_fallthru
      _
    %p137 = scmp.le.s32.totalorder 1, %s9
    %p138 = scmp.lt.s32.totalorder %s9, 5
    %p139 = pnand %p137, %p138
    %p140 = pneg %p139
    // Predicated region
    $region29: #{discriminator_forward.8} parent=5 // pred_check
      _
    $region30: #{discriminator_forward.8} parent=5 // pred_check_branch
      %142 = sbr.rel (%p139) target = $region32
    $region31: #{discriminator_forward.8} parent=5 // pred_region
      %s143 = ssub.s32 %s9, 1
      %s144 = smul.u32 64, %s14
      %p145 = scmp.lt.s32.totalorder %s144, 255
      %s146 = scalar_select %p145, %s144, 255
      %s147 = smul.addr %s146, 4
      %s148 = scalar_lea.vmem %s0, %s147
      %p149 = pneg %p35
      %p150 = pneg %p32
      %p151 = pneg %p56
      %p152 = pneg %p53
      %p153 = pneg %p77
      %p154 = pneg %p74
      %p155 = pneg %p103
      %p156 = pneg %p100
      %s157 = smul.u32 64, %s14
      %p158 = scmp.lt.s32.totalorder %s157, 255
      %s159 = scalar_select %p158, %s157, 255
      %s160 = smul.addr %s159, 4
      %s161 = scalar_lea.vmem %s3, %s160
      %s162 = smul.u32 64, %s14
      %p163 = scmp.lt.s32.totalorder %s162, 255
      %s164 = scalar_select %p163, %s162, 255
      %s165 = smul.addr %s164, 4
      %s166 = scalar_lea.vmem %s0, %s165
      %s167 = smul.u32 64, %s14
      %s168 = smul.u32 64, %s14
      %p169 = scmp.lt.s32.totalorder %s168, 255
      %s170 = scalar_select %p169, %s168, 255
      %s171 = smul.addr %s170, 4
      %s172 = scalar_lea.vmem %s3, %s171
      %s173 = smul.u32 64, %s14
      %v175 = vld [vmem:[%s166] sm:$0xf]
      %v176 = vld [vmem:[%s166 + $0x4] sm:$0xf]
      %v177 = vld [vmem:[%s166 + $0x8] sm:$0xf]
      %v178 = vld [vmem:[%s166 + $0xc] sm:$0xf]
      %v179 = vld [vmem:[%s166 + $0x10] sm:$0xf]
      %v180 = vld [vmem:[%s166 + $0x14] sm:$0xf]
      %v181 = vld [vmem:[%s166 + $0x18] sm:$0xf]
      %v182 = vld [vmem:[%s166 + $0x1c] sm:$0xf]
      %v183 = vld [vmem:[%s166 + $0x20] sm:$0xf]
      %v184 = vld [vmem:[%s166 + $0x24] sm:$0xf]
      %v185 = vld [vmem:[%s166 + $0x28] sm:$0xf]
      %v186 = vld [vmem:[%s166 + $0x2c] sm:$0xf]
      %v187 = vld [vmem:[%s166 + $0x30] sm:$0xf]
      %v188 = vld [vmem:[%s166 + $0x34] sm:$0xf]
      %v189 = vld [vmem:[%s166 + $0x38] sm:$0xf]
      %v190 = vld [vmem:[%s166 + $0x3c] sm:$0xf]
      %v191 = vld [vmem:[%s166 + $0x40] sm:$0xf]
      %v192 = vld [vmem:[%s166 + $0x44] sm:$0xf]
      %v193 = vld [vmem:[%s166 + $0x48] sm:$0xf]
      %v194 = vld [vmem:[%s166 + $0x4c] sm:$0xf]
      %v195 = vld [vmem:[%s166 + $0x50] sm:$0xf]
      %v196 = vld [vmem:[%s166 + $0x54] sm:$0xf]
      %v197 = vld [vmem:[%s166 + $0x58] sm:$0xf]
      %v198 = vld [vmem:[%s166 + $0x5c] sm:$0xf]
      %v199 = vld [vmem:[%s166 + $0x60] sm:$0xf]
      %v200 = vld [vmem:[%s166 + $0x64] sm:$0xf]
      %v201 = vld [vmem:[%s166 + $0x68] sm:$0xf]
      %v202 = vld [vmem:[%s166 + $0x6c] sm:$0xf]
      %v203 = vld [vmem:[%s166 + $0x70] sm:$0xf]
      %v204 = vld [vmem:[%s166 + $0x74] sm:$0xf]
      %v205 = vld [vmem:[%s166 + $0x78] sm:$0xf]
      %v206 = vld [vmem:[%s166 + $0x7c] sm:$0xf]
      %v207 = vld [vmem:[%s166 + $0x80] sm:$0xf]
      %v208 = vld [vmem:[%s166 + $0x84] sm:$0xf]
      %v209 = vld [vmem:[%s166 + $0x88] sm:$0xf]
      %v210 = vld [vmem:[%s166 + $0x8c] sm:$0xf]
      %v211 = vld [vmem:[%s166 + $0x90] sm:$0xf]
      %v212 = vld [vmem:[%s166 + $0x94] sm:$0xf]
      %v213 = vld [vmem:[%s166 + $0x98] sm:$0xf]
      %v214 = vld [vmem:[%s166 + $0x9c] sm:$0xf]
      %v215 = vld [vmem:[%s166 + $0xa0] sm:$0xf]
      %v216 = vld [vmem:[%s166 + $0xa4] sm:$0xf]
      %v217 = vld [vmem:[%s166 + $0xa8] sm:$0xf]
      %v218 = vld [vmem:[%s166 + $0xac] sm:$0xf]
      %v219 = vld [vmem:[%s166 + $0xb0] sm:$0xf]
      %v220 = vld [vmem:[%s166 + $0xb4] sm:$0xf]
      %v221 = vld [vmem:[%s166 + $0xb8] sm:$0xf]
      %v222 = vld [vmem:[%s166 + $0xbc] sm:$0xf]
      %v223 = vld [vmem:[%s166 + $0xc0] sm:$0xf]
      %v224 = vld [vmem:[%s166 + $0xc4] sm:$0xf]
      %v225 = vld [vmem:[%s166 + $0xc8] sm:$0xf]
      %v226 = vld [vmem:[%s166 + $0xcc] sm:$0xf]
      %v227 = vld [vmem:[%s166 + $0xd0] sm:$0xf]
      %v228 = vld [vmem:[%s166 + $0xd4] sm:$0xf]
      %v229 = vld [vmem:[%s166 + $0xd8] sm:$0xf]
      %v230 = vld [vmem:[%s166 + $0xdc] sm:$0xf]
      %v231 = vld [vmem:[%s166 + $0xe0] sm:$0xf]
      %v232 = vld [vmem:[%s166 + $0xe4] sm:$0xf]
      %v233 = vld [vmem:[%s166 + $0xe8] sm:$0xf]
      %v234 = vld [vmem:[%s166 + $0xec] sm:$0xf]
      %v235 = vld [vmem:[%s166 + $0xf0] sm:$0xf]
      %v236 = vld [vmem:[%s166 + $0xf4] sm:$0xf]
      %v237 = vld [vmem:[%s166 + $0xf8] sm:$0xf]
      %v238 = vld [vmem:[%s166 + $0xfc] sm:$0xf]
      %v239 = vld [vmem:[%s1] sm:$0xf]
      %v240 = vld [vmem:[%s1 + $0x4] sm:$0xf]
      %v241 = vld [vmem:[%s1 + $0x8] sm:$0xf]
      %v242 = vld [vmem:[%s1 + $0xc] sm:$0xf]
      %v243 = vld [vmem:[%s1 + $0x10] sm:$0xf]
      %v244 = vld [vmem:[%s1 + $0x14] sm:$0xf]
      %v245 = vld [vmem:[%s1 + $0x18] sm:$0xf]
      %v246 = vld [vmem:[%s1 + $0x1c] sm:$0xf]
      %v247 = vld [vmem:[%s1 + $0x20] sm:$0xf]
      %v248 = vld [vmem:[%s1 + $0x24] sm:$0xf]
      %v249 = vld [vmem:[%s1 + $0x28] sm:$0xf]
      %v250 = vld [vmem:[%s1 + $0x2c] sm:$0xf]
      %v251 = vld [vmem:[%s1 + $0x30] sm:$0xf]
      %v252 = vld [vmem:[%s1 + $0x34] sm:$0xf]
      %v253 = vld [vmem:[%s1 + $0x38] sm:$0xf]
      %v254 = vld [vmem:[%s1 + $0x3c] sm:$0xf]
      %v255 = vld [vmem:[%s2] sm:$0x1]
      %v257 = vlaneseq
      %v258 = vshrl.u32 %v257, 7
      %v259 = vsub.s32 0, %v258
      %v260 = vrot.slane %v255, %v259
      %v326 = vunpack.c.l.b16 %v175
      %v327 = vunpack.c.l.b16 %v176
      %v328 = vunpack.c.l.b16 %v177
      %v329 = vunpack.c.l.b16 %v178
      %v330 = vunpack.c.l.b16 %v179
      %v331 = vunpack.c.l.b16 %v180
      %v332 = vunpack.c.l.b16 %v181
      %v333 = vunpack.c.l.b16 %v182
      %v334 = vunpack.c.l.b16 %v183
      %v335 = vunpack.c.l.b16 %v184
      %v336 = vunpack.c.l.b16 %v185
      %v337 = vunpack.c.l.b16 %v186
      %v338 = vunpack.c.l.b16 %v187
      %v339 = vunpack.c.l.b16 %v188
      %v340 = vunpack.c.l.b16 %v189
      %v341 = vunpack.c.l.b16 %v190
      %v342 = vunpack.c.l.b16 %v191
      %v343 = vunpack.c.l.b16 %v192
      %v344 = vunpack.c.l.b16 %v193
      %v345 = vunpack.c.l.b16 %v194
      %v346 = vunpack.c.l.b16 %v195
      %v347 = vunpack.c.l.b16 %v196
      %v348 = vunpack.c.l.b16 %v197
      %v349 = vunpack.c.l.b16 %v198
      %v350 = vunpack.c.l.b16 %v199
      %v351 = vunpack.c.l.b16 %v200
      %v352 = vunpack.c.l.b16 %v201
      %v353 = vunpack.c.l.b16 %v202
      %v354 = vunpack.c.l.b16 %v203
      %v355 = vunpack.c.l.b16 %v204
      %v356 = vunpack.c.l.b16 %v205
      %v357 = vunpack.c.l.b16 %v206
      %v358 = vunpack.c.l.b16 %v207
      %v359 = vunpack.c.l.b16 %v208
      %v360 = vunpack.c.l.b16 %v209
      %v361 = vunpack.c.l.b16 %v210
      %v362 = vunpack.c.l.b16 %v211
      %v363 = vunpack.c.l.b16 %v212
      %v364 = vunpack.c.l.b16 %v213
      %v365 = vunpack.c.l.b16 %v214
      %v366 = vunpack.c.l.b16 %v215
      %v367 = vunpack.c.l.b16 %v216
      %v368 = vunpack.c.l.b16 %v217
      %v369 = vunpack.c.l.b16 %v218
      %v370 = vunpack.c.l.b16 %v219
      %v371 = vunpack.c.l.b16 %v220
      %v372 = vunpack.c.l.b16 %v221
      %v373 = vunpack.c.l.b16 %v222
      %v374 = vunpack.c.l.b16 %v223
      %v375 = vunpack.c.l.b16 %v224
      %v376 = vunpack.c.l.b16 %v225
      %v377 = vunpack.c.l.b16 %v226
      %v378 = vunpack.c.l.b16 %v227
      %v379 = vunpack.c.l.b16 %v228
      %v380 = vunpack.c.l.b16 %v229
      %v381 = vunpack.c.l.b16 %v230
      %v382 = vunpack.c.l.b16 %v231
      %v383 = vunpack.c.l.b16 %v232
      %v384 = vunpack.c.l.b16 %v233
      %v385 = vunpack.c.l.b16 %v234
      %v386 = vunpack.c.l.b16 %v235
      %v387 = vunpack.c.l.b16 %v236
      %v388 = vunpack.c.l.b16 %v237
      %v389 = vunpack.c.l.b16 %v238
      %v390 = vpack.c.b16 %v327, %v326
      %v391 = vpack.c.b16 %v329, %v328
      %v392 = vpack.c.b16 %v331, %v330
      %v393 = vpack.c.b16 %v333, %v332
      %v394 = vpack.c.b16 %v335, %v334
      %v395 = vpack.c.b16 %v337, %v336
      %v396 = vpack.c.b16 %v339, %v338
      %v397 = vpack.c.b16 %v341, %v340
      %v398 = vpack.c.b16 %v343, %v342
      %v399 = vpack.c.b16 %v345, %v344
      %v400 = vpack.c.b16 %v347, %v346
      %v401 = vpack.c.b16 %v349, %v348
      %v402 = vpack.c.b16 %v351, %v350
      %v403 = vpack.c.b16 %v353, %v352
      %v404 = vpack.c.b16 %v355, %v354
      %v405 = vpack.c.b16 %v357, %v356
      %v406 = vpack.c.b16 %v359, %v358
      %v407 = vpack.c.b16 %v361, %v360
      %v408 = vpack.c.b16 %v363, %v362
      %v409 = vpack.c.b16 %v365, %v364
      %v410 = vpack.c.b16 %v367, %v366
      %v411 = vpack.c.b16 %v369, %v368
      %v412 = vpack.c.b16 %v371, %v370
      %v413 = vpack.c.b16 %v373, %v372
      %v414 = vpack.c.b16 %v375, %v374
      %v415 = vpack.c.b16 %v377, %v376
      %v416 = vpack.c.b16 %v379, %v378
      %v417 = vpack.c.b16 %v381, %v380
      %v418 = vpack.c.b16 %v383, %v382
      %v419 = vpack.c.b16 %v385, %v384
      %v420 = vpack.c.b16 %v387, %v386
      %v421 = vpack.c.b16 %v389, %v388
      %v470 = vunpack.c.l.b16 %v239
      %v471 = vunpack.c.l.b16 %v240
      %v472 = vunpack.c.l.b16 %v241
      %v473 = vunpack.c.l.b16 %v242
      %v474 = vunpack.c.l.b16 %v243
      %v475 = vunpack.c.l.b16 %v244
      %v476 = vunpack.c.l.b16 %v245
      %v477 = vunpack.c.l.b16 %v246
      %v478 = vunpack.c.l.b16 %v247
      %v479 = vunpack.c.l.b16 %v248
      %v480 = vunpack.c.l.b16 %v249
      %v481 = vunpack.c.l.b16 %v250
      %v482 = vunpack.c.l.b16 %v251
      %v483 = vunpack.c.l.b16 %v252
      %v484 = vunpack.c.l.b16 %v253
      %v485 = vunpack.c.l.b16 %v254
      %v486 = vpack.c.b16 %v471, %v470
      %v487 = vpack.c.b16 %v473, %v472
      %v488 = vpack.c.b16 %v475, %v474
      %v489 = vpack.c.b16 %v477, %v476
      %v490 = vpack.c.b16 %v479, %v478
      %v491 = vpack.c.b16 %v481, %v480
      %v492 = vpack.c.b16 %v483, %v482
      %v493 = vpack.c.b16 %v485, %v484
      %502 = vmatprep.subr.bf16.mxu0 0
      %503 = vmatpush1.bf16.msra.mxu0 %v486
      %504 = vmatprep.subr.bf16.mxu0 0
      %505 = vmatpush1.bf16.msra.mxu0 %v487
      %506 = vmatprep.subr.bf16.mxu0 0
      %507 = vmatpush1.bf16.msra.mxu0 %v488
      %508 = vmatprep.subr.bf16.mxu0 0
      %509 = vmatpush1.bf16.msra.mxu0 %v489
      %510 = vmatprep.subr.bf16.mxu0 0
      %511 = vmatpush1.bf16.msra.mxu0 %v490
      %512 = vmatprep.subr.bf16.mxu0 0
      %513 = vmatpush1.bf16.msra.mxu0 %v491
      %514 = vmatprep.subr.bf16.mxu0 0
      %515 = vmatpush1.bf16.msra.mxu0 %v492
      %516 = vmatprep.subr.bf16.mxu0 0
      %517 = vmatpush1.bf16.msra.mxu0 %v493
      %518 = vmatprep.subr.bf16.mxu0 0
      %519 = vmatpush1.bf16.msra.mxu0 0
      %520 = vmatprep.subr.bf16.mxu0 0
      %521 = vmatpush1.bf16.msra.mxu0 0
      %522 = vmatprep.subr.bf16.mxu0 0
      %523 = vmatpush1.bf16.msra.mxu0 0
      %524 = vmatprep.subr.bf16.mxu0 0
      %525 = vmatpush1.bf16.msra.mxu0 0
      %526 = vmatprep.subr.bf16.mxu0 0
      %527 = vmatpush1.bf16.msra.mxu0 0
      %528 = vmatprep.subr.bf16.mxu0 0
      %529 = vmatpush1.bf16.msra.mxu0 0
      %530 = vmatprep.subr.bf16.mxu0 0
      %531 = vmatpush1.bf16.msra.mxu0 0
      %532 = vmatprep.subr.bf16.mxu0 0
      %533 = vmatpush1.bf16.msra.mxu0 0
      %534 = vmatprep.mubr.bf16.mxu0 0
      %535 = vmatmul.mubr.bf16.gmra.mrb[0].mxu0 %v390
      %v536 = vpop.f32.mrb[0].mxu0
      %v537 = vadd.f32 %v260, %v536
      %v538 = vpop.f32.mrb[0].mxu0
      %v539 = vpop.f32.mrb[0].mxu0
      %v540 = vadd.f32 %v260, %v539
      %v541 = vpop.f32.mrb[0].mxu0
      %542 = vmatprep.mubr.bf16.mxu0 0
      %543 = vmatmul.mubr.bf16.gmra.mrb[0].mxu0 %v391
      %v544 = vpop.f32.mrb[0].mxu0
      %v545 = vadd.f32 %v260, %v544
      %v546 = vpop.f32.mrb[0].mxu0
      %v547 = vpop.f32.mrb[0].mxu0
      %v548 = vadd.f32 %v260, %v547
      %v549 = vpop.f32.mrb[0].mxu0
      %550 = vmatprep.mubr.bf16.mxu0 0
      %551 = vmatmul.mubr.bf16.gmra.mrb[0].mxu0 %v392
      %v552 = vpop.f32.mrb[0].mxu0
      %v553 = vadd.f32 %v260, %v552
      %v554 = vpop.f32.mrb[0].mxu0
      %v555 = vpop.f32.mrb[0].mxu0
      %v556 = vadd.f32 %v260, %v555
      %v557 = vpop.f32.mrb[0].mxu0
      %558 = vmatprep.mubr.bf16.mxu0 0
      %559 = vmatmul.mubr.bf16.gmra.mrb[0].mxu0 %v393
      %v560 = vpop.f32.mrb[0].mxu0
      %v561 = vadd.f32 %v260, %v560
      %v562 = vpop.f32.mrb[0].mxu0
      %v563 = vpop.f32.mrb[0].mxu0
      %v564 = vadd.f32 %v260, %v563
      %v565 = vpop.f32.mrb[0].mxu0
      %566 = vmatprep.mubr.bf16.mxu0 0
      %567 = vmatmul.mubr.bf16.gmra.mrb[0].mxu0 %v394
      %v568 = vpop.f32.mrb[0].mxu0
      %v569 = vadd.f32 %v260, %v568
      %v570 = vpop.f32.mrb[0].mxu0
      %v571 = vpop.f32.mrb[0].mxu0
      %v572 = vadd.f32 %v260, %v571
      %v573 = vpop.f32.mrb[0].mxu0
      %574 = vmatprep.mubr.bf16.mxu0 0
      %575 = vmatmul.mubr.bf16.gmra.mrb[0].mxu0 %v395
      %v576 = vpop.f32.mrb[0].mxu0
      %v577 = vadd.f32 %v260, %v576
      %v578 = vpop.f32.mrb[0].mxu0
      %v579 = vpop.f32.mrb[0].mxu0
      %v580 = vadd.f32 %v260, %v579
      %v581 = vpop.f32.mrb[0].mxu0
      %582 = vmatprep.mubr.bf16.mxu0 0
      %583 = vmatmul.mubr.bf16.gmra.mrb[0].mxu0 %v396
      %v584 = vpop.f32.mrb[0].mxu0
      %v585 = vadd.f32 %v260, %v584
      %v586 = vpop.f32.mrb[0].mxu0
      %v587 = vpop.f32.mrb[0].mxu0
      %v588 = vadd.f32 %v260, %v587
      %v589 = vpop.f32.mrb[0].mxu0
      %590 = vmatprep.mubr.bf16.mxu0 0
      %591 = vmatmul.mubr.bf16.gmra.mrb[0].mxu0 %v397
      %v592 = vpop.f32.mrb[0].mxu0
      %v593 = vadd.f32 %v260, %v592
      %v594 = vpop.f32.mrb[0].mxu0
      %v595 = vpop.f32.mrb[0].mxu0
      %v596 = vadd.f32 %v260, %v595
      %v597 = vpop.f32.mrb[0].mxu0
      %598 = vmatprep.mubr.bf16.mxu0 0
      %599 = vmatmul.mubr.bf16.gmra.mrb[0].mxu0 %v398
      %v600 = vpop.f32.mrb[0].mxu0
      %v601 = vadd.f32 %v260, %v600
      %v602 = vpop.f32.mrb[0].mxu0
      %v603 = vpop.f32.mrb[0].mxu0
      %v604 = vadd.f32 %v260, %v603
      %v605 = vpop.f32.mrb[0].mxu0
      %606 = vmatprep.mubr.bf16.mxu0 0
      %607 = vmatmul.mubr.bf16.gmra.mrb[0].mxu0 %v399
      %v608 = vpop.f32.mrb[0].mxu0
      %v609 = vadd.f32 %v260, %v608
      %v610 = vpop.f32.mrb[0].mxu0
      %v611 = vpop.f32.mrb[0].mxu0
      %v612 = vadd.f32 %v260, %v611
      %v613 = vpop.f32.mrb[0].mxu0
      %614 = vmatprep.mubr.bf16.mxu0 0
      %615 = vmatmul.mubr.bf16.gmra.mrb[0].mxu0 %v400
      %v616 = vpop.f32.mrb[0].mxu0
      %v617 = vadd.f32 %v260, %v616
      %v618 = vpop.f32.mrb[0].mxu0
      %v619 = vpop.f32.mrb[0].mxu0
      %v620 = vadd.f32 %v260, %v619
      %v621 = vpop.f32.mrb[0].mxu0
      %622 = vmatprep.mubr.bf16.mxu0 0
      %623 = vmatmul.mubr.bf16.gmra.mrb[0].mxu0 %v401
      %v624 = vpop.f32.mrb[0].mxu0
      %v625 = vadd.f32 %v260, %v624
      %v626 = vpop.f32.mrb[0].mxu0
      %v627 = vpop.f32.mrb[0].mxu0
      %v628 = vadd.f32 %v260, %v627
      %v629 = vpop.f32.mrb[0].mxu0
      %630 = vmatprep.mubr.bf16.mxu0 0
      %631 = vmatmul.mubr.bf16.gmra.mrb[0].mxu0 %v402
      %v632 = vpop.f32.mrb[0].mxu0
      %v633 = vadd.f32 %v260, %v632
      %v634 = vpop.f32.mrb[0].mxu0
      %v635 = vpop.f32.mrb[0].mxu0
      %v636 = vadd.f32 %v260, %v635
      %v637 = vpop.f32.mrb[0].mxu0
      %638 = vmatprep.mubr.bf16.mxu0 0
      %639 = vmatmul.mubr.bf16.gmra.mrb[0].mxu0 %v403
      %v640 = vpop.f32.mrb[0].mxu0
      %v641 = vadd.f32 %v260, %v640
      %v642 = vpop.f32.mrb[0].mxu0
      %v643 = vpop.f32.mrb[0].mxu0
      %v644 = vadd.f32 %v260, %v643
      %v645 = vpop.f32.mrb[0].mxu0
      %646 = vmatprep.mubr.bf16.mxu0 0
      %647 = vmatmul.mubr.bf16.gmra.mrb[0].mxu0 %v404
      %v648 = vpop.f32.mrb[0].mxu0
      %v649 = vadd.f32 %v260, %v648
      %v650 = vpop.f32.mrb[0].mxu0
      %v651 = vpop.f32.mrb[0].mxu0
      %v652 = vadd.f32 %v260, %v651
      %v653 = vpop.f32.mrb[0].mxu0
      %654 = vmatprep.mubr.bf16.mxu0 0
      %655 = vmatmul.mubr.bf16.gmra.mrb[0].mxu0 %v405
      %v656 = vpop.f32.mrb[0].mxu0
      %v657 = vadd.f32 %v260, %v656
      %v658 = vpop.f32.mrb[0].mxu0
      %v659 = vpop.f32.mrb[0].mxu0
      %v660 = vadd.f32 %v260, %v659
      %v661 = vpop.f32.mrb[0].mxu0
      %662 = vmatprep.mubr.bf16.mxu0 0
      %663 = vmatmul.mubr.bf16.gmra.mrb[0].mxu0 %v406
      %v664 = vpop.f32.mrb[0].mxu0
      %v665 = vadd.f32 %v260, %v664
      %v666 = vpop.f32.mrb[0].mxu0
      %v667 = vpop.f32.mrb[0].mxu0
      %v668 = vadd.f32 %v260, %v667
      %v669 = vpop.f32.mrb[0].mxu0
      %670 = vmatprep.mubr.bf16.mxu0 0
      %671 = vmatmul.mubr.bf16.gmra.mrb[0].mxu0 %v407
      %v672 = vpop.f32.mrb[0].mxu0
      %v673 = vadd.f32 %v260, %v672
      %v674 = vpop.f32.mrb[0].mxu0
      %v675 = vpop.f32.mrb[0].mxu0
      %v676 = vadd.f32 %v260, %v675
      %v677 = vpop.f32.mrb[0].mxu0
      %678 = vmatprep.mubr.bf16.mxu0 0
      %679 = vmatmul.mubr.bf16.gmra.mrb[0].mxu0 %v408
      %v680 = vpop.f32.mrb[0].mxu0
      %v681 = vadd.f32 %v260, %v680
      %v682 = vpop.f32.mrb[0].mxu0
      %v683 = vpop.f32.mrb[0].mxu0
      %v684 = vadd.f32 %v260, %v683
      %v685 = vpop.f32.mrb[0].mxu0
      %686 = vmatprep.mubr.bf16.mxu0 0
      %687 = vmatmul.mubr.bf16.gmra.mrb[0].mxu0 %v409
      %v688 = vpop.f32.mrb[0].mxu0
      %v689 = vadd.f32 %v260, %v688
      %v690 = vpop.f32.mrb[0].mxu0
      %v691 = vpop.f32.mrb[0].mxu0
      %v692 = vadd.f32 %v260, %v691
      %v693 = vpop.f32.mrb[0].mxu0
      %694 = vmatprep.mubr.bf16.mxu0 0
      %695 = vmatmul.mubr.bf16.gmra.mrb[0].mxu0 %v410
      %v696 = vpop.f32.mrb[0].mxu0
      %v697 = vadd.f32 %v260, %v696
      %v698 = vpop.f32.mrb[0].mxu0
      %v699 = vpop.f32.mrb[0].mxu0
      %v700 = vadd.f32 %v260, %v699
      %v701 = vpop.f32.mrb[0].mxu0
      %702 = vmatprep.mubr.bf16.mxu0 0
      %703 = vmatmul.mubr.bf16.gmra.mrb[0].mxu0 %v411
      %v704 = vpop.f32.mrb[0].mxu0
      %v705 = vadd.f32 %v260, %v704
      %v706 = vpop.f32.mrb[0].mxu0
      %v707 = vpop.f32.mrb[0].mxu0
      %v708 = vadd.f32 %v260, %v707
      %v709 = vpop.f32.mrb[0].mxu0
      %710 = vmatprep.mubr.bf16.mxu0 0
      %711 = vmatmul.mubr.bf16.gmra.mrb[0].mxu0 %v412
      %v712 = vpop.f32.mrb[0].mxu0
      %v713 = vadd.f32 %v260, %v712
      %v714 = vpop.f32.mrb[0].mxu0
      %v715 = vpop.f32.mrb[0].mxu0
      %v716 = vadd.f32 %v260, %v715
      %v717 = vpop.f32.mrb[0].mxu0
      %718 = vmatprep.mubr.bf16.mxu0 0
      %719 = vmatmul.mubr.bf16.gmra.mrb[0].mxu0 %v413
      %v720 = vpop.f32.mrb[0].mxu0
      %v721 = vadd.f32 %v260, %v720
      %v722 = vpop.f32.mrb[0].mxu0
      %v723 = vpop.f32.mrb[0].mxu0
      %v724 = vadd.f32 %v260, %v723
      %v725 = vpop.f32.mrb[0].mxu0
      %726 = vmatprep.mubr.bf16.mxu0 0
      %727 = vmatmul.mubr.bf16.gmra.mrb[0].mxu0 %v414
      %v728 = vpop.f32.mrb[0].mxu0
      %v729 = vadd.f32 %v260, %v728
      %v730 = vpop.f32.mrb[0].mxu0
      %v731 = vpop.f32.mrb[0].mxu0
      %v732 = vadd.f32 %v260, %v731
      %v733 = vpop.f32.mrb[0].mxu0
      %734 = vmatprep.mubr.bf16.mxu0 0
      %735 = vmatmul.mubr.bf16.gmra.mrb[0].mxu0 %v415
      %v736 = vpop.f32.mrb[0].mxu0
      %v737 = vadd.f32 %v260, %v736
      %v738 = vpop.f32.mrb[0].mxu0
      %v739 = vpop.f32.mrb[0].mxu0
      %v740 = vadd.f32 %v260, %v739
      %v741 = vpop.f32.mrb[0].mxu0
      %742 = vmatprep.mubr.bf16.mxu0 0
      %743 = vmatmul.mubr.bf16.gmra.mrb[0].mxu0 %v416
      %v744 = vpop.f32.mrb[0].mxu0
      %v745 = vadd.f32 %v260, %v744
      %v746 = vpop.f32.mrb[0].mxu0
      %v747 = vpop.f32.mrb[0].mxu0
      %v748 = vadd.f32 %v260, %v747
      %v749 = vpop.f32.mrb[0].mxu0
      %750 = vmatprep.mubr.bf16.mxu0 0
      %751 = vmatmul.mubr.bf16.gmra.mrb[0].mxu0 %v417
      %v752 = vpop.f32.mrb[0].mxu0
      %v753 = vadd.f32 %v260, %v752
      %v754 = vpop.f32.mrb[0].mxu0
      %v755 = vpop.f32.mrb[0].mxu0
      %v756 = vadd.f32 %v260, %v755
      %v757 = vpop.f32.mrb[0].mxu0
      %758 = vmatprep.mubr.bf16.mxu0 0
      %759 = vmatmul.mubr.bf16.gmra.mrb[0].mxu0 %v418
      %v760 = vpop.f32.mrb[0].mxu0
      %v761 = vadd.f32 %v260, %v760
      %v762 = vpop.f32.mrb[0].mxu0
      %v763 = vpop.f32.mrb[0].mxu0
      %v764 = vadd.f32 %v260, %v763
      %v765 = vpop.f32.mrb[0].mxu0
      %766 = vmatprep.mubr.bf16.mxu0 0
      %767 = vmatmul.mubr.bf16.gmra.mrb[0].mxu0 %v419
      %v768 = vpop.f32.mrb[0].mxu0
      %v769 = vadd.f32 %v260, %v768
      %v770 = vpop.f32.mrb[0].mxu0
      %v771 = vpop.f32.mrb[0].mxu0
      %v772 = vadd.f32 %v260, %v771
      %v773 = vpop.f32.mrb[0].mxu0
      %774 = vmatprep.mubr.bf16.mxu0 0
      %775 = vmatmul.mubr.bf16.gmra.mrb[0].mxu0 %v420
      %v776 = vpop.f32.mrb[0].mxu0
      %v777 = vadd.f32 %v260, %v776
      %v778 = vpop.f32.mrb[0].mxu0
      %v779 = vpop.f32.mrb[0].mxu0
      %v780 = vadd.f32 %v260, %v779
      %v781 = vpop.f32.mrb[0].mxu0
      %782 = vmatprep.mubr.bf16.mxu0 0
      %783 = vmatmul.mubr.bf16.gmra.mrb[0].mxu0 %v421
      %v784 = vpop.f32.mrb[0].mxu0
      %v785 = vadd.f32 %v260, %v784
      %v786 = vpop.f32.mrb[0].mxu0
      %v787 = vpop.f32.mrb[0].mxu0
      %v788 = vadd.f32 %v260, %v787
      %v789 = vpop.f32.mrb[0].mxu0
      %790 = vdwg.mxu0
      %vm791 = vcmp.ge.f32.partialorder %v537, 0.0
      %vm792 = vcmp.ge.f32.partialorder %v540, 0.0
      %vm793 = vcmp.ge.f32.partialorder %v545, 0.0
      %vm794 = vcmp.ge.f32.partialorder %v548, 0.0
      %vm795 = vcmp.ge.f32.partialorder %v553, 0.0
      %vm796 = vcmp.ge.f32.partialorder %v556, 0.0
      %vm797 = vcmp.ge.f32.partialorder %v561, 0.0
      %vm798 = vcmp.ge.f32.partialorder %v564, 0.0
      %vm799 = vcmp.ge.f32.partialorder %v569, 0.0
      %vm800 = vcmp.ge.f32.partialorder %v572, 0.0
      %vm801 = vcmp.ge.f32.partialorder %v577, 0.0
      %vm802 = vcmp.ge.f32.partialorder %v580, 0.0
      %vm803 = vcmp.ge.f32.partialorder %v585, 0.0
      %vm804 = vcmp.ge.f32.partialorder %v588, 0.0
      %vm805 = vcmp.ge.f32.partialorder %v593, 0.0
      %vm806 = vcmp.ge.f32.partialorder %v596, 0.0
      %vm807 = vcmp.ge.f32.partialorder %v601, 0.0
      %vm808 = vcmp.ge.f32.partialorder %v604, 0.0
      %vm809 = vcmp.ge.f32.partialorder %v609, 0.0
      %vm810 = vcmp.ge.f32.partialorder %v612, 0.0
      %vm811 = vcmp.ge.f32.partialorder %v617, 0.0
      %vm812 = vcmp.ge.f32.partialorder %v620, 0.0
      %vm813 = vcmp.ge.f32.partialorder %v625, 0.0
      %vm814 = vcmp.ge.f32.partialorder %v628, 0.0
      %vm815 = vcmp.ge.f32.partialorder %v633, 0.0
      %vm816 = vcmp.ge.f32.partialorder %v636, 0.0
      %vm817 = vcmp.ge.f32.partialorder %v641, 0.0
      %vm818 = vcmp.ge.f32.partialorder %v644, 0.0
      %vm819 = vcmp.ge.f32.partialorder %v649, 0.0
      %vm820 = vcmp.ge.f32.partialorder %v652, 0.0
      %vm821 = vcmp.ge.f32.partialorder %v657, 0.0
      %vm822 = vcmp.ge.f32.partialorder %v660, 0.0
      %vm823 = vcmp.ge.f32.partialorder %v665, 0.0
      %vm824 = vcmp.ge.f32.partialorder %v668, 0.0
      %vm825 = vcmp.ge.f32.partialorder %v673, 0.0
      %vm826 = vcmp.ge.f32.partialorder %v676, 0.0
      %vm827 = vcmp.ge.f32.partialorder %v681, 0.0
      %vm828 = vcmp.ge.f32.partialorder %v684, 0.0
      %vm829 = vcmp.ge.f32.partialorder %v689, 0.0
      %vm830 = vcmp.ge.f32.partialorder %v692, 0.0
      %vm831 = vcmp.ge.f32.partialorder %v697, 0.0
      %vm832 = vcmp.ge.f32.partialorder %v700, 0.0
      %vm833 = vcmp.ge.f32.partialorder %v705, 0.0
      %vm834 = vcmp.ge.f32.partialorder %v708, 0.0
      %vm835 = vcmp.ge.f32.partialorder %v713, 0.0
      %vm836 = vcmp.ge.f32.partialorder %v716, 0.0
      %vm837 = vcmp.ge.f32.partialorder %v721, 0.0
      %vm838 = vcmp.ge.f32.partialorder %v724, 0.0
      %vm839 = vcmp.ge.f32.partialorder %v729, 0.0
      %vm840 = vcmp.ge.f32.partialorder %v732, 0.0
      %vm841 = vcmp.ge.f32.partialorder %v737, 0.0
      %vm842 = vcmp.ge.f32.partialorder %v740, 0.0
      %vm843 = vcmp.ge.f32.partialorder %v745, 0.0
      %vm844 = vcmp.ge.f32.partialorder %v748, 0.0
      %vm845 = vcmp.ge.f32.partialorder %v753, 0.0
      %vm846 = vcmp.ge.f32.partialorder %v756, 0.0
      %vm847 = vcmp.ge.f32.partialorder %v761, 0.0
      %vm848 = vcmp.ge.f32.partialorder %v764, 0.0
      %vm849 = vcmp.ge.f32.partialorder %v769, 0.0
      %vm850 = vcmp.ge.f32.partialorder %v772, 0.0
      %vm851 = vcmp.ge.f32.partialorder %v777, 0.0
      %vm852 = vcmp.ge.f32.partialorder %v780, 0.0
      %vm853 = vcmp.ge.f32.partialorder %v785, 0.0
      %vm854 = vcmp.ge.f32.partialorder %v788, 0.0
      %v855 = vmul.f32 %v537, 0.2
      %v856 = vmul.f32 %v540, 0.2
      %v857 = vmul.f32 %v545, 0.2
      %v858 = vmul.f32 %v548, 0.2
      %v859 = vmul.f32 %v553, 0.2
      %v860 = vmul.f32 %v556, 0.2
      %v861 = vmul.f32 %v561, 0.2
      %v862 = vmul.f32 %v564, 0.2
      %v863 = vmul.f32 %v569, 0.2
      %v864 = vmul.f32 %v572, 0.2
      %v865 = vmul.f32 %v577, 0.2
      %v866 = vmul.f32 %v580, 0.2
      %v867 = vmul.f32 %v585, 0.2
      %v868 = vmul.f32 %v588, 0.2
      %v869 = vmul.f32 %v593, 0.2
      %v870 = vmul.f32 %v596, 0.2
      %v871 = vmul.f32 %v601, 0.2
      %v872 = vmul.f32 %v604, 0.2
      %v873 = vmul.f32 %v609, 0.2
      %v874 = vmul.f32 %v612, 0.2
      %v875 = vmul.f32 %v617, 0.2
      %v876 = vmul.f32 %v620, 0.2
      %v877 = vmul.f32 %v625, 0.2
      %v878 = vmul.f32 %v628, 0.2
      %v879 = vmul.f32 %v633, 0.2
      %v880 = vmul.f32 %v636, 0.2
      %v881 = vmul.f32 %v641, 0.2
      %v882 = vmul.f32 %v644, 0.2
      %v883 = vmul.f32 %v649, 0.2
      %v884 = vmul.f32 %v652, 0.2
      %v885 = vmul.f32 %v657, 0.2
      %v886 = vmul.f32 %v660, 0.2
      %v887 = vmul.f32 %v665, 0.2
      %v888 = vmul.f32 %v668, 0.2
      %v889 = vmul.f32 %v673, 0.2
      %v890 = vmul.f32 %v676, 0.2
      %v891 = vmul.f32 %v681, 0.2
      %v892 = vmul.f32 %v684, 0.2
      %v893 = vmul.f32 %v689, 0.2
      %v894 = vmul.f32 %v692, 0.2
      %v895 = vmul.f32 %v697, 0.2
      %v896 = vmul.f32 %v700, 0.2
      %v897 = vmul.f32 %v705, 0.2
      %v898 = vmul.f32 %v708, 0.2
      %v899 = vmul.f32 %v713, 0.2
      %v900 = vmul.f32 %v716, 0.2
      %v901 = vmul.f32 %v721, 0.2
      %v902 = vmul.f32 %v724, 0.2
      %v903 = vmul.f32 %v729, 0.2
      %v904 = vmul.f32 %v732, 0.2
      %v905 = vmul.f32 %v737, 0.2
      %v906 = vmul.f32 %v740, 0.2
      %v907 = vmul.f32 %v745, 0.2
      %v908 = vmul.f32 %v748, 0.2
      %v909 = vmul.f32 %v753, 0.2
      %v910 = vmul.f32 %v756, 0.2
      %v911 = vmul.f32 %v761, 0.2
      %v912 = vmul.f32 %v764, 0.2
      %v913 = vmul.f32 %v769, 0.2
      %v914 = vmul.f32 %v772, 0.2
      %v915 = vmul.f32 %v777, 0.2
      %v916 = vmul.f32 %v780, 0.2
      %v917 = vmul.f32 %v785, 0.2
      %v918 = vmul.f32 %v788, 0.2
      %v919 = vsel %vm791, %v537, %v855
      %v920 = vsel %vm792, %v540, %v856
      %v921 = vsel %vm793, %v545, %v857
      %v922 = vsel %vm794, %v548, %v858
      %v923 = vsel %vm795, %v553, %v859
      %v924 = vsel %vm796, %v556, %v860
      %v925 = vsel %vm797, %v561, %v861
      %v926 = vsel %vm798, %v564, %v862
      %v927 = vsel %vm799, %v569, %v863
      %v928 = vsel %vm800, %v572, %v864
      %v929 = vsel %vm801, %v577, %v865
      %v930 = vsel %vm802, %v580, %v866
      %v931 = vsel %vm803, %v585, %v867
      %v932 = vsel %vm804, %v588, %v868
      %v933 = vsel %vm805, %v593, %v869
      %v934 = vsel %vm806, %v596, %v870
      %v935 = vsel %vm807, %v601, %v871
      %v936 = vsel %vm808, %v604, %v872
      %v937 = vsel %vm809, %v609, %v873
      %v938 = vsel %vm810, %v612, %v874
      %v939 = vsel %vm811, %v617, %v875
      %v940 = vsel %vm812, %v620, %v876
      %v941 = vsel %vm813, %v625, %v877
      %v942 = vsel %vm814, %v628, %v878
      %v943 = vsel %vm815, %v633, %v879
      %v944 = vsel %vm816, %v636, %v880
      %v945 = vsel %vm817, %v641, %v881
      %v946 = vsel %vm818, %v644, %v882
      %v947 = vsel %vm819, %v649, %v883
      %v948 = vsel %vm820, %v652, %v884
      %v949 = vsel %vm821, %v657, %v885
      %v950 = vsel %vm822, %v660, %v886
      %v951 = vsel %vm823, %v665, %v887
      %v952 = vsel %vm824, %v668, %v888
      %v953 = vsel %vm825, %v673, %v889
      %v954 = vsel %vm826, %v676, %v890
      %v955 = vsel %vm827, %v681, %v891
      %v956 = vsel %vm828, %v684, %v892
      %v957 = vsel %vm829, %v689, %v893
      %v958 = vsel %vm830, %v692, %v894
      %v959 = vsel %vm831, %v697, %v895
      %v960 = vsel %vm832, %v700, %v896
      %v961 = vsel %vm833, %v705, %v897
      %v962 = vsel %vm834, %v708, %v898
      %v963 = vsel %vm835, %v713, %v899
      %v964 = vsel %vm836, %v716, %v900
      %v965 = vsel %vm837, %v721, %v901
      %v966 = vsel %vm838, %v724, %v902
      %v967 = vsel %vm839, %v729, %v903
      %v968 = vsel %vm840, %v732, %v904
      %v969 = vsel %vm841, %v737, %v905
      %v970 = vsel %vm842, %v740, %v906
      %v971 = vsel %vm843, %v745, %v907
      %v972 = vsel %vm844, %v748, %v908
      %v973 = vsel %vm845, %v753, %v909
      %v974 = vsel %vm846, %v756, %v910
      %v975 = vsel %vm847, %v761, %v911
      %v976 = vsel %vm848, %v764, %v912
      %v977 = vsel %vm849, %v769, %v913
      %v978 = vsel %vm850, %v772, %v914
      %v979 = vsel %vm851, %v777, %v915
      %v980 = vsel %vm852, %v780, %v916
      %v981 = vsel %vm853, %v785, %v917
      %v982 = vsel %vm854, %v788, %v918
      %v983 = vpack.c.bf16 %v920, %v919
      %v984 = vpack.c.bf16 %v922, %v921
      %v985 = vpack.c.bf16 %v924, %v923
      %v986 = vpack.c.bf16 %v926, %v925
      %v987 = vpack.c.bf16 %v928, %v927
      %v988 = vpack.c.bf16 %v930, %v929
      %v989 = vpack.c.bf16 %v932, %v931
      %v990 = vpack.c.bf16 %v934, %v933
      %v991 = vpack.c.bf16 %v936, %v935
      %v992 = vpack.c.bf16 %v938, %v937
      %v993 = vpack.c.bf16 %v940, %v939
      %v994 = vpack.c.bf16 %v942, %v941
      %v995 = vpack.c.bf16 %v944, %v943
      %v996 = vpack.c.bf16 %v946, %v945
      %v997 = vpack.c.bf16 %v948, %v947
      %v998 = vpack.c.bf16 %v950, %v949
      %v999 = vpack.c.bf16 %v952, %v951
      %v1000 = vpack.c.bf16 %v954, %v953
      %v1001 = vpack.c.bf16 %v956, %v955
      %v1002 = vpack.c.bf16 %v958, %v957
      %v1003 = vpack.c.bf16 %v960, %v959
      %v1004 = vpack.c.bf16 %v962, %v961
      %v1005 = vpack.c.bf16 %v964, %v963
      %v1006 = vpack.c.bf16 %v966, %v965
      %v1007 = vpack.c.bf16 %v968, %v967
      %v1008 = vpack.c.bf16 %v970, %v969
      %v1009 = vpack.c.bf16 %v972, %v971
      %v1010 = vpack.c.bf16 %v974, %v973
      %v1011 = vpack.c.bf16 %v976, %v975
      %v1012 = vpack.c.bf16 %v978, %v977
      %v1013 = vpack.c.bf16 %v980, %v979
      %v1014 = vpack.c.bf16 %v982, %v981
      %v1047 = vunpack.c.l.b16 %v983
      %v1048 = vunpack.c.h.b16 %v983
      %v1049 = vunpack.c.l.b16 %v984
      %v1050 = vunpack.c.h.b16 %v984
      %v1051 = vunpack.c.l.b16 %v985
      %v1052 = vunpack.c.h.b16 %v985
      %v1053 = vunpack.c.l.b16 %v986
      %v1054 = vunpack.c.h.b16 %v986
      %v1055 = vunpack.c.l.b16 %v987
      %v1056 = vunpack.c.h.b16 %v987
      %v1057 = vunpack.c.l.b16 %v988
      %v1058 = vunpack.c.h.b16 %v988
      %v1059 = vunpack.c.l.b16 %v989
      %v1060 = vunpack.c.h.b16 %v989
      %v1061 = vunpack.c.l.b16 %v990
      %v1062 = vunpack.c.h.b16 %v990
      %v1063 = vunpack.c.l.b16 %v991
      %v1064 = vunpack.c.h.b16 %v991
      %v1065 = vunpack.c.l.b16 %v992
      %v1066 = vunpack.c.h.b16 %v992
      %v1067 = vunpack.c.l.b16 %v993
      %v1068 = vunpack.c.h.b16 %v993
      %v1069 = vunpack.c.l.b16 %v994
      %v1070 = vunpack.c.h.b16 %v994
      %v1071 = vunpack.c.l.b16 %v995
      %v1072 = vunpack.c.h.b16 %v995
      %v1073 = vunpack.c.l.b16 %v996
      %v1074 = vunpack.c.h.b16 %v996
      %v1075 = vunpack.c.l.b16 %v997
      %v1076 = vunpack.c.h.b16 %v997
      %v1077 = vunpack.c.l.b16 %v998
      %v1078 = vunpack.c.h.b16 %v998
      %v1079 = vunpack.c.l.b16 %v999
      %v1080 = vunpack.c.h.b16 %v999
      %v1081 = vunpack.c.l.b16 %v1000
      %v1082 = vunpack.c.h.b16 %v1000
      %v1083 = vunpack.c.l.b16 %v1001
      %v1084 = vunpack.c.h.b16 %v1001
      %v1085 = vunpack.c.l.b16 %v1002
      %v1086 = vunpack.c.h.b16 %v1002
      %v1087 = vunpack.c.l.b16 %v1003
      %v1088 = vunpack.c.h.b16 %v1003
      %v1089 = vunpack.c.l.b16 %v1004
      %v1090 = vunpack.c.h.b16 %v1004
      %v1091 = vunpack.c.l.b16 %v1005
      %v1092 = vunpack.c.h.b16 %v1005
      %v1093 = vunpack.c.l.b16 %v1006
      %v1094 = vunpack.c.h.b16 %v1006
      %v1095 = vunpack.c.l.b16 %v1007
      %v1096 = vunpack.c.h.b16 %v1007
      %v1097 = vunpack.c.l.b16 %v1008
      %v1098 = vunpack.c.h.b16 %v1008
      %v1099 = vunpack.c.l.b16 %v1009
      %v1100 = vunpack.c.h.b16 %v1009
      %v1101 = vunpack.c.l.b16 %v1010
      %v1102 = vunpack.c.h.b16 %v1010
      %v1103 = vunpack.c.l.b16 %v1011
      %v1104 = vunpack.c.h.b16 %v1011
      %v1105 = vunpack.c.l.b16 %v1012
      %v1106 = vunpack.c.h.b16 %v1012
      %v1107 = vunpack.c.l.b16 %v1013
      %v1108 = vunpack.c.h.b16 %v1013
      %v1109 = vunpack.c.l.b16 %v1014
      %v1110 = vunpack.c.h.b16 %v1014
      %v1111 = vpack.c.b16 %v1047, %v1047
      %v1112 = vpack.c.b16 %v1048, %v1048
      %v1113 = vpack.c.b16 %v1049, %v1049
      %v1114 = vpack.c.b16 %v1050, %v1050
      %v1115 = vpack.c.b16 %v1051, %v1051
      %v1116 = vpack.c.b16 %v1052, %v1052
      %v1117 = vpack.c.b16 %v1053, %v1053
      %v1118 = vpack.c.b16 %v1054, %v1054
      %v1119 = vpack.c.b16 %v1055, %v1055
      %v1120 = vpack.c.b16 %v1056, %v1056
      %v1121 = vpack.c.b16 %v1057, %v1057
      %v1122 = vpack.c.b16 %v1058, %v1058
      %v1123 = vpack.c.b16 %v1059, %v1059
      %v1124 = vpack.c.b16 %v1060, %v1060
      %v1125 = vpack.c.b16 %v1061, %v1061
      %v1126 = vpack.c.b16 %v1062, %v1062
      %v1127 = vpack.c.b16 %v1063, %v1063
      %v1128 = vpack.c.b16 %v1064, %v1064
      %v1129 = vpack.c.b16 %v1065, %v1065
      %v1130 = vpack.c.b16 %v1066, %v1066
      %v1131 = vpack.c.b16 %v1067, %v1067
      %v1132 = vpack.c.b16 %v1068, %v1068
      %v1133 = vpack.c.b16 %v1069, %v1069
      %v1134 = vpack.c.b16 %v1070, %v1070
      %v1135 = vpack.c.b16 %v1071, %v1071
      %v1136 = vpack.c.b16 %v1072, %v1072
      %v1137 = vpack.c.b16 %v1073, %v1073
      %v1138 = vpack.c.b16 %v1074, %v1074
      %v1139 = vpack.c.b16 %v1075, %v1075
      %v1140 = vpack.c.b16 %v1076, %v1076
      %v1141 = vpack.c.b16 %v1077, %v1077
      %v1142 = vpack.c.b16 %v1078, %v1078
      %v1143 = vpack.c.b16 %v1079, %v1079
      %v1144 = vpack.c.b16 %v1080, %v1080
      %v1145 = vpack.c.b16 %v1081, %v1081
      %v1146 = vpack.c.b16 %v1082, %v1082
      %v1147 = vpack.c.b16 %v1083, %v1083
      %v1148 = vpack.c.b16 %v1084, %v1084
      %v1149 = vpack.c.b16 %v1085, %v1085
      %v1150 = vpack.c.b16 %v1086, %v1086
      %v1151 = vpack.c.b16 %v1087, %v1087
      %v1152 = vpack.c.b16 %v1088, %v1088
      %v1153 = vpack.c.b16 %v1089, %v1089
      %v1154 = vpack.c.b16 %v1090, %v1090
      %v1155 = vpack.c.b16 %v1091, %v1091
      %v1156 = vpack.c.b16 %v1092, %v1092
      %v1157 = vpack.c.b16 %v1093, %v1093
      %v1158 = vpack.c.b16 %v1094, %v1094
      %v1159 = vpack.c.b16 %v1095, %v1095
      %v1160 = vpack.c.b16 %v1096, %v1096
      %v1161 = vpack.c.b16 %v1097, %v1097
      %v1162 = vpack.c.b16 %v1098, %v1098
      %v1163 = vpack.c.b16 %v1099, %v1099
      %v1164 = vpack.c.b16 %v1100, %v1100
      %v1165 = vpack.c.b16 %v1101, %v1101
      %v1166 = vpack.c.b16 %v1102, %v1102
      %v1167 = vpack.c.b16 %v1103, %v1103
      %v1168 = vpack.c.b16 %v1104, %v1104
      %v1169 = vpack.c.b16 %v1105, %v1105
      %v1170 = vpack.c.b16 %v1106, %v1106
      %v1171 = vpack.c.b16 %v1107, %v1107
      %v1172 = vpack.c.b16 %v1108, %v1108
      %v1173 = vpack.c.b16 %v1109, %v1109
      %v1174 = vpack.c.b16 %v1110, %v1110
      %1239 = vst [vmem:[%s172] sm:$0xf] %v1111
      %1240 = vst [vmem:[%s172 + $0x4] sm:$0xf] %v1112
      %1241 = vst [vmem:[%s172 + $0x8] sm:$0xf] %v1113
      %1242 = vst [vmem:[%s172 + $0xc] sm:$0xf] %v1114
      %1243 = vst [vmem:[%s172 + $0x10] sm:$0xf] %v1115
      %1244 = vst [vmem:[%s172 + $0x14] sm:$0xf] %v1116
      %1245 = vst [vmem:[%s172 + $0x18] sm:$0xf] %v1117
      %1246 = vst [vmem:[%s172 + $0x1c] sm:$0xf] %v1118
      %1247 = vst [vmem:[%s172 + $0x20] sm:$0xf] %v1119
      %1248 = vst [vmem:[%s172 + $0x24] sm:$0xf] %v1120
      %1249 = vst [vmem:[%s172 + $0x28] sm:$0xf] %v1121
      %1250 = vst [vmem:[%s172 + $0x2c] sm:$0xf] %v1122
      %1251 = vst [vmem:[%s172 + $0x30] sm:$0xf] %v1123
      %1252 = vst [vmem:[%s172 + $0x34] sm:$0xf] %v1124
      %1253 = vst [vmem:[%s172 + $0x38] sm:$0xf] %v1125
      %1254 = vst [vmem:[%s172 + $0x3c] sm:$0xf] %v1126
      %1255 = vst [vmem:[%s172 + $0x40] sm:$0xf] %v1127
      %1256 = vst [vmem:[%s172 + $0x44] sm:$0xf] %v1128
      %1257 = vst [vmem:[%s172 + $0x48] sm:$0xf] %v1129
      %1258 = vst [vmem:[%s172 + $0x4c] sm:$0xf] %v1130
      %1259 = vst [vmem:[%s172 + $0x50] sm:$0xf] %v1131
      %1260 = vst [vmem:[%s172 + $0x54] sm:$0xf] %v1132
      %1261 = vst [vmem:[%s172 + $0x58] sm:$0xf] %v1133
      %1262 = vst [vmem:[%s172 + $0x5c] sm:$0xf] %v1134
      %1263 = vst [vmem:[%s172 + $0x60] sm:$0xf] %v1135
      %1264 = vst [vmem:[%s172 + $0x64] sm:$0xf] %v1136
      %1265 = vst [vmem:[%s172 + $0x68] sm:$0xf] %v1137
      %1266 = vst [vmem:[%s172 + $0x6c] sm:$0xf] %v1138
      %1267 = vst [vmem:[%s172 + $0x70] sm:$0xf] %v1139
      %1268 = vst [vmem:[%s172 + $0x74] sm:$0xf] %v1140
      %1269 = vst [vmem:[%s172 + $0x78] sm:$0xf] %v1141
      %1270 = vst [vmem:[%s172 + $0x7c] sm:$0xf] %v1142
      %1271 = vst [vmem:[%s172 + $0x80] sm:$0xf] %v1143
      %1272 = vst [vmem:[%s172 + $0x84] sm:$0xf] %v1144
      %1273 = vst [vmem:[%s172 + $0x88] sm:$0xf] %v1145
      %1274 = vst [vmem:[%s172 + $0x8c] sm:$0xf] %v1146
      %1275 = vst [vmem:[%s172 + $0x90] sm:$0xf] %v1147
      %1276 = vst [vmem:[%s172 + $0x94] sm:$0xf] %v1148
      %1277 = vst [vmem:[%s172 + $0x98] sm:$0xf] %v1149
      %1278 = vst [vmem:[%s172 + $0x9c] sm:$0xf] %v1150
      %1279 = vst [vmem:[%s172 + $0xa0] sm:$0xf] %v1151
      %1280 = vst [vmem:[%s172 + $0xa4] sm:$0xf] %v1152
      %1281 = vst [vmem:[%s172 + $0xa8] sm:$0xf] %v1153
      %1282 = vst [vmem:[%s172 + $0xac] sm:$0xf] %v1154
      %1283 = vst [vmem:[%s172 + $0xb0] sm:$0xf] %v1155
      %1284 = vst [vmem:[%s172 + $0xb4] sm:$0xf] %v1156
      %1285 = vst [vmem:[%s172 + $0xb8] sm:$0xf] %v1157
      %1286 = vst [vmem:[%s172 + $0xbc] sm:$0xf] %v1158
      %1287 = vst [vmem:[%s172 + $0xc0] sm:$0xf] %v1159
      %1288 = vst [vmem:[%s172 + $0xc4] sm:$0xf] %v1160
      %1289 = vst [vmem:[%s172 + $0xc8] sm:$0xf] %v1161
      %1290 = vst [vmem:[%s172 + $0xcc] sm:$0xf] %v1162
      %1291 = vst [vmem:[%s172 + $0xd0] sm:$0xf] %v1163
      %1292 = vst [vmem:[%s172 + $0xd4] sm:$0xf] %v1164
      %1293 = vst [vmem:[%s172 + $0xd8] sm:$0xf] %v1165
      %1294 = vst [vmem:[%s172 + $0xdc] sm:$0xf] %v1166
      %1295 = vst [vmem:[%s172 + $0xe0] sm:$0xf] %v1167
      %1296 = vst [vmem:[%s172 + $0xe4] sm:$0xf] %v1168
      %1297 = vst [vmem:[%s172 + $0xe8] sm:$0xf] %v1169
      %1298 = vst [vmem:[%s172 + $0xec] sm:$0xf] %v1170
      %1299 = vst [vmem:[%s172 + $0xf0] sm:$0xf] %v1171
      %1300 = vst [vmem:[%s172 + $0xf4] sm:$0xf] %v1172
      %1301 = vst [vmem:[%s172 + $0xf8] sm:$0xf] %v1173
      %1302 = vst [vmem:[%s172 + $0xfc] sm:$0xf] %v1174
      %s1303 = smul.u32 64, %s14
      %p1304 = scmp.lt.s32.totalorder %s1303, 255
      %s1305 = scalar_select %p1304, %s1303, 255
      %s1306 = smul.addr %s1305, 4
      %s1307 = scalar_lea.vmem %s3, %s1306
      // Predicated region
      $region33: #{discriminator_forward.8} parent=31 // pred_check
        %p1308 = pneg %p100
      $region34: #{discriminator_forward.8} parent=31 // pred_check_branch
        %1310 = sbr.rel (%p1308) target = $region36
      $region35: #{discriminator_forward.8} parent=31 // pred_region
        %s1311 = smul.u32 64, %s14
      $region36: #{discriminator_forward.8} parent=31 // pred_fallthru
        _
    $region32: #{discriminator_forward.8} parent=5 // pred_fallthru
      _
    %p1312 = scmp.le.s32.totalorder 2, %s9
    // Predicated region
    $region37: #{discriminator_forward.8} parent=5 // pred_check
      %p1313 = pneg %p1312
    $region38: #{discriminator_forward.8} parent=5 // pred_check_branch
      %1315 = sbr.rel (%p1313) target = $region40
    $region39: #{discriminator_forward.8} parent=5 // pred_region
      %s1316 = ssub.s32 %s9, 2
      // Predicated region
      $region41: #{discriminator_forward.8} parent=39 // pred_check
        %p1317 = pneg %p106
      $region42: #{discriminator_forward.8} parent=39 // pred_check_branch
        %1319 = sbr.rel (%p1317) target = $region44
      $region43: #{discriminator_forward.8} parent=39 // pred_region
        %s1320 = smul.u32 64, %s15
        %p1321 = scmp.lt.s32.totalorder %s1320, 255
        %s1322 = scalar_select %p1321, %s1320, 255
        %s1323 = smul.addr %s1322, 4
        %s1324 = scalar_lea.vmem %s3, %s1323
      $region44: #{discriminator_forward.8} parent=39 // pred_fallthru
        _
    $region40: #{discriminator_forward.8} parent=5 // pred_fallthru
      _
  $region6: #{discriminator_forward.8} parent=0 // loop_footer
    %s13 = sadd.s32 1, %s9
  $region7: #{discriminator_forward.8} parent=0 // loop_footer_branch
    %8 = sbr.rel target = $region3
  $region8: #{discriminator_forward.8} parent=0 // loop_exit
    _

// kernel: discriminator_forward.10
$region0: #{discriminator_forward.10}
  #allocation0 [shape = 'u32[]', space=smem, size = 0x4, offset = 0x4, fixed_abs, tag = 'smem constant byte address 0x4 - core index']
  #allocation1 [shape = 'u32[144,128]{1,0:T(1,128)}', space=vmem, size = 0x12000, scoped, tag = 'internal scratch']
  %s0 = inlined_call_operand.vmem [shape: bf16[512,128], index: 0, kind: input, shape index: {}, may-alias: {0,4}]
  %s1 = inlined_call_operand.vmem [shape: f32[8,128], index: 1, kind: input, shape index: {}]
  %s2 = inlined_call_operand.vmem [shape: f32[1,128], index: 2, kind: input, shape index: {}]
  %s3 = inlined_call_operand.vmem [shape: f32[1,128], index: 3, kind: input, shape index: {}]
  %s4 = inlined_call_operand.vmem [shape: bf16[512,128], index: 4, kind: output, shape index: {}, may-alias: {0,4}]
  %s5 = sld [smem:[#allocation0]]
  $region26: #{discriminator_forward.10} parent=0
    _
  %s7 = ssub.s32 1, %s5
  %s8 = scalar_select 0, %s7, %s5
  // Predicated region
  $region2: #{discriminator_forward.10} parent=0 // pred_check
    _
  $region3: #{discriminator_forward.10} parent=0 // pred_check_branch
    %10 = sbr.rel (0) target = $region5
  $region4: #{discriminator_forward.10} parent=0 // pred_region
    _
  $region5: #{discriminator_forward.10} parent=0 // pred_fallthru
    _
  // Predicated region
  $region6: #{discriminator_forward.10} parent=0 // pred_check
    _
  $region7: #{discriminator_forward.10} parent=0 // pred_check_branch
    %12 = sbr.rel (0) target = $region9
  $region8: #{discriminator_forward.10} parent=0 // pred_region
    _
  $region9: #{discriminator_forward.10} parent=0 // pred_fallthru
    _
  // Predicated region
  $region10: #{discriminator_forward.10} parent=0 // pred_check
    _
  $region11: #{discriminator_forward.10} parent=0 // pred_check_branch
    %14 = sbr.rel (0) target = $region13
  $region12: #{discriminator_forward.10} parent=0 // pred_region
    _
  $region13: #{discriminator_forward.10} parent=0 // pred_fallthru
    _
  // Predicated region
  $region14: #{discriminator_forward.10} parent=0 // pred_check
    _
  $region15: #{discriminator_forward.10} parent=0 // pred_check_branch
    %16 = sbr.rel (0) target = $region17
  $region16: #{discriminator_forward.10} parent=0 // pred_region
    _
  $region17: #{discriminator_forward.10} parent=0 // pred_fallthru
    _
  %v17 = vld [vmem:[%s0] sm:$0xf]
  %v18 = vld [vmem:[%s0 + $0x4] sm:$0xf]
  %v19 = vld [vmem:[%s0 + $0x8] sm:$0xf]
  %v20 = vld [vmem:[%s0 + $0xc] sm:$0xf]
  %v21 = vld [vmem:[%s0 + $0x10] sm:$0xf]
  %v22 = vld [vmem:[%s0 + $0x14] sm:$0xf]
  %v23 = vld [vmem:[%s0 + $0x18] sm:$0xf]
  %v24 = vld [vmem:[%s0 + $0x1c] sm:$0xf]
  %v25 = vld [vmem:[%s0 + $0x20] sm:$0xf]
  %v26 = vld [vmem:[%s0 + $0x24] sm:$0xf]
  %v27 = vld [vmem:[%s0 + $0x28] sm:$0xf]
  %v28 = vld [vmem:[%s0 + $0x2c] sm:$0xf]
  %v29 = vld [vmem:[%s0 + $0x30] sm:$0xf]
  %v30 = vld [vmem:[%s0 + $0x34] sm:$0xf]
  %v31 = vld [vmem:[%s0 + $0x38] sm:$0xf]
  %v32 = vld [vmem:[%s0 + $0x3c] sm:$0xf]
  %v33 = vld [vmem:[%s0 + $0x40] sm:$0xf]
  %v34 = vld [vmem:[%s0 + $0x44] sm:$0xf]
  %v35 = vld [vmem:[%s0 + $0x48] sm:$0xf]
  %v36 = vld [vmem:[%s0 + $0x4c] sm:$0xf]
  %v37 = vld [vmem:[%s0 + $0x50] sm:$0xf]
  %v38 = vld [vmem:[%s0 + $0x54] sm:$0xf]
  %v39 = vld [vmem:[%s0 + $0x58] sm:$0xf]
  %v40 = vld [vmem:[%s0 + $0x5c] sm:$0xf]
  %v41 = vld [vmem:[%s0 + $0x60] sm:$0xf]
  %v42 = vld [vmem:[%s0 + $0x64] sm:$0xf]
  %v43 = vld [vmem:[%s0 + $0x68] sm:$0xf]
  %v44 = vld [vmem:[%s0 + $0x6c] sm:$0xf]
  %v45 = vld [vmem:[%s0 + $0x70] sm:$0xf]
  %v46 = vld [vmem:[%s0 + $0x74] sm:$0xf]
  %v47 = vld [vmem:[%s0 + $0x78] sm:$0xf]
  %v48 = vld [vmem:[%s0 + $0x7c] sm:$0xf]
  %v49 = vld [vmem:[%s0 + $0x80] sm:$0xf]
  %v50 = vld [vmem:[%s0 + $0x84] sm:$0xf]
  %v51 = vld [vmem:[%s0 + $0x88] sm:$0xf]
  %v52 = vld [vmem:[%s0 + $0x8c] sm:$0xf]
  %v53 = vld [vmem:[%s0 + $0x90] sm:$0xf]
  %v54 = vld [vmem:[%s0 + $0x94] sm:$0xf]
  %v55 = vld [vmem:[%s0 + $0x98] sm:$0xf]
  %v56 = vld [vmem:[%s0 + $0x9c] sm:$0xf]
  %v57 = vld [vmem:[%s0 + $0xa0] sm:$0xf]
  %v58 = vld [vmem:[%s0 + $0xa4] sm:$0xf]
  %v59 = vld [vmem:[%s0 + $0xa8] sm:$0xf]
  %v60 = vld [vmem:[%s0 + $0xac] sm:$0xf]
  %v61 = vld [vmem:[%s0 + $0xb0] sm:$0xf]
  %v62 = vld [vmem:[%s0 + $0xb4] sm:$0xf]
  %v63 = vld [vmem:[%s0 + $0xb8] sm:$0xf]
  %v64 = vld [vmem:[%s0 + $0xbc] sm:$0xf]
  %v65 = vld [vmem:[%s0 + $0xc0] sm:$0xf]
  %v66 = vld [vmem:[%s0 + $0xc4] sm:$0xf]
  %v67 = vld [vmem:[%s0 + $0xc8] sm:$0xf]
  %v68 = vld [vmem:[%s0 + $0xcc] sm:$0xf]
  %v69 = vld [vmem:[%s0 + $0xd0] sm:$0xf]
  %v70 = vld [vmem:[%s0 + $0xd4] sm:$0xf]
  %v71 = vld [vmem:[%s0 + $0xd8] sm:$0xf]
  %v72 = vld [vmem:[%s0 + $0xdc] sm:$0xf]
  %v73 = vld [vmem:[%s0 + $0xe0] sm:$0xf]
  %v74 = vld [vmem:[%s0 + $0xe4] sm:$0xf]
  %v75 = vld [vmem:[%s0 + $0xe8] sm:$0xf]
  %v76 = vld [vmem:[%s0 + $0xec] sm:$0xf]
  %v77 = vld [vmem:[%s0 + $0xf0] sm:$0xf]
  %v78 = vld [vmem:[%s0 + $0xf4] sm:$0xf]
  %v79 = vld [vmem:[%s0 + $0xf8] sm:$0xf]
  %v80 = vld [vmem:[%s0 + $0xfc] sm:$0xf]
  %v81 = vunpack.c.l.bf16 %v17
  %v82 = vunpack.c.l.bf16 %v18
  %v83 = vunpack.c.l.bf16 %v19
  %v84 = vunpack.c.l.bf16 %v20
  %v85 = vunpack.c.l.bf16 %v21
  %v86 = vunpack.c.l.bf16 %v22
  %v87 = vunpack.c.l.bf16 %v23
  %v88 = vunpack.c.l.bf16 %v24
  %v89 = vunpack.c.l.bf16 %v25
  %v90 = vunpack.c.l.bf16 %v26
  %v91 = vunpack.c.l.bf16 %v27
  %v92 = vunpack.c.l.bf16 %v28
  %v93 = vunpack.c.l.bf16 %v29
  %v94 = vunpack.c.l.bf16 %v30
  %v95 = vunpack.c.l.bf16 %v31
  %v96 = vunpack.c.l.bf16 %v32
  %v97 = vunpack.c.l.bf16 %v33
  %v98 = vunpack.c.l.bf16 %v34
  %v99 = vunpack.c.l.bf16 %v35
  %v100 = vunpack.c.l.bf16 %v36
  %v101 = vunpack.c.l.bf16 %v37
  %v102 = vunpack.c.l.bf16 %v38
  %v103 = vunpack.c.l.bf16 %v39
  %v104 = vunpack.c.l.bf16 %v40
  %v105 = vunpack.c.l.bf16 %v41
  %v106 = vunpack.c.l.bf16 %v42
  %v107 = vunpack.c.l.bf16 %v43
  %v108 = vunpack.c.l.bf16 %v44
  %v109 = vunpack.c.l.bf16 %v45
  %v110 = vunpack.c.l.bf16 %v46
  %v111 = vunpack.c.l.bf16 %v47
  %v112 = vunpack.c.l.bf16 %v48
  %v113 = vunpack.c.l.bf16 %v49
  %v114 = vunpack.c.l.bf16 %v50
  %v115 = vunpack.c.l.bf16 %v51
  %v116 = vunpack.c.l.bf16 %v52
  %v117 = vunpack.c.l.bf16 %v53
  %v118 = vunpack.c.l.bf16 %v54
  %v119 = vunpack.c.l.bf16 %v55
  %v120 = vunpack.c.l.bf16 %v56
  %v121 = vunpack.c.l.bf16 %v57
  %v122 = vunpack.c.l.bf16 %v58
  %v123 = vunpack.c.l.bf16 %v59
  %v124 = vunpack.c.l.bf16 %v60
  %v125 = vunpack.c.l.bf16 %v61
  %v126 = vunpack.c.l.bf16 %v62
  %v127 = vunpack.c.l.bf16 %v63
  %v128 = vunpack.c.l.bf16 %v64
  %v129 = vunpack.c.l.bf16 %v65
  %v130 = vunpack.c.l.bf16 %v66
  %v131 = vunpack.c.l.bf16 %v67
  %v132 = vunpack.c.l.bf16 %v68
  %v133 = vunpack.c.l.bf16 %v69
  %v134 = vunpack.c.l.bf16 %v70
  %v135 = vunpack.c.l.bf16 %v71
  %v136 = vunpack.c.l.bf16 %v72
  %v137 = vunpack.c.l.bf16 %v73
  %v138 = vunpack.c.l.bf16 %v74
  %v139 = vunpack.c.l.bf16 %v75
  %v140 = vunpack.c.l.bf16 %v76
  %v141 = vunpack.c.l.bf16 %v77
  %v142 = vunpack.c.l.bf16 %v78
  %v143 = vunpack.c.l.bf16 %v79
  %v144 = vunpack.c.l.bf16 %v80
  %v145 = vld [vmem:[%s1] sm:$0x1]
  %v146 = vmul.f32 %v145, 0.001953125
  %v147 = vld [vmem:[%s1 + $0x1] sm:$0x1]
  %v148 = vmul.f32 %v147, 0.001953125
  %v149 = vmul.f32 %v146, %v146
  %v150 = vsub.f32 %v148, %v149
  %v151 = vmax.f32 %v150, 0.0
  %v152 = vadd.f32 %v151, 1e-05
  %v153 = vrsqrt.pop %v152
  %v154 = vld [vmem:[%s2] sm:$0x1]
  %v155 = vmul.f32 %v153, %v154
  %v156 = vld [vmem:[%s3] sm:$0x1]
  %v157 = vmul.f32 %v146, %v155
  %v158 = vsub.f32 %v156, %v157
  %v159 = vlaneseq
  %v160 = vshrl.u32 %v159, 7
  %v161 = vsub.s32 0, %v160
  %v162 = vrot.slane %v155, %v161
  %v163 = vmul.f32 %v81, %v162
  %v164 = vmul.f32 %v82, %v162
  %v165 = vmul.f32 %v83, %v162
  %v166 = vmul.f32 %v84, %v162
  %v167 = vmul.f32 %v85, %v162
  %v168 = vmul.f32 %v86, %v162
  %v169 = vmul.f32 %v87, %v162
  %v170 = vmul.f32 %v88, %v162
  %v171 = vmul.f32 %v89, %v162
  %v172 = vmul.f32 %v90, %v162
  %v173 = vmul.f32 %v91, %v162
  %v174 = vmul.f32 %v92, %v162
  %v175 = vmul.f32 %v93, %v162
  %v176 = vmul.f32 %v94, %v162
  %v177 = vmul.f32 %v95, %v162
  %v178 = vmul.f32 %v96, %v162
  %v179 = vmul.f32 %v97, %v162
  %v180 = vmul.f32 %v98, %v162
  %v181 = vmul.f32 %v99, %v162
  %v182 = vmul.f32 %v100, %v162
  %v183 = vmul.f32 %v101, %v162
  %v184 = vmul.f32 %v102, %v162
  %v185 = vmul.f32 %v103, %v162
  %v186 = vmul.f32 %v104, %v162
  %v187 = vmul.f32 %v105, %v162
  %v188 = vmul.f32 %v106, %v162
  %v189 = vmul.f32 %v107, %v162
  %v190 = vmul.f32 %v108, %v162
  %v191 = vmul.f32 %v109, %v162
  %v192 = vmul.f32 %v110, %v162
  %v193 = vmul.f32 %v111, %v162
  %v194 = vmul.f32 %v112, %v162
  %v195 = vmul.f32 %v113, %v162
  %v196 = vmul.f32 %v114, %v162
  %v197 = vmul.f32 %v115, %v162
  %v198 = vmul.f32 %v116, %v162
  %v199 = vmul.f32 %v117, %v162
  %v200 = vmul.f32 %v118, %v162
  %v201 = vmul.f32 %v119, %v162
  %v202 = vmul.f32 %v120, %v162
  %v203 = vmul.f32 %v121, %v162
  %v204 = vmul.f32 %v122, %v162
  %v205 = vmul.f32 %v123, %v162
  %v206 = vmul.f32 %v124, %v162
  %v207 = vmul.f32 %v125, %v162
  %v208 = vmul.f32 %v126, %v162
  %v209 = vmul.f32 %v127, %v162
  %v210 = vmul.f32 %v128, %v162
  %v211 = vmul.f32 %v129, %v162
  %v212 = vmul.f32 %v130, %v162
  %v213 = vmul.f32 %v131, %v162
  %v214 = vmul.f32 %v132, %v162
  %v215 = vmul.f32 %v133, %v162
  %v216 = vmul.f32 %v134, %v162
  %v217 = vmul.f32 %v135, %v162
  %v218 = vmul.f32 %v136, %v162
  %v219 = vmul.f32 %v137, %v162
  %v220 = vmul.f32 %v138, %v162
  %v221 = vmul.f32 %v139, %v162
  %v222 = vmul.f32 %v140, %v162
  %v223 = vmul.f32 %v141, %v162
  %v224 = vmul.f32 %v142, %v162
  %v225 = vmul.f32 %v143, %v162
  %v226 = vmul.f32 %v144, %v162
  %v228 = vlaneseq
  %v229 = vshrl.u32 %v228, 7
  %v230 = vsub.s32 0, %v229
  %v231 = vrot.slane %v158, %v230
  %v233 = vadd.f32 %v163, %v231
  %v234 = vadd.f32 %v164, %v231
  %v235 = vadd.f32 %v165, %v231
  %v236 = vadd.f32 %v166, %v231
  %v237 = vadd.f32 %v167, %v231
  %v238 = vadd.f32 %v168, %v231
  %v239 = vadd.f32 %v169, %v231
  %v240 = vadd.f32 %v170, %v231
  %v241 = vadd.f32 %v171, %v231
  %v242 = vadd.f32 %v172, %v231
  %v243 = vadd.f32 %v173, %v231
  %v244 = vadd.f32 %v174, %v231
  %v245 = vadd.f32 %v175, %v231
  %v246 = vadd.f32 %v176, %v231
  %v247 = vadd.f32 %v177, %v231
  %v248 = vadd.f32 %v178, %v231
  %v249 = vadd.f32 %v179, %v231
  %v250 = vadd.f32 %v180, %v231
  %v251 = vadd.f32 %v181, %v231
  %v252 = vadd.f32 %v182, %v231
  %v253 = vadd.f32 %v183, %v231
  %v254 = vadd.f32 %v184, %v231
  %v255 = vadd.f32 %v185, %v231
  %v256 = vadd.f32 %v186, %v231
  %v257 = vadd.f32 %v187, %v231
  %v258 = vadd.f32 %v188, %v231
  %v259 = vadd.f32 %v189, %v231
  %v260 = vadd.f32 %v190, %v231
  %v261 = vadd.f32 %v191, %v231
  %v262 = vadd.f32 %v192, %v231
  %v263 = vadd.f32 %v193, %v231
  %v264 = vadd.f32 %v194, %v231
  %v265 = vadd.f32 %v195, %v231
  %v266 = vadd.f32 %v196, %v231
  %v267 = vadd.f32 %v197, %v231
  %v268 = vadd.f32 %v198, %v231
  %v269 = vadd.f32 %v199, %v231
  %v270 = vadd.f32 %v200, %v231
  %v271 = vadd.f32 %v201, %v231
  %v272 = vadd.f32 %v202, %v231
  %v273 = vadd.f32 %v203, %v231
  %v274 = vadd.f32 %v204, %v231
  %v275 = vadd.f32 %v205, %v231
  %v276 = vadd.f32 %v206, %v231
  %v277 = vadd.f32 %v207, %v231
  %v278 = vadd.f32 %v208, %v231
  %v279 = vadd.f32 %v209, %v231
  %v280 = vadd.f32 %v210, %v231
  %v281 = vadd.f32 %v211, %v231
  %v282 = vadd.f32 %v212, %v231
  %v283 = vadd.f32 %v213, %v231
  %v284 = vadd.f32 %v214, %v231
  %v285 = vadd.f32 %v215, %v231
  %v286 = vadd.f32 %v216, %v231
  %v287 = vadd.f32 %v217, %v231
  %v288 = vadd.f32 %v218, %v231
  %v289 = vadd.f32 %v219, %v231
  %v290 = vadd.f32 %v220, %v231
  %v291 = vadd.f32 %v221, %v231
  %v292 = vadd.f32 %v222, %v231
  %v293 = vadd.f32 %v223, %v231
  %v294 = vadd.f32 %v224, %v231
  %v295 = vadd.f32 %v225, %v231
  %v296 = vadd.f32 %v226, %v231
  %vm297 = vcmp.ge.f32.partialorder %v233, 0.0
  %vm298 = vcmp.ge.f32.partialorder %v234, 0.0
  %vm299 = vcmp.ge.f32.partialorder %v235, 0.0
  %vm300 = vcmp.ge.f32.partialorder %v236, 0.0
  %vm301 = vcmp.ge.f32.partialorder %v237, 0.0
  %vm302 = vcmp.ge.f32.partialorder %v238, 0.0
  %vm303 = vcmp.ge.f32.partialorder %v239, 0.0
  %vm304 = vcmp.ge.f32.partialorder %v240, 0.0
  %vm305 = vcmp.ge.f32.partialorder %v241, 0.0
  %vm306 = vcmp.ge.f32.partialorder %v242, 0.0
  %vm307 = vcmp.ge.f32.partialorder %v243, 0.0
  %vm308 = vcmp.ge.f32.partialorder %v244, 0.0
  %vm309 = vcmp.ge.f32.partialorder %v245, 0.0
  %vm310 = vcmp.ge.f32.partialorder %v246, 0.0
  %vm311 = vcmp.ge.f32.partialorder %v247, 0.0
  %vm312 = vcmp.ge.f32.partialorder %v248, 0.0
  %vm313 = vcmp.ge.f32.partialorder %v249, 0.0
  %vm314 = vcmp.ge.f32.partialorder %v250, 0.0
  %vm315 = vcmp.ge.f32.partialorder %v251, 0.0
  %vm316 = vcmp.ge.f32.partialorder %v252, 0.0
  %vm317 = vcmp.ge.f32.partialorder %v253, 0.0
  %vm318 = vcmp.ge.f32.partialorder %v254, 0.0
  %vm319 = vcmp.ge.f32.partialorder %v255, 0.0
  %vm320 = vcmp.ge.f32.partialorder %v256, 0.0
  %vm321 = vcmp.ge.f32.partialorder %v257, 0.0
  %vm322 = vcmp.ge.f32.partialorder %v258, 0.0
  %vm323 = vcmp.ge.f32.partialorder %v259, 0.0
  %vm324 = vcmp.ge.f32.partialorder %v260, 0.0
  %vm325 = vcmp.ge.f32.partialorder %v261, 0.0
  %vm326 = vcmp.ge.f32.partialorder %v262, 0.0
  %vm327 = vcmp.ge.f32.partialorder %v263, 0.0
  %vm328 = vcmp.ge.f32.partialorder %v264, 0.0
  %vm329 = vcmp.ge.f32.partialorder %v265, 0.0
  %vm330 = vcmp.ge.f32.partialorder %v266, 0.0
  %vm331 = vcmp.ge.f32.partialorder %v267, 0.0
  %vm332 = vcmp.ge.f32.partialorder %v268, 0.0
  %vm333 = vcmp.ge.f32.partialorder %v269, 0.0
  %vm334 = vcmp.ge.f32.partialorder %v270, 0.0
  %vm335 = vcmp.ge.f32.partialorder %v271, 0.0
  %vm336 = vcmp.ge.f32.partialorder %v272, 0.0
  %vm337 = vcmp.ge.f32.partialorder %v273, 0.0
  %vm338 = vcmp.ge.f32.partialorder %v274, 0.0
  %vm339 = vcmp.ge.f32.partialorder %v275, 0.0
  %vm340 = vcmp.ge.f32.partialorder %v276, 0.0
  %vm341 = vcmp.ge.f32.partialorder %v277, 0.0
  %vm342 = vcmp.ge.f32.partialorder %v278, 0.0
  %vm343 = vcmp.ge.f32.partialorder %v279, 0.0
  %vm344 = vcmp.ge.f32.partialorder %v280, 0.0
  %vm345 = vcmp.ge.f32.partialorder %v281, 0.0
  %vm346 = vcmp.ge.f32.partialorder %v282, 0.0
  %vm347 = vcmp.ge.f32.partialorder %v283, 0.0
  %vm348 = vcmp.ge.f32.partialorder %v284, 0.0
  %vm349 = vcmp.ge.f32.partialorder %v285, 0.0
  %vm350 = vcmp.ge.f32.partialorder %v286, 0.0
  %vm351 = vcmp.ge.f32.partialorder %v287, 0.0
  %vm352 = vcmp.ge.f32.partialorder %v288, 0.0
  %vm353 = vcmp.ge.f32.partialorder %v289, 0.0
  %vm354 = vcmp.ge.f32.partialorder %v290, 0.0
  %vm355 = vcmp.ge.f32.partialorder %v291, 0.0
  %vm356 = vcmp.ge.f32.partialorder %v292, 0.0
  %vm357 = vcmp.ge.f32.partialorder %v293, 0.0
  %vm358 = vcmp.ge.f32.partialorder %v294, 0.0
  %vm359 = vcmp.ge.f32.partialorder %v295, 0.0
  %vm360 = vcmp.ge.f32.partialorder %v296, 0.0
  %v361 = vmul.f32 %v233, 0.2
  %v362 = vmul.f32 %v234, 0.2
  %v363 = vmul.f32 %v235, 0.2
  %v364 = vmul.f32 %v236, 0.2
  %v365 = vmul.f32 %v237, 0.2
  %v366 = vmul.f32 %v238, 0.2
  %v367 = vmul.f32 %v239, 0.2
  %v368 = vmul.f32 %v240, 0.2
  %v369 = vmul.f32 %v241, 0.2
  %v370 = vmul.f32 %v242, 0.2
  %v371 = vmul.f32 %v243, 0.2
  %v372 = vmul.f32 %v244, 0.2
  %v373 = vmul.f32 %v245, 0.2
  %v374 = vmul.f32 %v246, 0.2
  %v375 = vmul.f32 %v247, 0.2
  %v376 = vmul.f32 %v248, 0.2
  %v377 = vmul.f32 %v249, 0.2
  %v378 = vmul.f32 %v250, 0.2
  %v379 = vmul.f32 %v251, 0.2
  %v380 = vmul.f32 %v252, 0.2
  %v381 = vmul.f32 %v253, 0.2
  %v382 = vmul.f32 %v254, 0.2
  %v383 = vmul.f32 %v255, 0.2
  %v384 = vmul.f32 %v256, 0.2
  %v385 = vmul.f32 %v257, 0.2
  %v386 = vmul.f32 %v258, 0.2
  %v387 = vmul.f32 %v259, 0.2
  %v388 = vmul.f32 %v260, 0.2
  %v389 = vmul.f32 %v261, 0.2
  %v390 = vmul.f32 %v262, 0.2
  %v391 = vmul.f32 %v263, 0.2
  %v392 = vmul.f32 %v264, 0.2
  %v393 = vmul.f32 %v265, 0.2
  %v394 = vmul.f32 %v266, 0.2
  %v395 = vmul.f32 %v267, 0.2
  %v396 = vmul.f32 %v268, 0.2
  %v397 = vmul.f32 %v269, 0.2
  %v398 = vmul.f32 %v270, 0.2
  %v399 = vmul.f32 %v271, 0.2
  %v400 = vmul.f32 %v272, 0.2
  %v401 = vmul.f32 %v273, 0.2
  %v402 = vmul.f32 %v274, 0.2
  %v403 = vmul.f32 %v275, 0.2
  %v404 = vmul.f32 %v276, 0.2
  %v405 = vmul.f32 %v277, 0.2
  %v406 = vmul.f32 %v278, 0.2
  %v407 = vmul.f32 %v279, 0.2
  %v408 = vmul.f32 %v280, 0.2
  %v409 = vmul.f32 %v281, 0.2
  %v410 = vmul.f32 %v282, 0.2
  %v411 = vmul.f32 %v283, 0.2
  %v412 = vmul.f32 %v284, 0.2
  %v413 = vmul.f32 %v285, 0.2
  %v414 = vmul.f32 %v286, 0.2
  %v415 = vmul.f32 %v287, 0.2
  %v416 = vmul.f32 %v288, 0.2
  %v417 = vmul.f32 %v289, 0.2
  %v418 = vmul.f32 %v290, 0.2
  %v419 = vmul.f32 %v291, 0.2
  %v420 = vmul.f32 %v292, 0.2
  %v421 = vmul.f32 %v293, 0.2
  %v422 = vmul.f32 %v294, 0.2
  %v423 = vmul.f32 %v295, 0.2
  %v424 = vmul.f32 %v296, 0.2
  %v425 = vsel %vm297, %v233, %v361
  %v426 = vsel %vm298, %v234, %v362
  %v427 = vsel %vm299, %v235, %v363
  %v428 = vsel %vm300, %v236, %v364
  %v429 = vsel %vm301, %v237, %v365
  %v430 = vsel %vm302, %v238, %v366
  %v431 = vsel %vm303, %v239, %v367
  %v432 = vsel %vm304, %v240, %v368
  %v433 = vsel %vm305, %v241, %v369
  %v434 = vsel %vm306, %v242, %v370
  %v435 = vsel %vm307, %v243, %v371
  %v436 = vsel %vm308, %v244, %v372
  %v437 = vsel %vm309, %v245, %v373
  %v438 = vsel %vm310, %v246, %v374
  %v439 = vsel %vm311, %v247, %v375
  %v440 = vsel %vm312, %v248, %v376
  %v441 = vsel %vm313, %v249, %v377
  %v442 = vsel %vm314, %v250, %v378
  %v443 = vsel %vm315, %v251, %v379
  %v444 = vsel %vm316, %v252, %v380
  %v445 = vsel %vm317, %v253, %v381
  %v446 = vsel %vm318, %v254, %v382
  %v447 = vsel %vm319, %v255, %v383
  %v448 = vsel %vm320, %v256, %v384
  %v449 = vsel %vm321, %v257, %v385
  %v450 = vsel %vm322, %v258, %v386
  %v451 = vsel %vm323, %v259, %v387
  %v452 = vsel %vm324, %v260, %v388
  %v453 = vsel %vm325, %v261, %v389
  %v454 = vsel %vm326, %v262, %v390
  %v455 = vsel %vm327, %v263, %v391
  %v456 = vsel %vm328, %v264, %v392
  %v457 = vsel %vm329, %v265, %v393
  %v458 = vsel %vm330, %v266, %v394
  %v459 = vsel %vm331, %v267, %v395
  %v460 = vsel %vm332, %v268, %v396
  %v461 = vsel %vm333, %v269, %v397
  %v462 = vsel %vm334, %v270, %v398
  %v463 = vsel %vm335, %v271, %v399
  %v464 = vsel %vm336, %v272, %v400
  %v465 = vsel %vm337, %v273, %v401
  %v466 = vsel %vm338, %v274, %v402
  %v467 = vsel %vm339, %v275, %v403
  %v468 = vsel %vm340, %v276, %v404
  %v469 = vsel %vm341, %v277, %v405
  %v470 = vsel %vm342, %v278, %v406
  %v471 = vsel %vm343, %v279, %v407
  %v472 = vsel %vm344, %v280, %v408
  %v473 = vsel %vm345, %v281, %v409
  %v474 = vsel %vm346, %v282, %v410
  %v475 = vsel %vm347, %v283, %v411
  %v476 = vsel %vm348, %v284, %v412
  %v477 = vsel %vm349, %v285, %v413
  %v478 = vsel %vm350, %v286, %v414
  %v479 = vsel %vm351, %v287, %v415
  %v480 = vsel %vm352, %v288, %v416
  %v481 = vsel %vm353, %v289, %v417
  %v482 = vsel %vm354, %v290, %v418
  %v483 = vsel %vm355, %v291, %v419
  %v484 = vsel %vm356, %v292, %v420
  %v485 = vsel %vm357, %v293, %v421
  %v486 = vsel %vm358, %v294, %v422
  %v487 = vsel %vm359, %v295, %v423
  %v488 = vsel %vm360, %v296, %v424
  %v489 = vpack.c.bf16 %v426, %v425
  %v490 = vpack.c.bf16 %v428, %v427
  %v491 = vpack.c.bf16 %v430, %v429
  %v492 = vpack.c.bf16 %v432, %v431
  %v493 = vpack.c.bf16 %v434, %v433
  %v494 = vpack.c.bf16 %v436, %v435
  %v495 = vpack.c.bf16 %v438, %v437
  %v496 = vpack.c.bf16 %v440, %v439
  %v497 = vpack.c.bf16 %v442, %v441
  %v498 = vpack.c.bf16 %v444, %v443
  %v499 = vpack.c.bf16 %v446, %v445
  %v500 = vpack.c.bf16 %v448, %v447
  %v501 = vpack.c.bf16 %v450, %v449
  %v502 = vpack.c.bf16 %v452, %v451
  %v503 = vpack.c.bf16 %v454, %v453
  %v504 = vpack.c.bf16 %v456, %v455
  %v505 = vpack.c.bf16 %v458, %v457
  %v506 = vpack.c.bf16 %v460, %v459
  %v507 = vpack.c.bf16 %v462, %v461
  %v508 = vpack.c.bf16 %v464, %v463
  %v509 = vpack.c.bf16 %v466, %v465
  %v510 = vpack.c.bf16 %v468, %v467
  %v511 = vpack.c.bf16 %v470, %v469
  %v512 = vpack.c.bf16 %v472, %v471
  %v513 = vpack.c.bf16 %v474, %v473
  %v514 = vpack.c.bf16 %v476, %v475
  %v515 = vpack.c.bf16 %v478, %v477
  %v516 = vpack.c.bf16 %v480, %v479
  %v517 = vpack.c.bf16 %v482, %v481
  %v518 = vpack.c.bf16 %v484, %v483
  %v519 = vpack.c.bf16 %v486, %v485
  %v520 = vpack.c.bf16 %v488, %v487
  %v553 = vunpack.c.l.b16 %v489
  %v554 = vunpack.c.h.b16 %v489
  %v555 = vunpack.c.l.b16 %v490
  %v556 = vunpack.c.h.b16 %v490
  %v557 = vunpack.c.l.b16 %v491
  %v558 = vunpack.c.h.b16 %v491
  %v559 = vunpack.c.l.b16 %v492
  %v560 = vunpack.c.h.b16 %v492
  %v561 = vunpack.c.l.b16 %v493
  %v562 = vunpack.c.h.b16 %v493
  %v563 = vunpack.c.l.b16 %v494
  %v564 = vunpack.c.h.b16 %v494
  %v565 = vunpack.c.l.b16 %v495
  %v566 = vunpack.c.h.b16 %v495
  %v567 = vunpack.c.l.b16 %v496
  %v568 = vunpack.c.h.b16 %v496
  %v569 = vunpack.c.l.b16 %v497
  %v570 = vunpack.c.h.b16 %v497
  %v571 = vunpack.c.l.b16 %v498
  %v572 = vunpack.c.h.b16 %v498
  %v573 = vunpack.c.l.b16 %v499
  %v574 = vunpack.c.h.b16 %v499
  %v575 = vunpack.c.l.b16 %v500
  %v576 = vunpack.c.h.b16 %v500
  %v577 = vunpack.c.l.b16 %v501
  %v578 = vunpack.c.h.b16 %v501
  %v579 = vunpack.c.l.b16 %v502
  %v580 = vunpack.c.h.b16 %v502
  %v581 = vunpack.c.l.b16 %v503
  %v582 = vunpack.c.h.b16 %v503
  %v583 = vunpack.c.l.b16 %v504
  %v584 = vunpack.c.h.b16 %v504
  %v585 = vunpack.c.l.b16 %v505
  %v586 = vunpack.c.h.b16 %v505
  %v587 = vunpack.c.l.b16 %v506
  %v588 = vunpack.c.h.b16 %v506
  %v589 = vunpack.c.l.b16 %v507
  %v590 = vunpack.c.h.b16 %v507
  %v591 = vunpack.c.l.b16 %v508
  %v592 = vunpack.c.h.b16 %v508
  %v593 = vunpack.c.l.b16 %v509
  %v594 = vunpack.c.h.b16 %v509
  %v595 = vunpack.c.l.b16 %v510
  %v596 = vunpack.c.h.b16 %v510
  %v597 = vunpack.c.l.b16 %v511
  %v598 = vunpack.c.h.b16 %v511
  %v599 = vunpack.c.l.b16 %v512
  %v600 = vunpack.c.h.b16 %v512
  %v601 = vunpack.c.l.b16 %v513
  %v602 = vunpack.c.h.b16 %v513
  %v603 = vunpack.c.l.b16 %v514
  %v604 = vunpack.c.h.b16 %v514
  %v605 = vunpack.c.l.b16 %v515
  %v606 = vunpack.c.h.b16 %v515
  %v607 = vunpack.c.l.b16 %v516
  %v608 = vunpack.c.h.b16 %v516
  %v609 = vunpack.c.l.b16 %v517
  %v610 = vunpack.c.h.b16 %v517
  %v611 = vunpack.c.l.b16 %v518
  %v612 = vunpack.c.h.b16 %v518
  %v613 = vunpack.c.l.b16 %v519
  %v614 = vunpack.c.h.b16 %v519
  %v615 = vunpack.c.l.b16 %v520
  %v616 = vunpack.c.h.b16 %v520
  %v617 = vpack.c.b16 %v553, %v553
  %v618 = vpack.c.b16 %v554, %v554
  %v619 = vpack.c.b16 %v555, %v555
  %v620 = vpack.c.b16 %v556, %v556
  %v621 = vpack.c.b16 %v557, %v557
  %v622 = vpack.c.b16 %v558, %v558
  %v623 = vpack.c.b16 %v559, %v559
  %v624 = vpack.c.b16 %v560, %v560
  %v625 = vpack.c.b16 %v561, %v561
  %v626 = vpack.c.b16 %v562, %v562
  %v627 = vpack.c.b16 %v563, %v563
  %v628 = vpack.c.b16 %v564, %v564
  %v629 = vpack.c.b16 %v565, %v565
  %v630 = vpack.c.b16 %v566, %v566
  %v631 = vpack.c.b16 %v567, %v567
  %v632 = vpack.c.b16 %v568, %v568
  %v633 = vpack.c.b16 %v569, %v569
  %v634 = vpack.c.b16 %v570, %v570
  %v635 = vpack.c.b16 %v571, %v571
  %v636 = vpack.c.b16 %v572, %v572
  %v637 = vpack.c.b16 %v573, %v573
  %v638 = vpack.c.b16 %v574, %v574
  %v639 = vpack.c.b16 %v575, %v575
  %v640 = vpack.c.b16 %v576, %v576
  %v641 = vpack.c.b16 %v577, %v577
  %v642 = vpack.c.b16 %v578, %v578
  %v643 = vpack.c.b16 %v579, %v579
  %v644 = vpack.c.b16 %v580, %v580
  %v645 = vpack.c.b16 %v581, %v581
  %v646 = vpack.c.b16 %v582, %v582
  %v647 = vpack.c.b16 %v583, %v583
  %v648 = vpack.c.b16 %v584, %v584
  %v649 = vpack.c.b16 %v585, %v585
  %v650 = vpack.c.b16 %v586, %v586
  %v651 = vpack.c.b16 %v587, %v587
  %v652 = vpack.c.b16 %v588, %v588
  %v653 = vpack.c.b16 %v589, %v589
  %v654 = vpack.c.b16 %v590, %v590
  %v655 = vpack.c.b16 %v591, %v591
  %v656 = vpack.c.b16 %v592, %v592
  %v657 = vpack.c.b16 %v593, %v593
  %v658 = vpack.c.b16 %v594, %v594
  %v659 = vpack.c.b16 %v595, %v595
  %v660 = vpack.c.b16 %v596, %v596
  %v661 = vpack.c.b16 %v597, %v597
  %v662 = vpack.c.b16 %v598, %v598
  %v663 = vpack.c.b16 %v599, %v599
  %v664 = vpack.c.b16 %v600, %v600
  %v665 = vpack.c.b16 %v601, %v601
  %v666 = vpack.c.b16 %v602, %v602
  %v667 = vpack.c.b16 %v603, %v603
  %v668 = vpack.c.b16 %v604, %v604
  %v669 = vpack.c.b16 %v605, %v605
  %v670 = vpack.c.b16 %v606, %v606
  %v671 = vpack.c.b16 %v607, %v607
  %v672 = vpack.c.b16 %v608, %v608
  %v673 = vpack.c.b16 %v609, %v609
  %v674 = vpack.c.b16 %v610, %v610
  %v675 = vpack.c.b16 %v611, %v611
  %v676 = vpack.c.b16 %v612, %v612
  %v677 = vpack.c.b16 %v613, %v613
  %v678 = vpack.c.b16 %v614, %v614
  %v679 = vpack.c.b16 %v615, %v615
  %v680 = vpack.c.b16 %v616, %v616
  %745 = vst [vmem:[%s4] sm:$0xf] %v617
  %746 = vst [vmem:[%s4 + $0x4] sm:$0xf] %v618
  %747 = vst [vmem:[%s4 + $0x8] sm:$0xf] %v619
  %748 = vst [vmem:[%s4 + $0xc] sm:$0xf] %v620
  %749 = vst [vmem:[%s4 + $0x10] sm:$0xf] %v621
  %750 = vst [vmem:[%s4 + $0x14] sm:$0xf] %v622
  %751 = vst [vmem:[%s4 + $0x18] sm:$0xf] %v623
  %752 = vst [vmem:[%s4 + $0x1c] sm:$0xf] %v624
  %753 = vst [vmem:[%s4 + $0x20] sm:$0xf] %v625
  %754 = vst [vmem:[%s4 + $0x24] sm:$0xf] %v626
  %755 = vst [vmem:[%s4 + $0x28] sm:$0xf] %v627
  %756 = vst [vmem:[%s4 + $0x2c] sm:$0xf] %v628
  %757 = vst [vmem:[%s4 + $0x30] sm:$0xf] %v629
  %758 = vst [vmem:[%s4 + $0x34] sm:$0xf] %v630
  %759 = vst [vmem:[%s4 + $0x38] sm:$0xf] %v631
  %760 = vst [vmem:[%s4 + $0x3c] sm:$0xf] %v632
  %761 = vst [vmem:[%s4 + $0x40] sm:$0xf] %v633
  %762 = vst [vmem:[%s4 + $0x44] sm:$0xf] %v634
  %763 = vst [vmem:[%s4 + $0x48] sm:$0xf] %v635
  %764 = vst [vmem:[%s4 + $0x4c] sm:$0xf] %v636
  %765 = vst [vmem:[%s4 + $0x50] sm:$0xf] %v637
  %766 = vst [vmem:[%s4 + $0x54] sm:$0xf] %v638
  %767 = vst [vmem:[%s4 + $0x58] sm:$0xf] %v639
  %768 = vst [vmem:[%s4 + $0x5c] sm:$0xf] %v640
  %769 = vst [vmem:[%s4 + $0x60] sm:$0xf] %v641
  %770 = vst [vmem:[%s4 + $0x64] sm:$0xf] %v642
  %771 = vst [vmem:[%s4 + $0x68] sm:$0xf] %v643
  %772 = vst [vmem:[%s4 + $0x6c] sm:$0xf] %v644
  %773 = vst [vmem:[%s4 + $0x70] sm:$0xf] %v645
  %774 = vst [vmem:[%s4 + $0x74] sm:$0xf] %v646
  %775 = vst [vmem:[%s4 + $0x78] sm:$0xf] %v647
  %776 = vst [vmem:[%s4 + $0x7c] sm:$0xf] %v648
  %777 = vst [vmem:[%s4 + $0x80] sm:$0xf] %v649
  %778 = vst [vmem:[%s4 + $0x84] sm:$0xf] %v650
  %779 = vst [vmem:[%s4 + $0x88] sm:$0xf] %v651
  %780 = vst [vmem:[%s4 + $0x8c] sm:$0xf] %v652
  %781 = vst [vmem:[%s4 + $0x90] sm:$0xf] %v653
  %782 = vst [vmem:[%s4 + $0x94] sm:$0xf] %v654
  %783 = vst [vmem:[%s4 + $0x98] sm:$0xf] %v655
  %784 = vst [vmem:[%s4 + $0x9c] sm:$0xf] %v656
  %785 = vst [vmem:[%s4 + $0xa0] sm:$0xf] %v657
  %786 = vst [vmem:[%s4 + $0xa4] sm:$0xf] %v658
  %787 = vst [vmem:[%s4 + $0xa8] sm:$0xf] %v659
  %788 = vst [vmem:[%s4 + $0xac] sm:$0xf] %v660
  %789 = vst [vmem:[%s4 + $0xb0] sm:$0xf] %v661
  %790 = vst [vmem:[%s4 + $0xb4] sm:$0xf] %v662
  %791 = vst [vmem:[%s4 + $0xb8] sm:$0xf] %v663
  %792 = vst [vmem:[%s4 + $0xbc] sm:$0xf] %v664
  %793 = vst [vmem:[%s4 + $0xc0] sm:$0xf] %v665
  %794 = vst [vmem:[%s4 + $0xc4] sm:$0xf] %v666
  %795 = vst [vmem:[%s4 + $0xc8] sm:$0xf] %v667
  %796 = vst [vmem:[%s4 + $0xcc] sm:$0xf] %v668
  %797 = vst [vmem:[%s4 + $0xd0] sm:$0xf] %v669
  %798 = vst [vmem:[%s4 + $0xd4] sm:$0xf] %v670
  %799 = vst [vmem:[%s4 + $0xd8] sm:$0xf] %v671
  %800 = vst [vmem:[%s4 + $0xdc] sm:$0xf] %v672
  %801 = vst [vmem:[%s4 + $0xe0] sm:$0xf] %v673
  %802 = vst [vmem:[%s4 + $0xe4] sm:$0xf] %v674
  %803 = vst [vmem:[%s4 + $0xe8] sm:$0xf] %v675
  %804 = vst [vmem:[%s4 + $0xec] sm:$0xf] %v676
  %805 = vst [vmem:[%s4 + $0xf0] sm:$0xf] %v677
  %806 = vst [vmem:[%s4 + $0xf4] sm:$0xf] %v678
  %807 = vst [vmem:[%s4 + $0xf8] sm:$0xf] %v679
  %808 = vst [vmem:[%s4 + $0xfc] sm:$0xf] %v680
  // Predicated region
  $region18: #{discriminator_forward.10} parent=0 // pred_check
    _
  $region19: #{discriminator_forward.10} parent=0 // pred_check_branch
    %810 = sbr.rel (0) target = $region21
  $region20: #{discriminator_forward.10} parent=0 // pred_region
    _
  $region21: #{discriminator_forward.10} parent=0 // pred_fallthru
    _
  // Predicated region
  $region22: #{discriminator_forward.10} parent=0 // pred_check
    _
  $region23: #{discriminator_forward.10} parent=0 // pred_check_branch
    %812 = sbr.rel (0) target = $region25
  $region24: #{discriminator_forward.10} parent=0 // pred_region
    _
  $region25: #{discriminator_forward.10} parent=0 // pred_fallthru
    _

// kernel: discriminator_forward.9
$region0: #{discriminator_forward.9}
  #allocation0 [shape = 'u32[]', space=smem, size = 0x4, offset = 0x4, fixed_abs, tag = 'smem constant byte address 0x4 - core index']
  #allocation1 [shape = 'u32[144,128]{1,0:T(1,128)}', space=vmem, size = 0x12000, scoped, tag = 'internal scratch']
  %s0 = inlined_call_operand.vmem [shape: bf16[512,256], index: 0, kind: input, shape index: {}]
  %s1 = inlined_call_operand.vmem [shape: bf16[256,128], index: 1, kind: input, shape index: {}]
  %s2 = inlined_call_operand.vmem [shape: bf16[512,128], index: 2, kind: output, shape index: {0}]
  %s3 = inlined_call_operand.vmem [shape: f32[8,128], index: 3, kind: output, shape index: {1}]
  %4 = xla_tuple %s2, %s3
  %s5 = sld [smem:[#allocation0]]
  $region26: #{discriminator_forward.9} parent=0
    _
  %s7 = ssub.s32 1, %s5
  %s8 = scalar_select 0, %s7, %s5
  // Predicated region
  $region2: #{discriminator_forward.9} parent=0 // pred_check
    _
  $region3: #{discriminator_forward.9} parent=0 // pred_check_branch
    %10 = sbr.rel (0) target = $region5
  $region4: #{discriminator_forward.9} parent=0 // pred_region
    _
  $region5: #{discriminator_forward.9} parent=0 // pred_fallthru
    _
  // Predicated region
  $region6: #{discriminator_forward.9} parent=0 // pred_check
    _
  $region7: #{discriminator_forward.9} parent=0 // pred_check_branch
    %12 = sbr.rel (0) target = $region9
  $region8: #{discriminator_forward.9} parent=0 // pred_region
    _
  $region9: #{discriminator_forward.9} parent=0 // pred_fallthru
    _
  %v14 = vld [vmem:[%s0] sm:$0xff]
  %v15 = vld [vmem:[%s0 + $0x8] sm:$0xff]
  %v16 = vld [vmem:[%s0 + $0x10] sm:$0xff]
  %v17 = vld [vmem:[%s0 + $0x18] sm:$0xff]
  %v18 = vld [vmem:[%s0 + $0x20] sm:$0xff]
  %v19 = vld [vmem:[%s0 + $0x28] sm:$0xff]
  %v20 = vld [vmem:[%s0 + $0x30] sm:$0xff]
  %v21 = vld [vmem:[%s0 + $0x38] sm:$0xff]
  %v22 = vld [vmem:[%s0 + $0x40] sm:$0xff]
  %v23 = vld [vmem:[%s0 + $0x48] sm:$0xff]
  %v24 = vld [vmem:[%s0 + $0x50] sm:$0xff]
  %v25 = vld [vmem:[%s0 + $0x58] sm:$0xff]
  %v26 = vld [vmem:[%s0 + $0x60] sm:$0xff]
  %v27 = vld [vmem:[%s0 + $0x68] sm:$0xff]
  %v28 = vld [vmem:[%s0 + $0x70] sm:$0xff]
  %v29 = vld [vmem:[%s0 + $0x78] sm:$0xff]
  %v30 = vld [vmem:[%s0 + $0x80] sm:$0xff]
  %v31 = vld [vmem:[%s0 + $0x88] sm:$0xff]
  %v32 = vld [vmem:[%s0 + $0x90] sm:$0xff]
  %v33 = vld [vmem:[%s0 + $0x98] sm:$0xff]
  %v34 = vld [vmem:[%s0 + $0xa0] sm:$0xff]
  %v35 = vld [vmem:[%s0 + $0xa8] sm:$0xff]
  %v36 = vld [vmem:[%s0 + $0xb0] sm:$0xff]
  %v37 = vld [vmem:[%s0 + $0xb8] sm:$0xff]
  %v38 = vld [vmem:[%s0 + $0xc0] sm:$0xff]
  %v39 = vld [vmem:[%s0 + $0xc8] sm:$0xff]
  %v40 = vld [vmem:[%s0 + $0xd0] sm:$0xff]
  %v41 = vld [vmem:[%s0 + $0xd8] sm:$0xff]
  %v42 = vld [vmem:[%s0 + $0xe0] sm:$0xff]
  %v43 = vld [vmem:[%s0 + $0xe8] sm:$0xff]
  %v44 = vld [vmem:[%s0 + $0xf0] sm:$0xff]
  %v45 = vld [vmem:[%s0 + $0xf8] sm:$0xff]
  %v46 = vld [vmem:[%s0 + $0x100] sm:$0xff]
  %v47 = vld [vmem:[%s0 + $0x108] sm:$0xff]
  %v48 = vld [vmem:[%s0 + $0x110] sm:$0xff]
  %v49 = vld [vmem:[%s0 + $0x118] sm:$0xff]
  %v50 = vld [vmem:[%s0 + $0x120] sm:$0xff]
  %v51 = vld [vmem:[%s0 + $0x128] sm:$0xff]
  %v52 = vld [vmem:[%s0 + $0x130] sm:$0xff]
  %v53 = vld [vmem:[%s0 + $0x138] sm:$0xff]
  %v54 = vld [vmem:[%s0 + $0x140] sm:$0xff]
  %v55 = vld [vmem:[%s0 + $0x148] sm:$0xff]
  %v56 = vld [vmem:[%s0 + $0x150] sm:$0xff]
  %v57 = vld [vmem:[%s0 + $0x158] sm:$0xff]
  %v58 = vld [vmem:[%s0 + $0x160] sm:$0xff]
  %v59 = vld [vmem:[%s0 + $0x168] sm:$0xff]
  %v60 = vld [vmem:[%s0 + $0x170] sm:$0xff]
  %v61 = vld [vmem:[%s0 + $0x178] sm:$0xff]
  %v62 = vld [vmem:[%s0 + $0x180] sm:$0xff]
  %v63 = vld [vmem:[%s0 + $0x188] sm:$0xff]
  %v64 = vld [vmem:[%s0 + $0x190] sm:$0xff]
  %v65 = vld [vmem:[%s0 + $0x198] sm:$0xff]
  %v66 = vld [vmem:[%s0 + $0x1a0] sm:$0xff]
  %v67 = vld [vmem:[%s0 + $0x1a8] sm:$0xff]
  %v68 = vld [vmem:[%s0 + $0x1b0] sm:$0xff]
  %v69 = vld [vmem:[%s0 + $0x1b8] sm:$0xff]
  %v70 = vld [vmem:[%s0 + $0x1c0] sm:$0xff]
  %v71 = vld [vmem:[%s0 + $0x1c8] sm:$0xff]
  %v72 = vld [vmem:[%s0 + $0x1d0] sm:$0xff]
  %v73 = vld [vmem:[%s0 + $0x1d8] sm:$0xff]
  %v74 = vld [vmem:[%s0 + $0x1e0] sm:$0xff]
  %v75 = vld [vmem:[%s0 + $0x1e8] sm:$0xff]
  %v76 = vld [vmem:[%s0 + $0x1f0] sm:$0xff]
  %v77 = vld [vmem:[%s0 + $0x1f8] sm:$0xff]
  %v78 = vld [vmem:[%s1] sm:$0xf]
  %v79 = vld [vmem:[%s1 + $0x4] sm:$0xf]
  %v80 = vld [vmem:[%s1 + $0x8] sm:$0xf]
  %v81 = vld [vmem:[%s1 + $0xc] sm:$0xf]
  %v82 = vld [vmem:[%s1 + $0x10] sm:$0xf]
  %v83 = vld [vmem:[%s1 + $0x14] sm:$0xf]
  %v84 = vld [vmem:[%s1 + $0x18] sm:$0xf]
  %v85 = vld [vmem:[%s1 + $0x1c] sm:$0xf]
  %v86 = vld [vmem:[%s1 + $0x20] sm:$0xf]
  %v87 = vld [vmem:[%s1 + $0x24] sm:$0xf]
  %v88 = vld [vmem:[%s1 + $0x28] sm:$0xf]
  %v89 = vld [vmem:[%s1 + $0x2c] sm:$0xf]
  %v90 = vld [vmem:[%s1 + $0x30] sm:$0xf]
  %v91 = vld [vmem:[%s1 + $0x34] sm:$0xf]
  %v92 = vld [vmem:[%s1 + $0x38] sm:$0xf]
  %v93 = vld [vmem:[%s1 + $0x3c] sm:$0xf]
  %v94 = vld [vmem:[%s1 + $0x40] sm:$0xf]
  %v95 = vld [vmem:[%s1 + $0x44] sm:$0xf]
  %v96 = vld [vmem:[%s1 + $0x48] sm:$0xf]
  %v97 = vld [vmem:[%s1 + $0x4c] sm:$0xf]
  %v98 = vld [vmem:[%s1 + $0x50] sm:$0xf]
  %v99 = vld [vmem:[%s1 + $0x54] sm:$0xf]
  %v100 = vld [vmem:[%s1 + $0x58] sm:$0xf]
  %v101 = vld [vmem:[%s1 + $0x5c] sm:$0xf]
  %v102 = vld [vmem:[%s1 + $0x60] sm:$0xf]
  %v103 = vld [vmem:[%s1 + $0x64] sm:$0xf]
  %v104 = vld [vmem:[%s1 + $0x68] sm:$0xf]
  %v105 = vld [vmem:[%s1 + $0x6c] sm:$0xf]
  %v106 = vld [vmem:[%s1 + $0x70] sm:$0xf]
  %v107 = vld [vmem:[%s1 + $0x74] sm:$0xf]
  %v108 = vld [vmem:[%s1 + $0x78] sm:$0xf]
  %v109 = vld [vmem:[%s1 + $0x7c] sm:$0xf]
  %v174 = vunpack.c.l.b16 %v14
  %v175 = vunpack.c.h.b16 %v14
  %v176 = vunpack.c.l.b16 %v15
  %v177 = vunpack.c.h.b16 %v15
  %v178 = vunpack.c.l.b16 %v16
  %v179 = vunpack.c.h.b16 %v16
  %v180 = vunpack.c.l.b16 %v17
  %v181 = vunpack.c.h.b16 %v17
  %v182 = vunpack.c.l.b16 %v18
  %v183 = vunpack.c.h.b16 %v18
  %v184 = vunpack.c.l.b16 %v19
  %v185 = vunpack.c.h.b16 %v19
  %v186 = vunpack.c.l.b16 %v20
  %v187 = vunpack.c.h.b16 %v20
  %v188 = vunpack.c.l.b16 %v21
  %v189 = vunpack.c.h.b16 %v21
  %v190 = vunpack.c.l.b16 %v22
  %v191 = vunpack.c.h.b16 %v22
  %v192 = vunpack.c.l.b16 %v23
  %v193 = vunpack.c.h.b16 %v23
  %v194 = vunpack.c.l.b16 %v24
  %v195 = vunpack.c.h.b16 %v24
  %v196 = vunpack.c.l.b16 %v25
  %v197 = vunpack.c.h.b16 %v25
  %v198 = vunpack.c.l.b16 %v26
  %v199 = vunpack.c.h.b16 %v26
  %v200 = vunpack.c.l.b16 %v27
  %v201 = vunpack.c.h.b16 %v27
  %v202 = vunpack.c.l.b16 %v28
  %v203 = vunpack.c.h.b16 %v28
  %v204 = vunpack.c.l.b16 %v29
  %v205 = vunpack.c.h.b16 %v29
  %v206 = vunpack.c.l.b16 %v30
  %v207 = vunpack.c.h.b16 %v30
  %v208 = vunpack.c.l.b16 %v31
  %v209 = vunpack.c.h.b16 %v31
  %v210 = vunpack.c.l.b16 %v32
  %v211 = vunpack.c.h.b16 %v32
  %v212 = vunpack.c.l.b16 %v33
  %v213 = vunpack.c.h.b16 %v33
  %v214 = vunpack.c.l.b16 %v34
  %v215 = vunpack.c.h.b16 %v34
  %v216 = vunpack.c.l.b16 %v35
  %v217 = vunpack.c.h.b16 %v35
  %v218 = vunpack.c.l.b16 %v36
  %v219 = vunpack.c.h.b16 %v36
  %v220 = vunpack.c.l.b16 %v37
  %v221 = vunpack.c.h.b16 %v37
  %v222 = vunpack.c.l.b16 %v38
  %v223 = vunpack.c.h.b16 %v38
  %v224 = vunpack.c.l.b16 %v39
  %v225 = vunpack.c.h.b16 %v39
  %v226 = vunpack.c.l.b16 %v40
  %v227 = vunpack.c.h.b16 %v40
  %v228 = vunpack.c.l.b16 %v41
  %v229 = vunpack.c.h.b16 %v41
  %v230 = vunpack.c.l.b16 %v42
  %v231 = vunpack.c.h.b16 %v42
  %v232 = vunpack.c.l.b16 %v43
  %v233 = vunpack.c.h.b16 %v43
  %v234 = vunpack.c.l.b16 %v44
  %v235 = vunpack.c.h.b16 %v44
  %v236 = vunpack.c.l.b16 %v45
  %v237 = vunpack.c.h.b16 %v45
  %v238 = vunpack.c.l.b16 %v46
  %v239 = vunpack.c.h.b16 %v46
  %v240 = vunpack.c.l.b16 %v47
  %v241 = vunpack.c.h.b16 %v47
  %v242 = vunpack.c.l.b16 %v48
  %v243 = vunpack.c.h.b16 %v48
  %v244 = vunpack.c.l.b16 %v49
  %v245 = vunpack.c.h.b16 %v49
  %v246 = vunpack.c.l.b16 %v50
  %v247 = vunpack.c.h.b16 %v50
  %v248 = vunpack.c.l.b16 %v51
  %v249 = vunpack.c.h.b16 %v51
  %v250 = vunpack.c.l.b16 %v52
  %v251 = vunpack.c.h.b16 %v52
  %v252 = vunpack.c.l.b16 %v53
  %v253 = vunpack.c.h.b16 %v53
  %v254 = vunpack.c.l.b16 %v54
  %v255 = vunpack.c.h.b16 %v54
  %v256 = vunpack.c.l.b16 %v55
  %v257 = vunpack.c.h.b16 %v55
  %v258 = vunpack.c.l.b16 %v56
  %v259 = vunpack.c.h.b16 %v56
  %v260 = vunpack.c.l.b16 %v57
  %v261 = vunpack.c.h.b16 %v57
  %v262 = vunpack.c.l.b16 %v58
  %v263 = vunpack.c.h.b16 %v58
  %v264 = vunpack.c.l.b16 %v59
  %v265 = vunpack.c.h.b16 %v59
  %v266 = vunpack.c.l.b16 %v60
  %v267 = vunpack.c.h.b16 %v60
  %v268 = vunpack.c.l.b16 %v61
  %v269 = vunpack.c.h.b16 %v61
  %v270 = vunpack.c.l.b16 %v62
  %v271 = vunpack.c.h.b16 %v62
  %v272 = vunpack.c.l.b16 %v63
  %v273 = vunpack.c.h.b16 %v63
  %v274 = vunpack.c.l.b16 %v64
  %v275 = vunpack.c.h.b16 %v64
  %v276 = vunpack.c.l.b16 %v65
  %v277 = vunpack.c.h.b16 %v65
  %v278 = vunpack.c.l.b16 %v66
  %v279 = vunpack.c.h.b16 %v66
  %v280 = vunpack.c.l.b16 %v67
  %v281 = vunpack.c.h.b16 %v67
  %v282 = vunpack.c.l.b16 %v68
  %v283 = vunpack.c.h.b16 %v68
  %v284 = vunpack.c.l.b16 %v69
  %v285 = vunpack.c.h.b16 %v69
  %v286 = vunpack.c.l.b16 %v70
  %v287 = vunpack.c.h.b16 %v70
  %v288 = vunpack.c.l.b16 %v71
  %v289 = vunpack.c.h.b16 %v71
  %v290 = vunpack.c.l.b16 %v72
  %v291 = vunpack.c.h.b16 %v72
  %v292 = vunpack.c.l.b16 %v73
  %v293 = vunpack.c.h.b16 %v73
  %v294 = vunpack.c.l.b16 %v74
  %v295 = vunpack.c.h.b16 %v74
  %v296 = vunpack.c.l.b16 %v75
  %v297 = vunpack.c.h.b16 %v75
  %v298 = vunpack.c.l.b16 %v76
  %v299 = vunpack.c.h.b16 %v76
  %v300 = vunpack.c.l.b16 %v77
  %v301 = vunpack.c.h.b16 %v77
  %v302 = vpack.c.b16 %v176, %v174
  %v303 = vpack.c.b16 %v177, %v175
  %v304 = vpack.c.b16 %v180, %v178
  %v305 = vpack.c.b16 %v181, %v179
  %v306 = vpack.c.b16 %v184, %v182
  %v307 = vpack.c.b16 %v185, %v183
  %v308 = vpack.c.b16 %v188, %v186
  %v309 = vpack.c.b16 %v189, %v187
  %v310 = vpack.c.b16 %v192, %v190
  %v311 = vpack.c.b16 %v193, %v191
  %v312 = vpack.c.b16 %v196, %v194
  %v313 = vpack.c.b16 %v197, %v195
  %v314 = vpack.c.b16 %v200, %v198
  %v315 = vpack.c.b16 %v201, %v199
  %v316 = vpack.c.b16 %v204, %v202
  %v317 = vpack.c.b16 %v205, %v203
  %v318 = vpack.c.b16 %v208, %v206
  %v319 = vpack.c.b16 %v209, %v207
  %v320 = vpack.c.b16 %v212, %v210
  %v321 = vpack.c.b16 %v213, %v211
  %v322 = vpack.c.b16 %v216, %v214
  %v323 = vpack.c.b16 %v217, %v215
  %v324 = vpack.c.b16 %v220, %v218
  %v325 = vpack.c.b16 %v221, %v219
  %v326 = vpack.c.b16 %v224, %v222
  %v327 = vpack.c.b16 %v225, %v223
  %v328 = vpack.c.b16 %v228, %v226
  %v329 = vpack.c.b16 %v229, %v227
  %v330 = vpack.c.b16 %v232, %v230
  %v331 = vpack.c.b16 %v233, %v231
  %v332 = vpack.c.b16 %v236, %v234
  %v333 = vpack.c.b16 %v237, %v235
  %v334 = vpack.c.b16 %v240, %v238
  %v335 = vpack.c.b16 %v241, %v239
  %v336 = vpack.c.b16 %v244, %v242
  %v337 = vpack.c.b16 %v245, %v243
  %v338 = vpack.c.b16 %v248, %v246
  %v339 = vpack.c.b16 %v249, %v247
  %v340 = vpack.c.b16 %v252, %v250
  %v341 = vpack.c.b16 %v253, %v251
  %v342 = vpack.c.b16 %v256, %v254
  %v343 = vpack.c.b16 %v257, %v255
  %v344 = vpack.c.b16 %v260, %v258
  %v345 = vpack.c.b16 %v261, %v259
  %v346 = vpack.c.b16 %v264, %v262
  %v347 = vpack.c.b16 %v265, %v263
  %v348 = vpack.c.b16 %v268, %v266
  %v349 = vpack.c.b16 %v269, %v267
  %v350 = vpack.c.b16 %v272, %v270
  %v351 = vpack.c.b16 %v273, %v271
  %v352 = vpack.c.b16 %v276, %v274
  %v353 = vpack.c.b16 %v277, %v275
  %v354 = vpack.c.b16 %v280, %v278
  %v355 = vpack.c.b16 %v281, %v279
  %v356 = vpack.c.b16 %v284, %v282
  %v357 = vpack.c.b16 %v285, %v283
  %v358 = vpack.c.b16 %v288, %v286
  %v359 = vpack.c.b16 %v289, %v287
  %v360 = vpack.c.b16 %v292, %v290
  %v361 = vpack.c.b16 %v293, %v291
  %v362 = vpack.c.b16 %v296, %v294
  %v363 = vpack.c.b16 %v297, %v295
  %v364 = vpack.c.b16 %v300, %v298
  %v365 = vpack.c.b16 %v301, %v299
  %v462 = vunpack.c.l.b16 %v78
  %v463 = vunpack.c.l.b16 %v79
  %v464 = vunpack.c.l.b16 %v80
  %v465 = vunpack.c.l.b16 %v81
  %v466 = vunpack.c.l.b16 %v82
  %v467 = vunpack.c.l.b16 %v83
  %v468 = vunpack.c.l.b16 %v84
  %v469 = vunpack.c.l.b16 %v85
  %v470 = vunpack.c.l.b16 %v86
  %v471 = vunpack.c.l.b16 %v87
  %v472 = vunpack.c.l.b16 %v88
  %v473 = vunpack.c.l.b16 %v89
  %v474 = vunpack.c.l.b16 %v90
  %v475 = vunpack.c.l.b16 %v91
  %v476 = vunpack.c.l.b16 %v92
  %v477 = vunpack.c.l.b16 %v93
  %v478 = vunpack.c.l.b16 %v94
  %v479 = vunpack.c.l.b16 %v95
  %v480 = vunpack.c.l.b16 %v96
  %v481 = vunpack.c.l.b16 %v97
  %v482 = vunpack.c.l.b16 %v98
  %v483 = vunpack.c.l.b16 %v99
  %v484 = vunpack.c.l.b16 %v100
  %v485 = vunpack.c.l.b16 %v101
  %v486 = vunpack.c.l.b16 %v102
  %v487 = vunpack.c.l.b16 %v103
  %v488 = vunpack.c.l.b16 %v104
  %v489 = vunpack.c.l.b16 %v105
  %v490 = vunpack.c.l.b16 %v106
  %v491 = vunpack.c.l.b16 %v107
  %v492 = vunpack.c.l.b16 %v108
  %v493 = vunpack.c.l.b16 %v109
  %v494 = vpack.c.b16 %v463, %v462
  %v495 = vpack.c.b16 %v465, %v464
  %v496 = vpack.c.b16 %v467, %v466
  %v497 = vpack.c.b16 %v469, %v468
  %v498 = vpack.c.b16 %v471, %v470
  %v499 = vpack.c.b16 %v473, %v472
  %v500 = vpack.c.b16 %v475, %v474
  %v501 = vpack.c.b16 %v477, %v476
  %v502 = vpack.c.b16 %v479, %v478
  %v503 = vpack.c.b16 %v481, %v480
  %v504 = vpack.c.b16 %v483, %v482
  %v505 = vpack.c.b16 %v485, %v484
  %v506 = vpack.c.b16 %v487, %v486
  %v507 = vpack.c.b16 %v489, %v488
  %v508 = vpack.c.b16 %v491, %v490
  %v509 = vpack.c.b16 %v493, %v492
  %526 = vmatprep.subr.bf16.mxu0 0
  %527 = vmatpush1.bf16.msra.mxu0 %v494
  %528 = vmatprep.subr.bf16.mxu0 0
  %529 = vmatpush1.bf16.msra.mxu0 %v495
  %530 = vmatprep.subr.bf16.mxu0 0
  %531 = vmatpush1.bf16.msra.mxu0 %v496
  %532 = vmatprep.subr.bf16.mxu0 0
  %533 = vmatpush1.bf16.msra.mxu0 %v497
  %534 = vmatprep.subr.bf16.mxu0 0
  %535 = vmatpush1.bf16.msra.mxu0 %v498
  %536 = vmatprep.subr.bf16.mxu0 0
  %537 = vmatpush1.bf16.msra.mxu0 %v499
  %538 = vmatprep.subr.bf16.mxu0 0
  %539 = vmatpush1.bf16.msra.mxu0 %v500
  %540 = vmatprep.subr.bf16.mxu0 0
  %541 = vmatpush1.bf16.msra.mxu0 %v501
  %542 = vmatprep.subr.bf16.mxu0 0
  %543 = vmatpush1.bf16.msra.mxu0 %v502
  %544 = vmatprep.subr.bf16.mxu0 0
  %545 = vmatpush1.bf16.msra.mxu0 %v503
  %546 = vmatprep.subr.bf16.mxu0 0
  %547 = vmatpush1.bf16.msra.mxu0 %v504
  %548 = vmatprep.subr.bf16.mxu0 0
  %549 = vmatpush1.bf16.msra.mxu0 %v505
  %550 = vmatprep.subr.bf16.mxu0 0
  %551 = vmatpush1.bf16.msra.mxu0 %v506
  %552 = vmatprep.subr.bf16.mxu0 0
  %553 = vmatpush1.bf16.msra.mxu0 %v507
  %554 = vmatprep.subr.bf16.mxu0 0
  %555 = vmatpush1.bf16.msra.mxu0 %v508
  %556 = vmatprep.subr.bf16.mxu0 0
  %557 = vmatpush1.bf16.msra.mxu0 %v509
  %558 = vmatprep.mubr.bf16.mxu0 %v303
  %559 = vmatmul.mubr.bf16.gmra.mrb[0].mxu0 %v302
  %v560 = vpop.f32.mrb[0].mxu0
  %v561 = vadd.f32 0.0, %v560
  %v562 = vpop.f32.mrb[0].mxu0
  %v563 = vpop.f32.mrb[0].mxu0
  %v564 = vadd.f32 0.0, %v563
  %v565 = vpop.f32.mrb[0].mxu0
  %566 = vmatprep.mubr.bf16.mxu0 %v305
  %567 = vmatmul.mubr.bf16.gmra.mrb[0].mxu0 %v304
  %v568 = vpop.f32.mrb[0].mxu0
  %v569 = vadd.f32 0.0, %v568
  %v570 = vpop.f32.mrb[0].mxu0
  %v571 = vpop.f32.mrb[0].mxu0
  %v572 = vadd.f32 0.0, %v571
  %v573 = vpop.f32.mrb[0].mxu0
  %574 = vmatprep.mubr.bf16.mxu0 %v307
  %575 = vmatmul.mubr.bf16.gmra.mrb[0].mxu0 %v306
  %v576 = vpop.f32.mrb[0].mxu0
  %v577 = vadd.f32 0.0, %v576
  %v578 = vpop.f32.mrb[0].mxu0
  %v579 = vpop.f32.mrb[0].mxu0
  %v580 = vadd.f32 0.0, %v579
  %v581 = vpop.f32.mrb[0].mxu0
  %582 = vmatprep.mubr.bf16.mxu0 %v309
  %583 = vmatmul.mubr.bf16.gmra.mrb[0].mxu0 %v308
  %v584 = vpop.f32.mrb[0].mxu0
  %v585 = vadd.f32 0.0, %v584
  %v586 = vpop.f32.mrb[0].mxu0
  %v587 = vpop.f32.mrb[0].mxu0
  %v588 = vadd.f32 0.0, %v587
  %v589 = vpop.f32.mrb[0].mxu0
  %590 = vmatprep.mubr.bf16.mxu0 %v311
  %591 = vmatmul.mubr.bf16.gmra.mrb[0].mxu0 %v310
  %v592 = vpop.f32.mrb[0].mxu0
  %v593 = vadd.f32 0.0, %v592
  %v594 = vpop.f32.mrb[0].mxu0
  %v595 = vpop.f32.mrb[0].mxu0
  %v596 = vadd.f32 0.0, %v595
  %v597 = vpop.f32.mrb[0].mxu0
  %598 = vmatprep.mubr.bf16.mxu0 %v313
  %599 = vmatmul.mubr.bf16.gmra.mrb[0].mxu0 %v312
  %v600 = vpop.f32.mrb[0].mxu0
  %v601 = vadd.f32 0.0, %v600
  %v602 = vpop.f32.mrb[0].mxu0
  %v603 = vpop.f32.mrb[0].mxu0
  %v604 = vadd.f32 0.0, %v603
  %v605 = vpop.f32.mrb[0].mxu0
  %606 = vmatprep.mubr.bf16.mxu0 %v315
  %607 = vmatmul.mubr.bf16.gmra.mrb[0].mxu0 %v314
  %v608 = vpop.f32.mrb[0].mxu0
  %v609 = vadd.f32 0.0, %v608
  %v610 = vpop.f32.mrb[0].mxu0
  %v611 = vpop.f32.mrb[0].mxu0
  %v612 = vadd.f32 0.0, %v611
  %v613 = vpop.f32.mrb[0].mxu0
  %614 = vmatprep.mubr.bf16.mxu0 %v317
  %615 = vmatmul.mubr.bf16.gmra.mrb[0].mxu0 %v316
  %v616 = vpop.f32.mrb[0].mxu0
  %v617 = vadd.f32 0.0, %v616
  %v618 = vpop.f32.mrb[0].mxu0
  %v619 = vpop.f32.mrb[0].mxu0
  %v620 = vadd.f32 0.0, %v619
  %v621 = vpop.f32.mrb[0].mxu0
  %622 = vmatprep.mubr.bf16.mxu0 %v319
  %623 = vmatmul.mubr.bf16.gmra.mrb[0].mxu0 %v318
  %v624 = vpop.f32.mrb[0].mxu0
  %v625 = vadd.f32 0.0, %v624
  %v626 = vpop.f32.mrb[0].mxu0
  %v627 = vpop.f32.mrb[0].mxu0
  %v628 = vadd.f32 0.0, %v627
  %v629 = vpop.f32.mrb[0].mxu0
  %630 = vmatprep.mubr.bf16.mxu0 %v321
  %631 = vmatmul.mubr.bf16.gmra.mrb[0].mxu0 %v320
  %v632 = vpop.f32.mrb[0].mxu0
  %v633 = vadd.f32 0.0, %v632
  %v634 = vpop.f32.mrb[0].mxu0
  %v635 = vpop.f32.mrb[0].mxu0
  %v636 = vadd.f32 0.0, %v635
  %v637 = vpop.f32.mrb[0].mxu0
  %638 = vmatprep.mubr.bf16.mxu0 %v323
  %639 = vmatmul.mubr.bf16.gmra.mrb[0].mxu0 %v322
  %v640 = vpop.f32.mrb[0].mxu0
  %v641 = vadd.f32 0.0, %v640
  %v642 = vpop.f32.mrb[0].mxu0
  %v643 = vpop.f32.mrb[0].mxu0
  %v644 = vadd.f32 0.0, %v643
  %v645 = vpop.f32.mrb[0].mxu0
  %646 = vmatprep.mubr.bf16.mxu0 %v325
  %647 = vmatmul.mubr.bf16.gmra.mrb[0].mxu0 %v324
  %v648 = vpop.f32.mrb[0].mxu0
  %v649 = vadd.f32 0.0, %v648
  %v650 = vpop.f32.mrb[0].mxu0
  %v651 = vpop.f32.mrb[0].mxu0
  %v652 = vadd.f32 0.0, %v651
  %v653 = vpop.f32.mrb[0].mxu0
  %654 = vmatprep.mubr.bf16.mxu0 %v327
  %655 = vmatmul.mubr.bf16.gmra.mrb[0].mxu0 %v326
  %v656 = vpop.f32.mrb[0].mxu0
  %v657 = vadd.f32 0.0, %v656
  %v658 = vpop.f32.mrb[0].mxu0
  %v659 = vpop.f32.mrb[0].mxu0
  %v660 = vadd.f32 0.0, %v659
  %v661 = vpop.f32.mrb[0].mxu0
  %662 = vmatprep.mubr.bf16.mxu0 %v329
  %663 = vmatmul.mubr.bf16.gmra.mrb[0].mxu0 %v328
  %v664 = vpop.f32.mrb[0].mxu0
  %v665 = vadd.f32 0.0, %v664
  %v666 = vpop.f32.mrb[0].mxu0
  %v667 = vpop.f32.mrb[0].mxu0
  %v668 = vadd.f32 0.0, %v667
  %v669 = vpop.f32.mrb[0].mxu0
  %670 = vmatprep.mubr.bf16.mxu0 %v331
  %671 = vmatmul.mubr.bf16.gmra.mrb[0].mxu0 %v330
  %v672 = vpop.f32.mrb[0].mxu0
  %v673 = vadd.f32 0.0, %v672
  %v674 = vpop.f32.mrb[0].mxu0
  %v675 = vpop.f32.mrb[0].mxu0
  %v676 = vadd.f32 0.0, %v675
  %v677 = vpop.f32.mrb[0].mxu0
  %678 = vmatprep.mubr.bf16.mxu0 %v333
  %679 = vmatmul.mubr.bf16.gmra.mrb[0].mxu0 %v332
  %v680 = vpop.f32.mrb[0].mxu0
  %v681 = vadd.f32 0.0, %v680
  %v682 = vpop.f32.mrb[0].mxu0
  %v683 = vpop.f32.mrb[0].mxu0
  %v684 = vadd.f32 0.0, %v683
  %v685 = vpop.f32.mrb[0].mxu0
  %686 = vmatprep.mubr.bf16.mxu0 %v335
  %687 = vmatmul.mubr.bf16.gmra.mrb[0].mxu0 %v334
  %v688 = vpop.f32.mrb[0].mxu0
  %v689 = vadd.f32 0.0, %v688
  %v690 = vpop.f32.mrb[0].mxu0
  %v691 = vpop.f32.mrb[0].mxu0
  %v692 = vadd.f32 0.0, %v691
  %v693 = vpop.f32.mrb[0].mxu0
  %694 = vmatprep.mubr.bf16.mxu0 %v337
  %695 = vmatmul.mubr.bf16.gmra.mrb[0].mxu0 %v336
  %v696 = vpop.f32.mrb[0].mxu0
  %v697 = vadd.f32 0.0, %v696
  %v698 = vpop.f32.mrb[0].mxu0
  %v699 = vpop.f32.mrb[0].mxu0
  %v700 = vadd.f32 0.0, %v699
  %v701 = vpop.f32.mrb[0].mxu0
  %702 = vmatprep.mubr.bf16.mxu0 %v339
  %703 = vmatmul.mubr.bf16.gmra.mrb[0].mxu0 %v338
  %v704 = vpop.f32.mrb[0].mxu0
  %v705 = vadd.f32 0.0, %v704
  %v706 = vpop.f32.mrb[0].mxu0
  %v707 = vpop.f32.mrb[0].mxu0
  %v708 = vadd.f32 0.0, %v707
  %v709 = vpop.f32.mrb[0].mxu0
  %710 = vmatprep.mubr.bf16.mxu0 %v341
  %711 = vmatmul.mubr.bf16.gmra.mrb[0].mxu0 %v340
  %v712 = vpop.f32.mrb[0].mxu0
  %v713 = vadd.f32 0.0, %v712
  %v714 = vpop.f32.mrb[0].mxu0
  %v715 = vpop.f32.mrb[0].mxu0
  %v716 = vadd.f32 0.0, %v715
  %v717 = vpop.f32.mrb[0].mxu0
  %718 = vmatprep.mubr.bf16.mxu0 %v343
  %719 = vmatmul.mubr.bf16.gmra.mrb[0].mxu0 %v342
  %v720 = vpop.f32.mrb[0].mxu0
  %v721 = vadd.f32 0.0, %v720
  %v722 = vpop.f32.mrb[0].mxu0
  %v723 = vpop.f32.mrb[0].mxu0
  %v724 = vadd.f32 0.0, %v723
  %v725 = vpop.f32.mrb[0].mxu0
  %726 = vmatprep.mubr.bf16.mxu0 %v345
  %727 = vmatmul.mubr.bf16.gmra.mrb[0].mxu0 %v344
  %v728 = vpop.f32.mrb[0].mxu0
  %v729 = vadd.f32 0.0, %v728
  %v730 = vpop.f32.mrb[0].mxu0
  %v731 = vpop.f32.mrb[0].mxu0
  %v732 = vadd.f32 0.0, %v731
  %v733 = vpop.f32.mrb[0].mxu0
  %734 = vmatprep.mubr.bf16.mxu0 %v347
  %735 = vmatmul.mubr.bf16.gmra.mrb[0].mxu0 %v346
  %v736 = vpop.f32.mrb[0].mxu0
  %v737 = vadd.f32 0.0, %v736
  %v738 = vpop.f32.mrb[0].mxu0
  %v739 = vpop.f32.mrb[0].mxu0
  %v740 = vadd.f32 0.0, %v739
  %v741 = vpop.f32.mrb[0].mxu0
  %742 = vmatprep.mubr.bf16.mxu0 %v349
  %743 = vmatmul.mubr.bf16.gmra.mrb[0].mxu0 %v348
  %v744 = vpop.f32.mrb[0].mxu0
  %v745 = vadd.f32 0.0, %v744
  %v746 = vpop.f32.mrb[0].mxu0
  %v747 = vpop.f32.mrb[0].mxu0
  %v748 = vadd.f32 0.0, %v747
  %v749 = vpop.f32.mrb[0].mxu0
  %750 = vmatprep.mubr.bf16.mxu0 %v351
  %751 = vmatmul.mubr.bf16.gmra.mrb[0].mxu0 %v350
  %v752 = vpop.f32.mrb[0].mxu0
  %v753 = vadd.f32 0.0, %v752
  %v754 = vpop.f32.mrb[0].mxu0
  %v755 = vpop.f32.mrb[0].mxu0
  %v756 = vadd.f32 0.0, %v755
  %v757 = vpop.f32.mrb[0].mxu0
  %758 = vmatprep.mubr.bf16.mxu0 %v353
  %759 = vmatmul.mubr.bf16.gmra.mrb[0].mxu0 %v352
  %v760 = vpop.f32.mrb[0].mxu0
  %v761 = vadd.f32 0.0, %v760
  %v762 = vpop.f32.mrb[0].mxu0
  %v763 = vpop.f32.mrb[0].mxu0
  %v764 = vadd.f32 0.0, %v763
  %v765 = vpop.f32.mrb[0].mxu0
  %766 = vmatprep.mubr.bf16.mxu0 %v355
  %767 = vmatmul.mubr.bf16.gmra.mrb[0].mxu0 %v354
  %v768 = vpop.f32.mrb[0].mxu0
  %v769 = vadd.f32 0.0, %v768
  %v770 = vpop.f32.mrb[0].mxu0
  %v771 = vpop.f32.mrb[0].mxu0
  %v772 = vadd.f32 0.0, %v771
  %v773 = vpop.f32.mrb[0].mxu0
  %774 = vmatprep.mubr.bf16.mxu0 %v357
  %775 = vmatmul.mubr.bf16.gmra.mrb[0].mxu0 %v356
  %v776 = vpop.f32.mrb[0].mxu0
  %v777 = vadd.f32 0.0, %v776
  %v778 = vpop.f32.mrb[0].mxu0
  %v779 = vpop.f32.mrb[0].mxu0
  %v780 = vadd.f32 0.0, %v779
  %v781 = vpop.f32.mrb[0].mxu0
  %782 = vmatprep.mubr.bf16.mxu0 %v359
  %783 = vmatmul.mubr.bf16.gmra.mrb[0].mxu0 %v358
  %v784 = vpop.f32.mrb[0].mxu0
  %v785 = vadd.f32 0.0, %v784
  %v786 = vpop.f32.mrb[0].mxu0
  %v787 = vpop.f32.mrb[0].mxu0
  %v788 = vadd.f32 0.0, %v787
  %v789 = vpop.f32.mrb[0].mxu0
  %790 = vmatprep.mubr.bf16.mxu0 %v361
  %791 = vmatmul.mubr.bf16.gmra.mrb[0].mxu0 %v360
  %v792 = vpop.f32.mrb[0].mxu0
  %v793 = vadd.f32 0.0, %v792
  %v794 = vpop.f32.mrb[0].mxu0
  %v795 = vpop.f32.mrb[0].mxu0
  %v796 = vadd.f32 0.0, %v795
  %v797 = vpop.f32.mrb[0].mxu0
  %798 = vmatprep.mubr.bf16.mxu0 %v363
  %799 = vmatmul.mubr.bf16.gmra.mrb[0].mxu0 %v362
  %v800 = vpop.f32.mrb[0].mxu0
  %v801 = vadd.f32 0.0, %v800
  %v802 = vpop.f32.mrb[0].mxu0
  %v803 = vpop.f32.mrb[0].mxu0
  %v804 = vadd.f32 0.0, %v803
  %v805 = vpop.f32.mrb[0].mxu0
  %806 = vmatprep.mubr.bf16.mxu0 %v365
  %807 = vmatmul.mubr.bf16.gmra.mrb[0].mxu0 %v364
  %v808 = vpop.f32.mrb[0].mxu0
  %v809 = vadd.f32 0.0, %v808
  %v810 = vpop.f32.mrb[0].mxu0
  %v811 = vpop.f32.mrb[0].mxu0
  %v812 = vadd.f32 0.0, %v811
  %v813 = vpop.f32.mrb[0].mxu0
  %814 = vdwg.mxu0
  %v815 = vpack.c.bf16 %v564, %v561
  %v816 = vpack.c.bf16 %v572, %v569
  %v817 = vpack.c.bf16 %v580, %v577
  %v818 = vpack.c.bf16 %v588, %v585
  %v819 = vpack.c.bf16 %v596, %v593
  %v820 = vpack.c.bf16 %v604, %v601
  %v821 = vpack.c.bf16 %v612, %v609
  %v822 = vpack.c.bf16 %v620, %v617
  %v823 = vpack.c.bf16 %v628, %v625
  %v824 = vpack.c.bf16 %v636, %v633
  %v825 = vpack.c.bf16 %v644, %v641
  %v826 = vpack.c.bf16 %v652, %v649
  %v827 = vpack.c.bf16 %v660, %v657
  %v828 = vpack.c.bf16 %v668, %v665
  %v829 = vpack.c.bf16 %v676, %v673
  %v830 = vpack.c.bf16 %v684, %v681
  %v831 = vpack.c.bf16 %v692, %v689
  %v832 = vpack.c.bf16 %v700, %v697
  %v833 = vpack.c.bf16 %v708, %v705
  %v834 = vpack.c.bf16 %v716, %v713
  %v835 = vpack.c.bf16 %v724, %v721
  %v836 = vpack.c.bf16 %v732, %v729
  %v837 = vpack.c.bf16 %v740, %v737
  %v838 = vpack.c.bf16 %v748, %v745
  %v839 = vpack.c.bf16 %v756, %v753
  %v840 = vpack.c.bf16 %v764, %v761
  %v841 = vpack.c.bf16 %v772, %v769
  %v842 = vpack.c.bf16 %v780, %v777
  %v843 = vpack.c.bf16 %v788, %v785
  %v844 = vpack.c.bf16 %v796, %v793
  %v845 = vpack.c.bf16 %v804, %v801
  %v846 = vpack.c.bf16 %v812, %v809
  %v879 = vunpack.c.l.b16 %v815
  %v880 = vunpack.c.h.b16 %v815
  %v881 = vunpack.c.l.b16 %v816
  %v882 = vunpack.c.h.b16 %v816
  %v883 = vunpack.c.l.b16 %v817
  %v884 = vunpack.c.h.b16 %v817
  %v885 = vunpack.c.l.b16 %v818
  %v886 = vunpack.c.h.b16 %v818
  %v887 = vunpack.c.l.b16 %v819
  %v888 = vunpack.c.h.b16 %v819
  %v889 = vunpack.c.l.b16 %v820
  %v890 = vunpack.c.h.b16 %v820
  %v891 = vunpack.c.l.b16 %v821
  %v892 = vunpack.c.h.b16 %v821
  %v893 = vunpack.c.l.b16 %v822
  %v894 = vunpack.c.h.b16 %v822
  %v895 = vunpack.c.l.b16 %v823
  %v896 = vunpack.c.h.b16 %v823
  %v897 = vunpack.c.l.b16 %v824
  %v898 = vunpack.c.h.b16 %v824
  %v899 = vunpack.c.l.b16 %v825
  %v900 = vunpack.c.h.b16 %v825
  %v901 = vunpack.c.l.b16 %v826
  %v902 = vunpack.c.h.b16 %v826
  %v903 = vunpack.c.l.b16 %v827
  %v904 = vunpack.c.h.b16 %v827
  %v905 = vunpack.c.l.b16 %v828
  %v906 = vunpack.c.h.b16 %v828
  %v907 = vunpack.c.l.b16 %v829
  %v908 = vunpack.c.h.b16 %v829
  %v909 = vunpack.c.l.b16 %v830
  %v910 = vunpack.c.h.b16 %v830
  %v911 = vunpack.c.l.b16 %v831
  %v912 = vunpack.c.h.b16 %v831
  %v913 = vunpack.c.l.b16 %v832
  %v914 = vunpack.c.h.b16 %v832
  %v915 = vunpack.c.l.b16 %v833
  %v916 = vunpack.c.h.b16 %v833
  %v917 = vunpack.c.l.b16 %v834
  %v918 = vunpack.c.h.b16 %v834
  %v919 = vunpack.c.l.b16 %v835
  %v920 = vunpack.c.h.b16 %v835
  %v921 = vunpack.c.l.b16 %v836
  %v922 = vunpack.c.h.b16 %v836
  %v923 = vunpack.c.l.b16 %v837
  %v924 = vunpack.c.h.b16 %v837
  %v925 = vunpack.c.l.b16 %v838
  %v926 = vunpack.c.h.b16 %v838
  %v927 = vunpack.c.l.b16 %v839
  %v928 = vunpack.c.h.b16 %v839
  %v929 = vunpack.c.l.b16 %v840
  %v930 = vunpack.c.h.b16 %v840
  %v931 = vunpack.c.l.b16 %v841
  %v932 = vunpack.c.h.b16 %v841
  %v933 = vunpack.c.l.b16 %v842
  %v934 = vunpack.c.h.b16 %v842
  %v935 = vunpack.c.l.b16 %v843
  %v936 = vunpack.c.h.b16 %v843
  %v937 = vunpack.c.l.b16 %v844
  %v938 = vunpack.c.h.b16 %v844
  %v939 = vunpack.c.l.b16 %v845
  %v940 = vunpack.c.h.b16 %v845
  %v941 = vunpack.c.l.b16 %v846
  %v942 = vunpack.c.h.b16 %v846
  %v943 = vpack.c.b16 %v879, %v879
  %v944 = vpack.c.b16 %v880, %v880
  %v945 = vpack.c.b16 %v881, %v881
  %v946 = vpack.c.b16 %v882, %v882
  %v947 = vpack.c.b16 %v883, %v883
  %v948 = vpack.c.b16 %v884, %v884
  %v949 = vpack.c.b16 %v885, %v885
  %v950 = vpack.c.b16 %v886, %v886
  %v951 = vpack.c.b16 %v887, %v887
  %v952 = vpack.c.b16 %v888, %v888
  %v953 = vpack.c.b16 %v889, %v889
  %v954 = vpack.c.b16 %v890, %v890
  %v955 = vpack.c.b16 %v891, %v891
  %v956 = vpack.c.b16 %v892, %v892
  %v957 = vpack.c.b16 %v893, %v893
  %v958 = vpack.c.b16 %v894, %v894
  %v959 = vpack.c.b16 %v895, %v895
  %v960 = vpack.c.b16 %v896, %v896
  %v961 = vpack.c.b16 %v897, %v897
  %v962 = vpack.c.b16 %v898, %v898
  %v963 = vpack.c.b16 %v899, %v899
  %v964 = vpack.c.b16 %v900, %v900
  %v965 = vpack.c.b16 %v901, %v901
  %v966 = vpack.c.b16 %v902, %v902
  %v967 = vpack.c.b16 %v903, %v903
  %v968 = vpack.c.b16 %v904, %v904
  %v969 = vpack.c.b16 %v905, %v905
  %v970 = vpack.c.b16 %v906, %v906
  %v971 = vpack.c.b16 %v907, %v907
  %v972 = vpack.c.b16 %v908, %v908
  %v973 = vpack.c.b16 %v909, %v909
  %v974 = vpack.c.b16 %v910, %v910
  %v975 = vpack.c.b16 %v911, %v911
  %v976 = vpack.c.b16 %v912, %v912
  %v977 = vpack.c.b16 %v913, %v913
  %v978 = vpack.c.b16 %v914, %v914
  %v979 = vpack.c.b16 %v915, %v915
  %v980 = vpack.c.b16 %v916, %v916
  %v981 = vpack.c.b16 %v917, %v917
  %v982 = vpack.c.b16 %v918, %v918
  %v983 = vpack.c.b16 %v919, %v919
  %v984 = vpack.c.b16 %v920, %v920
  %v985 = vpack.c.b16 %v921, %v921
  %v986 = vpack.c.b16 %v922, %v922
  %v987 = vpack.c.b16 %v923, %v923
  %v988 = vpack.c.b16 %v924, %v924
  %v989 = vpack.c.b16 %v925, %v925
  %v990 = vpack.c.b16 %v926, %v926
  %v991 = vpack.c.b16 %v927, %v927
  %v992 = vpack.c.b16 %v928, %v928
  %v993 = vpack.c.b16 %v929, %v929
  %v994 = vpack.c.b16 %v930, %v930
  %v995 = vpack.c.b16 %v931, %v931
  %v996 = vpack.c.b16 %v932, %v932
  %v997 = vpack.c.b16 %v933, %v933
  %v998 = vpack.c.b16 %v934, %v934
  %v999 = vpack.c.b16 %v935, %v935
  %v1000 = vpack.c.b16 %v936, %v936
  %v1001 = vpack.c.b16 %v937, %v937
  %v1002 = vpack.c.b16 %v938, %v938
  %v1003 = vpack.c.b16 %v939, %v939
  %v1004 = vpack.c.b16 %v940, %v940
  %v1005 = vpack.c.b16 %v941, %v941
  %v1006 = vpack.c.b16 %v942, %v942
  %1071 = vst [vmem:[%s2] sm:$0xf] %v943
  %1072 = vst [vmem:[%s2 + $0x4] sm:$0xf] %v944
  %1073 = vst [vmem:[%s2 + $0x8] sm:$0xf] %v945
  %1074 = vst [vmem:[%s2 + $0xc] sm:$0xf] %v946
  %1075 = vst [vmem:[%s2 + $0x10] sm:$0xf] %v947
  %1076 = vst [vmem:[%s2 + $0x14] sm:$0xf] %v948
  %1077 = vst [vmem:[%s2 + $0x18] sm:$0xf] %v949
  %1078 = vst [vmem:[%s2 + $0x1c] sm:$0xf] %v950
  %1079 = vst [vmem:[%s2 + $0x20] sm:$0xf] %v951
  %1080 = vst [vmem:[%s2 + $0x24] sm:$0xf] %v952
  %1081 = vst [vmem:[%s2 + $0x28] sm:$0xf] %v953
  %1082 = vst [vmem:[%s2 + $0x2c] sm:$0xf] %v954
  %1083 = vst [vmem:[%s2 + $0x30] sm:$0xf] %v955
  %1084 = vst [vmem:[%s2 + $0x34] sm:$0xf] %v956
  %1085 = vst [vmem:[%s2 + $0x38] sm:$0xf] %v957
  %1086 = vst [vmem:[%s2 + $0x3c] sm:$0xf] %v958
  %1087 = vst [vmem:[%s2 + $0x40] sm:$0xf] %v959
  %1088 = vst [vmem:[%s2 + $0x44] sm:$0xf] %v960
  %1089 = vst [vmem:[%s2 + $0x48] sm:$0xf] %v961
  %1090 = vst [vmem:[%s2 + $0x4c] sm:$0xf] %v962
  %1091 = vst [vmem:[%s2 + $0x50] sm:$0xf] %v963
  %1092 = vst [vmem:[%s2 + $0x54] sm:$0xf] %v964
  %1093 = vst [vmem:[%s2 + $0x58] sm:$0xf] %v965
  %1094 = vst [vmem:[%s2 + $0x5c] sm:$0xf] %v966
  %1095 = vst [vmem:[%s2 + $0x60] sm:$0xf] %v967
  %1096 = vst [vmem:[%s2 + $0x64] sm:$0xf] %v968
  %1097 = vst [vmem:[%s2 + $0x68] sm:$0xf] %v969
  %1098 = vst [vmem:[%s2 + $0x6c] sm:$0xf] %v970
  %1099 = vst [vmem:[%s2 + $0x70] sm:$0xf] %v971
  %1100 = vst [vmem:[%s2 + $0x74] sm:$0xf] %v972
  %1101 = vst [vmem:[%s2 + $0x78] sm:$0xf] %v973
  %1102 = vst [vmem:[%s2 + $0x7c] sm:$0xf] %v974
  %1103 = vst [vmem:[%s2 + $0x80] sm:$0xf] %v975
  %1104 = vst [vmem:[%s2 + $0x84] sm:$0xf] %v976
  %1105 = vst [vmem:[%s2 + $0x88] sm:$0xf] %v977
  %1106 = vst [vmem:[%s2 + $0x8c] sm:$0xf] %v978
  %1107 = vst [vmem:[%s2 + $0x90] sm:$0xf] %v979
  %1108 = vst [vmem:[%s2 + $0x94] sm:$0xf] %v980
  %1109 = vst [vmem:[%s2 + $0x98] sm:$0xf] %v981
  %1110 = vst [vmem:[%s2 + $0x9c] sm:$0xf] %v982
  %1111 = vst [vmem:[%s2 + $0xa0] sm:$0xf] %v983
  %1112 = vst [vmem:[%s2 + $0xa4] sm:$0xf] %v984
  %1113 = vst [vmem:[%s2 + $0xa8] sm:$0xf] %v985
  %1114 = vst [vmem:[%s2 + $0xac] sm:$0xf] %v986
  %1115 = vst [vmem:[%s2 + $0xb0] sm:$0xf] %v987
  %1116 = vst [vmem:[%s2 + $0xb4] sm:$0xf] %v988
  %1117 = vst [vmem:[%s2 + $0xb8] sm:$0xf] %v989
  %1118 = vst [vmem:[%s2 + $0xbc] sm:$0xf] %v990
  %1119 = vst [vmem:[%s2 + $0xc0] sm:$0xf] %v991
  %1120 = vst [vmem:[%s2 + $0xc4] sm:$0xf] %v992
  %1121 = vst [vmem:[%s2 + $0xc8] sm:$0xf] %v993
  %1122 = vst [vmem:[%s2 + $0xcc] sm:$0xf] %v994
  %1123 = vst [vmem:[%s2 + $0xd0] sm:$0xf] %v995
  %1124 = vst [vmem:[%s2 + $0xd4] sm:$0xf] %v996
  %1125 = vst [vmem:[%s2 + $0xd8] sm:$0xf] %v997
  %1126 = vst [vmem:[%s2 + $0xdc] sm:$0xf] %v998
  %1127 = vst [vmem:[%s2 + $0xe0] sm:$0xf] %v999
  %1128 = vst [vmem:[%s2 + $0xe4] sm:$0xf] %v1000
  %1129 = vst [vmem:[%s2 + $0xe8] sm:$0xf] %v1001
  %1130 = vst [vmem:[%s2 + $0xec] sm:$0xf] %v1002
  %1131 = vst [vmem:[%s2 + $0xf0] sm:$0xf] %v1003
  %1132 = vst [vmem:[%s2 + $0xf4] sm:$0xf] %v1004
  %1133 = vst [vmem:[%s2 + $0xf8] sm:$0xf] %v1005
  %1134 = vst [vmem:[%s2 + $0xfc] sm:$0xf] %v1006
  %1135 = vst [vmem:[%s3] sm:$0xff] 0.0
  %v1136 = vadd.f32 %v561, %v564
  %v1137 = vadd.f32 %v1136, %v569
  %v1138 = vadd.f32 %v1137, %v572
  %v1139 = vadd.f32 %v1138, %v577
  %v1140 = vadd.f32 %v1139, %v580
  %v1141 = vadd.f32 %v1140, %v585
  %v1142 = vadd.f32 %v1141, %v588
  %v1143 = vadd.f32 %v1142, %v593
  %v1144 = vadd.f32 %v1143, %v596
  %v1145 = vadd.f32 %v1144, %v601
  %v1146 = vadd.f32 %v1145, %v604
  %v1147 = vadd.f32 %v1146, %v609
  %v1148 = vadd.f32 %v1147, %v612
  %v1149 = vadd.f32 %v1148, %v617
  %v1150 = vadd.f32 %v1149, %v620
  %v1151 = vadd.f32 %v1150, %v625
  %v1152 = vadd.f32 %v1151, %v628
  %v1153 = vadd.f32 %v1152, %v633
  %v1154 = vadd.f32 %v1153, %v636
  %v1155 = vadd.f32 %v1154, %v641
  %v1156 = vadd.f32 %v1155, %v644
  %v1157 = vadd.f32 %v1156, %v649
  %v1158 = vadd.f32 %v1157, %v652
  %v1159 = vadd.f32 %v1158, %v657
  %v1160 = vadd.f32 %v1159, %v660
  %v1161 = vadd.f32 %v1160, %v665
  %v1162 = vadd.f32 %v1161, %v668
  %v1163 = vadd.f32 %v1162, %v673
  %v1164 = vadd.f32 %v1163, %v676
  %v1165 = vadd.f32 %v1164, %v681
  %v1166 = vadd.f32 %v1165, %v684
  %v1167 = vadd.f32 %v1166, %v689
  %v1168 = vadd.f32 %v1167, %v692
  %v1169 = vadd.f32 %v1168, %v697
  %v1170 = vadd.f32 %v1169, %v700
  %v1171 = vadd.f32 %v1170, %v705
  %v1172 = vadd.f32 %v1171, %v708
  %v1173 = vadd.f32 %v1172, %v713
  %v1174 = vadd.f32 %v1173, %v716
  %v1175 = vadd.f32 %v1174, %v721
  %v1176 = vadd.f32 %v1175, %v724
  %v1177 = vadd.f32 %v1176, %v729
  %v1178 = vadd.f32 %v1177, %v732
  %v1179 = vadd.f32 %v1178, %v737
  %v1180 = vadd.f32 %v1179, %v740
  %v1181 = vadd.f32 %v1180, %v745
  %v1182 = vadd.f32 %v1181, %v748
  %v1183 = vadd.f32 %v1182, %v753
  %v1184 = vadd.f32 %v1183, %v756
  %v1185 = vadd.f32 %v1184, %v761
  %v1186 = vadd.f32 %v1185, %v764
  %v1187 = vadd.f32 %v1186, %v769
  %v1188 = vadd.f32 %v1187, %v772
  %v1189 = vadd.f32 %v1188, %v777
  %v1190 = vadd.f32 %v1189, %v780
  %v1191 = vadd.f32 %v1190, %v785
  %v1192 = vadd.f32 %v1191, %v788
  %v1193 = vadd.f32 %v1192, %v793
  %v1194 = vadd.f32 %v1193, %v796
  %v1195 = vadd.f32 %v1194, %v801
  %v1196 = vadd.f32 %v1195, %v804
  %v1197 = vadd.f32 %v1196, %v809
  %v1198 = vadd.f32 %v1197, %v812
  %v1199 = vrot.slane %v1198, 4
  %v1200 = vadd.f32 %v1198, %v1199
  %v1201 = vrot.slane %v1200, 2
  %v1202 = vadd.f32 %v1200, %v1201
  %v1203 = vrot.slane %v1202, 1
  %v1204 = vadd.f32 %v1202, %v1203
  %1205 = vst [vmem:[%s3] sm:$0x1] %v1204
  %v1206 = vmul.f32 %v561, %v561
  %v1207 = vmul.f32 %v564, %v564
  %v1208 = vmul.f32 %v569, %v569
  %v1209 = vmul.f32 %v572, %v572
  %v1210 = vmul.f32 %v577, %v577
  %v1211 = vmul.f32 %v580, %v580
  %v1212 = vmul.f32 %v585, %v585
  %v1213 = vmul.f32 %v588, %v588
  %v1214 = vmul.f32 %v593, %v593
  %v1215 = vmul.f32 %v596, %v596
  %v1216 = vmul.f32 %v601, %v601
  %v1217 = vmul.f32 %v604, %v604
  %v1218 = vmul.f32 %v609, %v609
  %v1219 = vmul.f32 %v612, %v612
  %v1220 = vmul.f32 %v617, %v617
  %v1221 = vmul.f32 %v620, %v620
  %v1222 = vmul.f32 %v625, %v625
  %v1223 = vmul.f32 %v628, %v628
  %v1224 = vmul.f32 %v633, %v633
  %v1225 = vmul.f32 %v636, %v636
  %v1226 = vmul.f32 %v641, %v641
  %v1227 = vmul.f32 %v644, %v644
  %v1228 = vmul.f32 %v649, %v649
  %v1229 = vmul.f32 %v652, %v652
  %v1230 = vmul.f32 %v657, %v657
  %v1231 = vmul.f32 %v660, %v660
  %v1232 = vmul.f32 %v665, %v665
  %v1233 = vmul.f32 %v668, %v668
  %v1234 = vmul.f32 %v673, %v673
  %v1235 = vmul.f32 %v676, %v676
  %v1236 = vmul.f32 %v681, %v681
  %v1237 = vmul.f32 %v684, %v684
  %v1238 = vmul.f32 %v689, %v689
  %v1239 = vmul.f32 %v692, %v692
  %v1240 = vmul.f32 %v697, %v697
  %v1241 = vmul.f32 %v700, %v700
  %v1242 = vmul.f32 %v705, %v705
  %v1243 = vmul.f32 %v708, %v708
  %v1244 = vmul.f32 %v713, %v713
  %v1245 = vmul.f32 %v716, %v716
  %v1246 = vmul.f32 %v721, %v721
  %v1247 = vmul.f32 %v724, %v724
  %v1248 = vmul.f32 %v729, %v729
  %v1249 = vmul.f32 %v732, %v732
  %v1250 = vmul.f32 %v737, %v737
  %v1251 = vmul.f32 %v740, %v740
  %v1252 = vmul.f32 %v745, %v745
  %v1253 = vmul.f32 %v748, %v748
  %v1254 = vmul.f32 %v753, %v753
  %v1255 = vmul.f32 %v756, %v756
  %v1256 = vmul.f32 %v761, %v761
  %v1257 = vmul.f32 %v764, %v764
  %v1258 = vmul.f32 %v769, %v769
  %v1259 = vmul.f32 %v772, %v772
  %v1260 = vmul.f32 %v777, %v777
  %v1261 = vmul.f32 %v780, %v780
  %v1262 = vmul.f32 %v785, %v785
  %v1263 = vmul.f32 %v788, %v788
  %v1264 = vmul.f32 %v793, %v793
  %v1265 = vmul.f32 %v796, %v796
  %v1266 = vmul.f32 %v801, %v801
  %v1267 = vmul.f32 %v804, %v804
  %v1268 = vmul.f32 %v809, %v809
  %v1269 = vmul.f32 %v812, %v812
  %v1270 = vadd.f32 %v1206, %v1207
  %v1271 = vadd.f32 %v1270, %v1208
  %v1272 = vadd.f32 %v1271, %v1209
  %v1273 = vadd.f32 %v1272, %v1210
  %v1274 = vadd.f32 %v1273, %v1211
  %v1275 = vadd.f32 %v1274, %v1212
  %v1276 = vadd.f32 %v1275, %v1213
  %v1277 = vadd.f32 %v1276, %v1214
  %v1278 = vadd.f32 %v1277, %v1215
  %v1279 = vadd.f32 %v1278, %v1216
  %v1280 = vadd.f32 %v1279, %v1217
  %v1281 = vadd.f32 %v1280, %v1218
  %v1282 = vadd.f32 %v1281, %v1219
  %v1283 = vadd.f32 %v1282, %v1220
  %v1284 = vadd.f32 %v1283, %v1221
  %v1285 = vadd.f32 %v1284, %v1222
  %v1286 = vadd.f32 %v1285, %v1223
  %v1287 = vadd.f32 %v1286, %v1224
  %v1288 = vadd.f32 %v1287, %v1225
  %v1289 = vadd.f32 %v1288, %v1226
  %v1290 = vadd.f32 %v1289, %v1227
  %v1291 = vadd.f32 %v1290, %v1228
  %v1292 = vadd.f32 %v1291, %v1229
  %v1293 = vadd.f32 %v1292, %v1230
  %v1294 = vadd.f32 %v1293, %v1231
  %v1295 = vadd.f32 %v1294, %v1232
  %v1296 = vadd.f32 %v1295, %v1233
  %v1297 = vadd.f32 %v1296, %v1234
  %v1298 = vadd.f32 %v1297, %v1235
  %v1299 = vadd.f32 %v1298, %v1236
  %v1300 = vadd.f32 %v1299, %v1237
  %v1301 = vadd.f32 %v1300, %v1238
  %v1302 = vadd.f32 %v1301, %v1239
  %v1303 = vadd.f32 %v1302, %v1240
  %v1304 = vadd.f32 %v1303, %v1241
  %v1305 = vadd.f32 %v1304, %v1242
  %v1306 = vadd.f32 %v1305, %v1243
  %v1307 = vadd.f32 %v1306, %v1244
  %v1308 = vadd.f32 %v1307, %v1245
  %v1309 = vadd.f32 %v1308, %v1246
  %v1310 = vadd.f32 %v1309, %v1247
  %v1311 = vadd.f32 %v1310, %v1248
  %v1312 = vadd.f32 %v1311, %v1249
  %v1313 = vadd.f32 %v1312, %v1250
  %v1314 = vadd.f32 %v1313, %v1251
  %v1315 = vadd.f32 %v1314, %v1252
  %v1316 = vadd.f32 %v1315, %v1253
  %v1317 = vadd.f32 %v1316, %v1254
  %v1318 = vadd.f32 %v1317, %v1255
  %v1319 = vadd.f32 %v1318, %v1256
  %v1320 = vadd.f32 %v1319, %v1257
  %v1321 = vadd.f32 %v1320, %v1258
  %v1322 = vadd.f32 %v1321, %v1259
  %v1323 = vadd.f32 %v1322, %v1260
  %v1324 = vadd.f32 %v1323, %v1261
  %v1325 = vadd.f32 %v1324, %v1262
  %v1326 = vadd.f32 %v1325, %v1263
  %v1327 = vadd.f32 %v1326, %v1264
  %v1328 = vadd.f32 %v1327, %v1265
  %v1329 = vadd.f32 %v1328, %v1266
  %v1330 = vadd.f32 %v1329, %v1267
  %v1331 = vadd.f32 %v1330, %v1268
  %v1332 = vadd.f32 %v1331, %v1269
  %v1333 = vrot.slane %v1332, 4
  %v1334 = vadd.f32 %v1332, %v1333
  %v1335 = vrot.slane %v1334, 2
  %v1336 = vadd.f32 %v1334, %v1335
  %v1337 = vrot.slane %v1336, 1
  %v1338 = vadd.f32 %v1336, %v1337
  %1339 = vst [vmem:[%s3 + $0x1] sm:$0x1] %v1338
  // Predicated region
  $region10: #{discriminator_forward.9} parent=0 // pred_check
    _
  $region11: #{discriminator_forward.9} parent=0 // pred_check_branch
    %1341 = sbr.rel (0) target = $region13
  $region12: #{discriminator_forward.9} parent=0 // pred_region
    _
  $region13: #{discriminator_forward.9} parent=0 // pred_fallthru
    _
  // Predicated region
  $region14: #{discriminator_forward.9} parent=0 // pred_check
    _
  $region15: #{discriminator_forward.9} parent=0 // pred_check_branch
    %1343 = sbr.rel (0) target = $region17
  $region16: #{discriminator_forward.9} parent=0 // pred_region
    _
  $region17: #{discriminator_forward.9} parent=0 // pred_fallthru
    _
  // Predicated region
  $region18: #{discriminator_forward.9} parent=0 // pred_check
    _
  $region19: #{discriminator_forward.9} parent=0 // pred_check_branch
    %1345 = sbr.rel (0) target = $region21
  $region20: #{discriminator_forward.9} parent=0 // pred_region
    _
  $region21: #{discriminator_forward.9} parent=0 // pred_fallthru
    _
  // Predicated region
  $region22: #{discriminator_forward.9} parent=0 // pred_check
    _
  $region23: #{discriminator_forward.9} parent=0 // pred_check_branch
    %1347 = sbr.rel (0) target = $region25
  $region24: #{discriminator_forward.9} parent=0 // pred_region
    _
  $region25: #{discriminator_forward.9} parent=0 // pred_fallthru
    _

// kernel: discriminator_forward.12
$region0: #{discriminator_forward.12}
  #allocation0 [shape = 'u32[]', space=smem, size = 0x4, offset = 0x4, fixed_abs, tag = 'smem constant byte address 0x4 - core index']
  #allocation1 [shape = 'u32[144,128]{1,0:T(1,128)}', space=vmem, size = 0x12000, scoped, tag = 'internal scratch']
  %s0 = inlined_call_operand.vmem [shape: bf16[128,128], index: 0, kind: input, shape index: {}, may-alias: {0,4}]
  %s1 = inlined_call_operand.vmem [shape: f32[8,128], index: 1, kind: input, shape index: {}]
  %s2 = inlined_call_operand.vmem [shape: f32[1,128], index: 2, kind: input, shape index: {}]
  %s3 = inlined_call_operand.vmem [shape: f32[1,128], index: 3, kind: input, shape index: {}]
  %s4 = inlined_call_operand.vmem [shape: bf16[128,128], index: 4, kind: output, shape index: {}, may-alias: {0,4}]
  %s5 = sld [smem:[#allocation0]]
  $region26: #{discriminator_forward.12} parent=0
    _
  %s7 = ssub.s32 1, %s5
  %s8 = scalar_select 0, %s7, %s5
  // Predicated region
  $region2: #{discriminator_forward.12} parent=0 // pred_check
    _
  $region3: #{discriminator_forward.12} parent=0 // pred_check_branch
    %10 = sbr.rel (0) target = $region5
  $region4: #{discriminator_forward.12} parent=0 // pred_region
    _
  $region5: #{discriminator_forward.12} parent=0 // pred_fallthru
    _
  // Predicated region
  $region6: #{discriminator_forward.12} parent=0 // pred_check
    _
  $region7: #{discriminator_forward.12} parent=0 // pred_check_branch
    %12 = sbr.rel (0) target = $region9
  $region8: #{discriminator_forward.12} parent=0 // pred_region
    _
  $region9: #{discriminator_forward.12} parent=0 // pred_fallthru
    _
  // Predicated region
  $region10: #{discriminator_forward.12} parent=0 // pred_check
    _
  $region11: #{discriminator_forward.12} parent=0 // pred_check_branch
    %14 = sbr.rel (0) target = $region13
  $region12: #{discriminator_forward.12} parent=0 // pred_region
    _
  $region13: #{discriminator_forward.12} parent=0 // pred_fallthru
    _
  // Predicated region
  $region14: #{discriminator_forward.12} parent=0 // pred_check
    _
  $region15: #{discriminator_forward.12} parent=0 // pred_check_branch
    %16 = sbr.rel (0) target = $region17
  $region16: #{discriminator_forward.12} parent=0 // pred_region
    _
  $region17: #{discriminator_forward.12} parent=0 // pred_fallthru
    _
  %v17 = vld [vmem:[%s0] sm:$0xf]
  %v18 = vld [vmem:[%s0 + $0x4] sm:$0xf]
  %v19 = vld [vmem:[%s0 + $0x8] sm:$0xf]
  %v20 = vld [vmem:[%s0 + $0xc] sm:$0xf]
  %v21 = vld [vmem:[%s0 + $0x10] sm:$0xf]
  %v22 = vld [vmem:[%s0 + $0x14] sm:$0xf]
  %v23 = vld [vmem:[%s0 + $0x18] sm:$0xf]
  %v24 = vld [vmem:[%s0 + $0x1c] sm:$0xf]
  %v25 = vld [vmem:[%s0 + $0x20] sm:$0xf]
  %v26 = vld [vmem:[%s0 + $0x24] sm:$0xf]
  %v27 = vld [vmem:[%s0 + $0x28] sm:$0xf]
  %v28 = vld [vmem:[%s0 + $0x2c] sm:$0xf]
  %v29 = vld [vmem:[%s0 + $0x30] sm:$0xf]
  %v30 = vld [vmem:[%s0 + $0x34] sm:$0xf]
  %v31 = vld [vmem:[%s0 + $0x38] sm:$0xf]
  %v32 = vld [vmem:[%s0 + $0x3c] sm:$0xf]
  %v33 = vunpack.c.l.bf16 %v17
  %v34 = vunpack.c.l.bf16 %v18
  %v35 = vunpack.c.l.bf16 %v19
  %v36 = vunpack.c.l.bf16 %v20
  %v37 = vunpack.c.l.bf16 %v21
  %v38 = vunpack.c.l.bf16 %v22
  %v39 = vunpack.c.l.bf16 %v23
  %v40 = vunpack.c.l.bf16 %v24
  %v41 = vunpack.c.l.bf16 %v25
  %v42 = vunpack.c.l.bf16 %v26
  %v43 = vunpack.c.l.bf16 %v27
  %v44 = vunpack.c.l.bf16 %v28
  %v45 = vunpack.c.l.bf16 %v29
  %v46 = vunpack.c.l.bf16 %v30
  %v47 = vunpack.c.l.bf16 %v31
  %v48 = vunpack.c.l.bf16 %v32
  %v49 = vld [vmem:[%s1] sm:$0x1]
  %v50 = vmul.f32 %v49, 0.0078125
  %v51 = vld [vmem:[%s1 + $0x1] sm:$0x1]
  %v52 = vmul.f32 %v51, 0.0078125
  %v53 = vmul.f32 %v50, %v50
  %v54 = vsub.f32 %v52, %v53
  %v55 = vmax.f32 %v54, 0.0
  %v56 = vadd.f32 %v55, 1e-05
  %v57 = vrsqrt.pop %v56
  %v58 = vld [vmem:[%s2] sm:$0x1]
  %v59 = vmul.f32 %v57, %v58
  %v60 = vld [vmem:[%s3] sm:$0x1]
  %v61 = vmul.f32 %v50, %v59
  %v62 = vsub.f32 %v60, %v61
  %v63 = vlaneseq
  %v64 = vshrl.u32 %v63, 7
  %v65 = vsub.s32 0, %v64
  %v66 = vrot.slane %v59, %v65
  %v67 = vmul.f32 %v33, %v66
  %v68 = vmul.f32 %v34, %v66
  %v69 = vmul.f32 %v35, %v66
  %v70 = vmul.f32 %v36, %v66
  %v71 = vmul.f32 %v37, %v66
  %v72 = vmul.f32 %v38, %v66
  %v73 = vmul.f32 %v39, %v66
  %v74 = vmul.f32 %v40, %v66
  %v75 = vmul.f32 %v41, %v66
  %v76 = vmul.f32 %v42, %v66
  %v77 = vmul.f32 %v43, %v66
  %v78 = vmul.f32 %v44, %v66
  %v79 = vmul.f32 %v45, %v66
  %v80 = vmul.f32 %v46, %v66
  %v81 = vmul.f32 %v47, %v66
  %v82 = vmul.f32 %v48, %v66
  %v84 = vlaneseq
  %v85 = vshrl.u32 %v84, 7
  %v86 = vsub.s32 0, %v85
  %v87 = vrot.slane %v62, %v86
  %v89 = vadd.f32 %v67, %v87
  %v90 = vadd.f32 %v68, %v87
  %v91 = vadd.f32 %v69, %v87
  %v92 = vadd.f32 %v70, %v87
  %v93 = vadd.f32 %v71, %v87
  %v94 = vadd.f32 %v72, %v87
  %v95 = vadd.f32 %v73, %v87
  %v96 = vadd.f32 %v74, %v87
  %v97 = vadd.f32 %v75, %v87
  %v98 = vadd.f32 %v76, %v87
  %v99 = vadd.f32 %v77, %v87
  %v100 = vadd.f32 %v78, %v87
  %v101 = vadd.f32 %v79, %v87
  %v102 = vadd.f32 %v80, %v87
  %v103 = vadd.f32 %v81, %v87
  %v104 = vadd.f32 %v82, %v87
  %vm105 = vcmp.ge.f32.partialorder %v89, 0.0
  %vm106 = vcmp.ge.f32.partialorder %v90, 0.0
  %vm107 = vcmp.ge.f32.partialorder %v91, 0.0
  %vm108 = vcmp.ge.f32.partialorder %v92, 0.0
  %vm109 = vcmp.ge.f32.partialorder %v93, 0.0
  %vm110 = vcmp.ge.f32.partialorder %v94, 0.0
  %vm111 = vcmp.ge.f32.partialorder %v95, 0.0
  %vm112 = vcmp.ge.f32.partialorder %v96, 0.0
  %vm113 = vcmp.ge.f32.partialorder %v97, 0.0
  %vm114 = vcmp.ge.f32.partialorder %v98, 0.0
  %vm115 = vcmp.ge.f32.partialorder %v99, 0.0
  %vm116 = vcmp.ge.f32.partialorder %v100, 0.0
  %vm117 = vcmp.ge.f32.partialorder %v101, 0.0
  %vm118 = vcmp.ge.f32.partialorder %v102, 0.0
  %vm119 = vcmp.ge.f32.partialorder %v103, 0.0
  %vm120 = vcmp.ge.f32.partialorder %v104, 0.0
  %v121 = vmul.f32 %v89, 0.2
  %v122 = vmul.f32 %v90, 0.2
  %v123 = vmul.f32 %v91, 0.2
  %v124 = vmul.f32 %v92, 0.2
  %v125 = vmul.f32 %v93, 0.2
  %v126 = vmul.f32 %v94, 0.2
  %v127 = vmul.f32 %v95, 0.2
  %v128 = vmul.f32 %v96, 0.2
  %v129 = vmul.f32 %v97, 0.2
  %v130 = vmul.f32 %v98, 0.2
  %v131 = vmul.f32 %v99, 0.2
  %v132 = vmul.f32 %v100, 0.2
  %v133 = vmul.f32 %v101, 0.2
  %v134 = vmul.f32 %v102, 0.2
  %v135 = vmul.f32 %v103, 0.2
  %v136 = vmul.f32 %v104, 0.2
  %v137 = vsel %vm105, %v89, %v121
  %v138 = vsel %vm106, %v90, %v122
  %v139 = vsel %vm107, %v91, %v123
  %v140 = vsel %vm108, %v92, %v124
  %v141 = vsel %vm109, %v93, %v125
  %v142 = vsel %vm110, %v94, %v126
  %v143 = vsel %vm111, %v95, %v127
  %v144 = vsel %vm112, %v96, %v128
  %v145 = vsel %vm113, %v97, %v129
  %v146 = vsel %vm114, %v98, %v130
  %v147 = vsel %vm115, %v99, %v131
  %v148 = vsel %vm116, %v100, %v132
  %v149 = vsel %vm117, %v101, %v133
  %v150 = vsel %vm118, %v102, %v134
  %v151 = vsel %vm119, %v103, %v135
  %v152 = vsel %vm120, %v104, %v136
  %v153 = vpack.c.bf16 %v138, %v137
  %v154 = vpack.c.bf16 %v140, %v139
  %v155 = vpack.c.bf16 %v142, %v141
  %v156 = vpack.c.bf16 %v144, %v143
  %v157 = vpack.c.bf16 %v146, %v145
  %v158 = vpack.c.bf16 %v148, %v147
  %v159 = vpack.c.bf16 %v150, %v149
  %v160 = vpack.c.bf16 %v152, %v151
  %v169 = vunpack.c.l.b16 %v153
  %v170 = vunpack.c.h.b16 %v153
  %v171 = vunpack.c.l.b16 %v154
  %v172 = vunpack.c.h.b16 %v154
  %v173 = vunpack.c.l.b16 %v155
  %v174 = vunpack.c.h.b16 %v155
  %v175 = vunpack.c.l.b16 %v156
  %v176 = vunpack.c.h.b16 %v156
  %v177 = vunpack.c.l.b16 %v157
  %v178 = vunpack.c.h.b16 %v157
  %v179 = vunpack.c.l.b16 %v158
  %v180 = vunpack.c.h.b16 %v158
  %v181 = vunpack.c.l.b16 %v159
  %v182 = vunpack.c.h.b16 %v159
  %v183 = vunpack.c.l.b16 %v160
  %v184 = vunpack.c.h.b16 %v160
  %v185 = vpack.c.b16 %v169, %v169
  %v186 = vpack.c.b16 %v170, %v170
  %v187 = vpack.c.b16 %v171, %v171
  %v188 = vpack.c.b16 %v172, %v172
  %v189 = vpack.c.b16 %v173, %v173
  %v190 = vpack.c.b16 %v174, %v174
  %v191 = vpack.c.b16 %v175, %v175
  %v192 = vpack.c.b16 %v176, %v176
  %v193 = vpack.c.b16 %v177, %v177
  %v194 = vpack.c.b16 %v178, %v178
  %v195 = vpack.c.b16 %v179, %v179
  %v196 = vpack.c.b16 %v180, %v180
  %v197 = vpack.c.b16 %v181, %v181
  %v198 = vpack.c.b16 %v182, %v182
  %v199 = vpack.c.b16 %v183, %v183
  %v200 = vpack.c.b16 %v184, %v184
  %217 = vst [vmem:[%s4] sm:$0xf] %v185
  %218 = vst [vmem:[%s4 + $0x4] sm:$0xf] %v186
  %219 = vst [vmem:[%s4 + $0x8] sm:$0xf] %v187
  %220 = vst [vmem:[%s4 + $0xc] sm:$0xf] %v188
  %221 = vst [vmem:[%s4 + $0x10] sm:$0xf] %v189
  %222 = vst [vmem:[%s4 + $0x14] sm:$0xf] %v190
  %223 = vst [vmem:[%s4 + $0x18] sm:$0xf] %v191
  %224 = vst [vmem:[%s4 + $0x1c] sm:$0xf] %v192
  %225 = vst [vmem:[%s4 + $0x20] sm:$0xf] %v193
  %226 = vst [vmem:[%s4 + $0x24] sm:$0xf] %v194
  %227 = vst [vmem:[%s4 + $0x28] sm:$0xf] %v195
  %228 = vst [vmem:[%s4 + $0x2c] sm:$0xf] %v196
  %229 = vst [vmem:[%s4 + $0x30] sm:$0xf] %v197
  %230 = vst [vmem:[%s4 + $0x34] sm:$0xf] %v198
  %231 = vst [vmem:[%s4 + $0x38] sm:$0xf] %v199
  %232 = vst [vmem:[%s4 + $0x3c] sm:$0xf] %v200
  // Predicated region
  $region18: #{discriminator_forward.12} parent=0 // pred_check
    _
  $region19: #{discriminator_forward.12} parent=0 // pred_check_branch
    %234 = sbr.rel (0) target = $region21
  $region20: #{discriminator_forward.12} parent=0 // pred_region
    _
  $region21: #{discriminator_forward.12} parent=0 // pred_fallthru
    _
  // Predicated region
  $region22: #{discriminator_forward.12} parent=0 // pred_check
    _
  $region23: #{discriminator_forward.12} parent=0 // pred_check_branch
    %236 = sbr.rel (0) target = $region25
  $region24: #{discriminator_forward.12} parent=0 // pred_region
    _
  $region25: #{discriminator_forward.12} parent=0 // pred_fallthru
    _

// kernel: discriminator_forward.11
$region0: #{discriminator_forward.11}
  #allocation0 [shape = 'u32[]', space=smem, size = 0x4, offset = 0x4, fixed_abs, tag = 'smem constant byte address 0x4 - core index']
  #allocation1 [shape = 'u32[144,128]{1,0:T(1,128)}', space=vmem, size = 0x12000, scoped, tag = 'internal scratch']
  %s0 = inlined_call_operand.vmem [shape: bf16[128,512], index: 0, kind: input, shape index: {}]
  %s1 = inlined_call_operand.vmem [shape: bf16[512,128], index: 1, kind: input, shape index: {}]
  %s2 = inlined_call_operand.vmem [shape: bf16[128,128], index: 2, kind: output, shape index: {0}]
  %s3 = inlined_call_operand.vmem [shape: f32[8,128], index: 3, kind: output, shape index: {1}]
  %4 = xla_tuple %s2, %s3
  %s5 = sld [smem:[#allocation0]]
  $region26: #{discriminator_forward.11} parent=0
    _
  %s7 = ssub.s32 1, %s5
  %s8 = scalar_select 0, %s7, %s5
  // Predicated region
  $region2: #{discriminator_forward.11} parent=0 // pred_check
    _
  $region3: #{discriminator_forward.11} parent=0 // pred_check_branch
    %10 = sbr.rel (0) target = $region5
  $region4: #{discriminator_forward.11} parent=0 // pred_region
    _
  $region5: #{discriminator_forward.11} parent=0 // pred_fallthru
    _
  // Predicated region
  $region6: #{discriminator_forward.11} parent=0 // pred_check
    _
  $region7: #{discriminator_forward.11} parent=0 // pred_check_branch
    %12 = sbr.rel (0) target = $region9
  $region8: #{discriminator_forward.11} parent=0 // pred_region
    _
  $region9: #{discriminator_forward.11} parent=0 // pred_fallthru
    _
  %v14 = vld [vmem:[%s0] sm:$0xff]
  %v15 = vld [vmem:[%s0 + $0x8] sm:$0xff]
  %v16 = vld [vmem:[%s0 + $0x10] sm:$0xff]
  %v17 = vld [vmem:[%s0 + $0x18] sm:$0xff]
  %v18 = vld [vmem:[%s0 + $0x20] sm:$0xff]
  %v19 = vld [vmem:[%s0 + $0x28] sm:$0xff]
  %v20 = vld [vmem:[%s0 + $0x30] sm:$0xff]
  %v21 = vld [vmem:[%s0 + $0x38] sm:$0xff]
  %v22 = vld [vmem:[%s0 + $0x40] sm:$0xff]
  %v23 = vld [vmem:[%s0 + $0x48] sm:$0xff]
  %v24 = vld [vmem:[%s0 + $0x50] sm:$0xff]
  %v25 = vld [vmem:[%s0 + $0x58] sm:$0xff]
  %v26 = vld [vmem:[%s0 + $0x60] sm:$0xff]
  %v27 = vld [vmem:[%s0 + $0x68] sm:$0xff]
  %v28 = vld [vmem:[%s0 + $0x70] sm:$0xff]
  %v29 = vld [vmem:[%s0 + $0x78] sm:$0xff]
  %v30 = vld [vmem:[%s0 + $0x80] sm:$0xff]
  %v31 = vld [vmem:[%s0 + $0x88] sm:$0xff]
  %v32 = vld [vmem:[%s0 + $0x90] sm:$0xff]
  %v33 = vld [vmem:[%s0 + $0x98] sm:$0xff]
  %v34 = vld [vmem:[%s0 + $0xa0] sm:$0xff]
  %v35 = vld [vmem:[%s0 + $0xa8] sm:$0xff]
  %v36 = vld [vmem:[%s0 + $0xb0] sm:$0xff]
  %v37 = vld [vmem:[%s0 + $0xb8] sm:$0xff]
  %v38 = vld [vmem:[%s0 + $0xc0] sm:$0xff]
  %v39 = vld [vmem:[%s0 + $0xc8] sm:$0xff]
  %v40 = vld [vmem:[%s0 + $0xd0] sm:$0xff]
  %v41 = vld [vmem:[%s0 + $0xd8] sm:$0xff]
  %v42 = vld [vmem:[%s0 + $0xe0] sm:$0xff]
  %v43 = vld [vmem:[%s0 + $0xe8] sm:$0xff]
  %v44 = vld [vmem:[%s0 + $0xf0] sm:$0xff]
  %v45 = vld [vmem:[%s0 + $0xf8] sm:$0xff]
  %v46 = vld [vmem:[%s1] sm:$0xf]
  %v47 = vld [vmem:[%s1 + $0x4] sm:$0xf]
  %v48 = vld [vmem:[%s1 + $0x8] sm:$0xf]
  %v49 = vld [vmem:[%s1 + $0xc] sm:$0xf]
  %v50 = vld [vmem:[%s1 + $0x10] sm:$0xf]
  %v51 = vld [vmem:[%s1 + $0x14] sm:$0xf]
  %v52 = vld [vmem:[%s1 + $0x18] sm:$0xf]
  %v53 = vld [vmem:[%s1 + $0x1c] sm:$0xf]
  %v54 = vld [vmem:[%s1 + $0x20] sm:$0xf]
  %v55 = vld [vmem:[%s1 + $0x24] sm:$0xf]
  %v56 = vld [vmem:[%s1 + $0x28] sm:$0xf]
  %v57 = vld [vmem:[%s1 + $0x2c] sm:$0xf]
  %v58 = vld [vmem:[%s1 + $0x30] sm:$0xf]
  %v59 = vld [vmem:[%s1 + $0x34] sm:$0xf]
  %v60 = vld [vmem:[%s1 + $0x38] sm:$0xf]
  %v61 = vld [vmem:[%s1 + $0x3c] sm:$0xf]
  %v62 = vld [vmem:[%s1 + $0x40] sm:$0xf]
  %v63 = vld [vmem:[%s1 + $0x44] sm:$0xf]
  %v64 = vld [vmem:[%s1 + $0x48] sm:$0xf]
  %v65 = vld [vmem:[%s1 + $0x4c] sm:$0xf]
  %v66 = vld [vmem:[%s1 + $0x50] sm:$0xf]
  %v67 = vld [vmem:[%s1 + $0x54] sm:$0xf]
  %v68 = vld [vmem:[%s1 + $0x58] sm:$0xf]
  %v69 = vld [vmem:[%s1 + $0x5c] sm:$0xf]
  %v70 = vld [vmem:[%s1 + $0x60] sm:$0xf]
  %v71 = vld [vmem:[%s1 + $0x64] sm:$0xf]
  %v72 = vld [vmem:[%s1 + $0x68] sm:$0xf]
  %v73 = vld [vmem:[%s1 + $0x6c] sm:$0xf]
  %v74 = vld [vmem:[%s1 + $0x70] sm:$0xf]
  %v75 = vld [vmem:[%s1 + $0x74] sm:$0xf]
  %v76 = vld [vmem:[%s1 + $0x78] sm:$0xf]
  %v77 = vld [vmem:[%s1 + $0x7c] sm:$0xf]
  %v78 = vld [vmem:[%s1 + $0x80] sm:$0xf]
  %v79 = vld [vmem:[%s1 + $0x84] sm:$0xf]
  %v80 = vld [vmem:[%s1 + $0x88] sm:$0xf]
  %v81 = vld [vmem:[%s1 + $0x8c] sm:$0xf]
  %v82 = vld [vmem:[%s1 + $0x90] sm:$0xf]
  %v83 = vld [vmem:[%s1 + $0x94] sm:$0xf]
  %v84 = vld [vmem:[%s1 + $0x98] sm:$0xf]
  %v85 = vld [vmem:[%s1 + $0x9c] sm:$0xf]
  %v86 = vld [vmem:[%s1 + $0xa0] sm:$0xf]
  %v87 = vld [vmem:[%s1 + $0xa4] sm:$0xf]
  %v88 = vld [vmem:[%s1 + $0xa8] sm:$0xf]
  %v89 = vld [vmem:[%s1 + $0xac] sm:$0xf]
  %v90 = vld [vmem:[%s1 + $0xb0] sm:$0xf]
  %v91 = vld [vmem:[%s1 + $0xb4] sm:$0xf]
  %v92 = vld [vmem:[%s1 + $0xb8] sm:$0xf]
  %v93 = vld [vmem:[%s1 + $0xbc] sm:$0xf]
  %v94 = vld [vmem:[%s1 + $0xc0] sm:$0xf]
  %v95 = vld [vmem:[%s1 + $0xc4] sm:$0xf]
  %v96 = vld [vmem:[%s1 + $0xc8] sm:$0xf]
  %v97 = vld [vmem:[%s1 + $0xcc] sm:$0xf]
  %v98 = vld [vmem:[%s1 + $0xd0] sm:$0xf]
  %v99 = vld [vmem:[%s1 + $0xd4] sm:$0xf]
  %v100 = vld [vmem:[%s1 + $0xd8] sm:$0xf]
  %v101 = vld [vmem:[%s1 + $0xdc] sm:$0xf]
  %v102 = vld [vmem:[%s1 + $0xe0] sm:$0xf]
  %v103 = vld [vmem:[%s1 + $0xe4] sm:$0xf]
  %v104 = vld [vmem:[%s1 + $0xe8] sm:$0xf]
  %v105 = vld [vmem:[%s1 + $0xec] sm:$0xf]
  %v106 = vld [vmem:[%s1 + $0xf0] sm:$0xf]
  %v107 = vld [vmem:[%s1 + $0xf4] sm:$0xf]
  %v108 = vld [vmem:[%s1 + $0xf8] sm:$0xf]
  %v109 = vld [vmem:[%s1 + $0xfc] sm:$0xf]
  %v142 = vunpack.c.l.b16 %v14
  %v143 = vunpack.c.h.b16 %v14
  %v144 = vunpack.c.l.b16 %v15
  %v145 = vunpack.c.h.b16 %v15
  %v146 = vunpack.c.l.b16 %v16
  %v147 = vunpack.c.h.b16 %v16
  %v148 = vunpack.c.l.b16 %v17
  %v149 = vunpack.c.h.b16 %v17
  %v150 = vunpack.c.l.b16 %v18
  %v151 = vunpack.c.h.b16 %v18
  %v152 = vunpack.c.l.b16 %v19
  %v153 = vunpack.c.h.b16 %v19
  %v154 = vunpack.c.l.b16 %v20
  %v155 = vunpack.c.h.b16 %v20
  %v156 = vunpack.c.l.b16 %v21
  %v157 = vunpack.c.h.b16 %v21
  %v158 = vunpack.c.l.b16 %v22
  %v159 = vunpack.c.h.b16 %v22
  %v160 = vunpack.c.l.b16 %v23
  %v161 = vunpack.c.h.b16 %v23
  %v162 = vunpack.c.l.b16 %v24
  %v163 = vunpack.c.h.b16 %v24
  %v164 = vunpack.c.l.b16 %v25
  %v165 = vunpack.c.h.b16 %v25
  %v166 = vunpack.c.l.b16 %v26
  %v167 = vunpack.c.h.b16 %v26
  %v168 = vunpack.c.l.b16 %v27
  %v169 = vunpack.c.h.b16 %v27
  %v170 = vunpack.c.l.b16 %v28
  %v171 = vunpack.c.h.b16 %v28
  %v172 = vunpack.c.l.b16 %v29
  %v173 = vunpack.c.h.b16 %v29
  %v174 = vunpack.c.l.b16 %v30
  %v175 = vunpack.c.h.b16 %v30
  %v176 = vunpack.c.l.b16 %v31
  %v177 = vunpack.c.h.b16 %v31
  %v178 = vunpack.c.l.b16 %v32
  %v179 = vunpack.c.h.b16 %v32
  %v180 = vunpack.c.l.b16 %v33
  %v181 = vunpack.c.h.b16 %v33
  %v182 = vunpack.c.l.b16 %v34
  %v183 = vunpack.c.h.b16 %v34
  %v184 = vunpack.c.l.b16 %v35
  %v185 = vunpack.c.h.b16 %v35
  %v186 = vunpack.c.l.b16 %v36
  %v187 = vunpack.c.h.b16 %v36
  %v188 = vunpack.c.l.b16 %v37
  %v189 = vunpack.c.h.b16 %v37
  %v190 = vunpack.c.l.b16 %v38
  %v191 = vunpack.c.h.b16 %v38
  %v192 = vunpack.c.l.b16 %v39
  %v193 = vunpack.c.h.b16 %v39
  %v194 = vunpack.c.l.b16 %v40
  %v195 = vunpack.c.h.b16 %v40
  %v196 = vunpack.c.l.b16 %v41
  %v197 = vunpack.c.h.b16 %v41
  %v198 = vunpack.c.l.b16 %v42
  %v199 = vunpack.c.h.b16 %v42
  %v200 = vunpack.c.l.b16 %v43
  %v201 = vunpack.c.h.b16 %v43
  %v202 = vunpack.c.l.b16 %v44
  %v203 = vunpack.c.h.b16 %v44
  %v204 = vunpack.c.l.b16 %v45
  %v205 = vunpack.c.h.b16 %v45
  %v206 = vpack.c.b16 %v146, %v142
  %v207 = vpack.c.b16 %v147, %v143
  %v208 = vpack.c.b16 %v148, %v144
  %v209 = vpack.c.b16 %v149, %v145
  %v210 = vpack.c.b16 %v154, %v150
  %v211 = vpack.c.b16 %v155, %v151
  %v212 = vpack.c.b16 %v156, %v152
  %v213 = vpack.c.b16 %v157, %v153
  %v214 = vpack.c.b16 %v162, %v158
  %v215 = vpack.c.b16 %v163, %v159
  %v216 = vpack.c.b16 %v164, %v160
  %v217 = vpack.c.b16 %v165, %v161
  %v218 = vpack.c.b16 %v170, %v166
  %v219 = vpack.c.b16 %v171, %v167
  %v220 = vpack.c.b16 %v172, %v168
  %v221 = vpack.c.b16 %v173, %v169
  %v222 = vpack.c.b16 %v178, %v174
  %v223 = vpack.c.b16 %v179, %v175
  %v224 = vpack.c.b16 %v180, %v176
  %v225 = vpack.c.b16 %v181, %v177
  %v226 = vpack.c.b16 %v186, %v182
  %v227 = vpack.c.b16 %v187, %v183
  %v228 = vpack.c.b16 %v188, %v184
  %v229 = vpack.c.b16 %v189, %v185
  %v230 = vpack.c.b16 %v194, %v190
  %v231 = vpack.c.b16 %v195, %v191
  %v232 = vpack.c.b16 %v196, %v192
  %v233 = vpack.c.b16 %v197, %v193
  %v234 = vpack.c.b16 %v202, %v198
  %v235 = vpack.c.b16 %v203, %v199
  %v236 = vpack.c.b16 %v204, %v200
  %v237 = vpack.c.b16 %v205, %v201
  %v334 = vunpack.c.l.b16 %v46
  %v335 = vunpack.c.l.b16 %v47
  %v336 = vunpack.c.l.b16 %v48
  %v337 = vunpack.c.l.b16 %v49
  %v338 = vunpack.c.l.b16 %v50
  %v339 = vunpack.c.l.b16 %v51
  %v340 = vunpack.c.l.b16 %v52
  %v341 = vunpack.c.l.b16 %v53
  %v342 = vunpack.c.l.b16 %v54
  %v343 = vunpack.c.l.b16 %v55
  %v344 = vunpack.c.l.b16 %v56
  %v345 = vunpack.c.l.b16 %v57
  %v346 = vunpack.c.l.b16 %v58
  %v347 = vunpack.c.l.b16 %v59
  %v348 = vunpack.c.l.b16 %v60
  %v349 = vunpack.c.l.b16 %v61
  %v350 = vunpack.c.l.b16 %v62
  %v351 = vunpack.c.l.b16 %v63
  %v352 = vunpack.c.l.b16 %v64
  %v353 = vunpack.c.l.b16 %v65
  %v354 = vunpack.c.l.b16 %v66
  %v355 = vunpack.c.l.b16 %v67
  %v356 = vunpack.c.l.b16 %v68
  %v357 = vunpack.c.l.b16 %v69
  %v358 = vunpack.c.l.b16 %v70
  %v359 = vunpack.c.l.b16 %v71
  %v360 = vunpack.c.l.b16 %v72
  %v361 = vunpack.c.l.b16 %v73
  %v362 = vunpack.c.l.b16 %v74
  %v363 = vunpack.c.l.b16 %v75
  %v364 = vunpack.c.l.b16 %v76
  %v365 = vunpack.c.l.b16 %v77
  %v366 = vunpack.c.l.b16 %v78
  %v367 = vunpack.c.l.b16 %v79
  %v368 = vunpack.c.l.b16 %v80
  %v369 = vunpack.c.l.b16 %v81
  %v370 = vunpack.c.l.b16 %v82
  %v371 = vunpack.c.l.b16 %v83
  %v372 = vunpack.c.l.b16 %v84
  %v373 = vunpack.c.l.b16 %v85
  %v374 = vunpack.c.l.b16 %v86
  %v375 = vunpack.c.l.b16 %v87
  %v376 = vunpack.c.l.b16 %v88
  %v377 = vunpack.c.l.b16 %v89
  %v378 = vunpack.c.l.b16 %v90
  %v379 = vunpack.c.l.b16 %v91
  %v380 = vunpack.c.l.b16 %v92
  %v381 = vunpack.c.l.b16 %v93
  %v382 = vunpack.c.l.b16 %v94
  %v383 = vunpack.c.l.b16 %v95
  %v384 = vunpack.c.l.b16 %v96
  %v385 = vunpack.c.l.b16 %v97
  %v386 = vunpack.c.l.b16 %v98
  %v387 = vunpack.c.l.b16 %v99
  %v388 = vunpack.c.l.b16 %v100
  %v389 = vunpack.c.l.b16 %v101
  %v390 = vunpack.c.l.b16 %v102
  %v391 = vunpack.c.l.b16 %v103
  %v392 = vunpack.c.l.b16 %v104
  %v393 = vunpack.c.l.b16 %v105
  %v394 = vunpack.c.l.b16 %v106
  %v395 = vunpack.c.l.b16 %v107
  %v396 = vunpack.c.l.b16 %v108
  %v397 = vunpack.c.l.b16 %v109
  %v398 = vpack.c.b16 %v335, %v334
  %v399 = vpack.c.b16 %v337, %v336
  %v400 = vpack.c.b16 %v339, %v338
  %v401 = vpack.c.b16 %v341, %v340
  %v402 = vpack.c.b16 %v343, %v342
  %v403 = vpack.c.b16 %v345, %v344
  %v404 = vpack.c.b16 %v347, %v346
  %v405 = vpack.c.b16 %v349, %v348
  %v406 = vpack.c.b16 %v351, %v350
  %v407 = vpack.c.b16 %v353, %v352
  %v408 = vpack.c.b16 %v355, %v354
  %v409 = vpack.c.b16 %v357, %v356
  %v410 = vpack.c.b16 %v359, %v358
  %v411 = vpack.c.b16 %v361, %v360
  %v412 = vpack.c.b16 %v363, %v362
  %v413 = vpack.c.b16 %v365, %v364
  %v414 = vpack.c.b16 %v367, %v366
  %v415 = vpack.c.b16 %v369, %v368
  %v416 = vpack.c.b16 %v371, %v370
  %v417 = vpack.c.b16 %v373, %v372
  %v418 = vpack.c.b16 %v375, %v374
  %v419 = vpack.c.b16 %v377, %v376
  %v420 = vpack.c.b16 %v379, %v378
  %v421 = vpack.c.b16 %v381, %v380
  %v422 = vpack.c.b16 %v383, %v382
  %v423 = vpack.c.b16 %v385, %v384
  %v424 = vpack.c.b16 %v387, %v386
  %v425 = vpack.c.b16 %v389, %v388
  %v426 = vpack.c.b16 %v391, %v390
  %v427 = vpack.c.b16 %v393, %v392
  %v428 = vpack.c.b16 %v395, %v394
  %v429 = vpack.c.b16 %v397, %v396
  %462 = vmatprep.subr.bf16.mxu0 0
  %463 = vmatpush1.bf16.msra.mxu0 %v398
  %464 = vmatprep.subr.bf16.mxu0 0
  %465 = vmatpush1.bf16.msra.mxu0 %v399
  %466 = vmatprep.subr.bf16.mxu0 0
  %467 = vmatpush1.bf16.msra.mxu0 %v400
  %468 = vmatprep.subr.bf16.mxu0 0
  %469 = vmatpush1.bf16.msra.mxu0 %v401
  %470 = vmatprep.subr.bf16.mxu0 0
  %471 = vmatpush1.bf16.msra.mxu0 %v402
  %472 = vmatprep.subr.bf16.mxu0 0
  %473 = vmatpush1.bf16.msra.mxu0 %v403
  %474 = vmatprep.subr.bf16.mxu0 0
  %475 = vmatpush1.bf16.msra.mxu0 %v404
  %476 = vmatprep.subr.bf16.mxu0 0
  %477 = vmatpush1.bf16.msra.mxu0 %v405
  %478 = vmatprep.subr.bf16.mxu0 0
  %479 = vmatpush1.bf16.msra.mxu0 %v406
  %480 = vmatprep.subr.bf16.mxu0 0
  %481 = vmatpush1.bf16.msra.mxu0 %v407
  %482 = vmatprep.subr.bf16.mxu0 0
  %483 = vmatpush1.bf16.msra.mxu0 %v408
  %484 = vmatprep.subr.bf16.mxu0 0
  %485 = vmatpush1.bf16.msra.mxu0 %v409
  %486 = vmatprep.subr.bf16.mxu0 0
  %487 = vmatpush1.bf16.msra.mxu0 %v410
  %488 = vmatprep.subr.bf16.mxu0 0
  %489 = vmatpush1.bf16.msra.mxu0 %v411
  %490 = vmatprep.subr.bf16.mxu0 0
  %491 = vmatpush1.bf16.msra.mxu0 %v412
  %492 = vmatprep.subr.bf16.mxu0 0
  %493 = vmatpush1.bf16.msra.mxu0 %v413
  %494 = vmatprep.mubr.bf16.mxu0 %v207
  %495 = vmatmul.mubr.bf16.gmra.mrb[0].mxu0 %v206
  %v496 = vpop.f32.mrb[0].mxu0
  %v497 = vadd.f32 0.0, %v496
  %v498 = vpop.f32.mrb[0].mxu0
  %v499 = vpop.f32.mrb[0].mxu0
  %v500 = vadd.f32 0.0, %v499
  %v501 = vpop.f32.mrb[0].mxu0
  %502 = vmatprep.mubr.bf16.mxu0 %v211
  %503 = vmatmul.mubr.bf16.gmra.mrb[0].mxu0 %v210
  %v504 = vpop.f32.mrb[0].mxu0
  %v505 = vadd.f32 0.0, %v504
  %v506 = vpop.f32.mrb[0].mxu0
  %v507 = vpop.f32.mrb[0].mxu0
  %v508 = vadd.f32 0.0, %v507
  %v509 = vpop.f32.mrb[0].mxu0
  %510 = vmatprep.mubr.bf16.mxu0 %v215
  %511 = vmatmul.mubr.bf16.gmra.mrb[0].mxu0 %v214
  %v512 = vpop.f32.mrb[0].mxu0
  %v513 = vadd.f32 0.0, %v512
  %v514 = vpop.f32.mrb[0].mxu0
  %v515 = vpop.f32.mrb[0].mxu0
  %v516 = vadd.f32 0.0, %v515
  %v517 = vpop.f32.mrb[0].mxu0
  %518 = vmatprep.mubr.bf16.mxu0 %v219
  %519 = vmatmul.mubr.bf16.gmra.mrb[0].mxu0 %v218
  %v520 = vpop.f32.mrb[0].mxu0
  %v521 = vadd.f32 0.0, %v520
  %v522 = vpop.f32.mrb[0].mxu0
  %v523 = vpop.f32.mrb[0].mxu0
  %v524 = vadd.f32 0.0, %v523
  %v525 = vpop.f32.mrb[0].mxu0
  %526 = vmatprep.mubr.bf16.mxu0 %v223
  %527 = vmatmul.mubr.bf16.gmra.mrb[0].mxu0 %v222
  %v528 = vpop.f32.mrb[0].mxu0
  %v529 = vadd.f32 0.0, %v528
  %v530 = vpop.f32.mrb[0].mxu0
  %v531 = vpop.f32.mrb[0].mxu0
  %v532 = vadd.f32 0.0, %v531
  %v533 = vpop.f32.mrb[0].mxu0
  %534 = vmatprep.mubr.bf16.mxu0 %v227
  %535 = vmatmul.mubr.bf16.gmra.mrb[0].mxu0 %v226
  %v536 = vpop.f32.mrb[0].mxu0
  %v537 = vadd.f32 0.0, %v536
  %v538 = vpop.f32.mrb[0].mxu0
  %v539 = vpop.f32.mrb[0].mxu0
  %v540 = vadd.f32 0.0, %v539
  %v541 = vpop.f32.mrb[0].mxu0
  %542 = vmatprep.mubr.bf16.mxu0 %v231
  %543 = vmatmul.mubr.bf16.gmra.mrb[0].mxu0 %v230
  %v544 = vpop.f32.mrb[0].mxu0
  %v545 = vadd.f32 0.0, %v544
  %v546 = vpop.f32.mrb[0].mxu0
  %v547 = vpop.f32.mrb[0].mxu0
  %v548 = vadd.f32 0.0, %v547
  %v549 = vpop.f32.mrb[0].mxu0
  %550 = vmatprep.mubr.bf16.mxu0 %v235
  %551 = vmatmul.mubr.bf16.gmra.mrb[0].mxu0 %v234
  %v552 = vpop.f32.mrb[0].mxu0
  %v553 = vadd.f32 0.0, %v552
  %v554 = vpop.f32.mrb[0].mxu0
  %v555 = vpop.f32.mrb[0].mxu0
  %v556 = vadd.f32 0.0, %v555
  %v557 = vpop.f32.mrb[0].mxu0
  %558 = vdwg.mxu0
  %559 = vmatprep.subr.bf16.mxu0 0
  %560 = vmatpush1.bf16.msra.mxu0 %v414
  %561 = vmatprep.subr.bf16.mxu0 0
  %562 = vmatpush1.bf16.msra.mxu0 %v415
  %563 = vmatprep.subr.bf16.mxu0 0
  %564 = vmatpush1.bf16.msra.mxu0 %v416
  %565 = vmatprep.subr.bf16.mxu0 0
  %566 = vmatpush1.bf16.msra.mxu0 %v417
  %567 = vmatprep.subr.bf16.mxu0 0
  %568 = vmatpush1.bf16.msra.mxu0 %v418
  %569 = vmatprep.subr.bf16.mxu0 0
  %570 = vmatpush1.bf16.msra.mxu0 %v419
  %571 = vmatprep.subr.bf16.mxu0 0
  %572 = vmatpush1.bf16.msra.mxu0 %v420
  %573 = vmatprep.subr.bf16.mxu0 0
  %574 = vmatpush1.bf16.msra.mxu0 %v421
  %575 = vmatprep.subr.bf16.mxu0 0
  %576 = vmatpush1.bf16.msra.mxu0 %v422
  %577 = vmatprep.subr.bf16.mxu0 0
  %578 = vmatpush1.bf16.msra.mxu0 %v423
  %579 = vmatprep.subr.bf16.mxu0 0
  %580 = vmatpush1.bf16.msra.mxu0 %v424
  %581 = vmatprep.subr.bf16.mxu0 0
  %582 = vmatpush1.bf16.msra.mxu0 %v425
  %583 = vmatprep.subr.bf16.mxu0 0
  %584 = vmatpush1.bf16.msra.mxu0 %v426
  %585 = vmatprep.subr.bf16.mxu0 0
  %586 = vmatpush1.bf16.msra.mxu0 %v427
  %587 = vmatprep.subr.bf16.mxu0 0
  %588 = vmatpush1.bf16.msra.mxu0 %v428
  %589 = vmatprep.subr.bf16.mxu0 0
  %590 = vmatpush1.bf16.msra.mxu0 %v429
  %591 = vmatprep.mubr.bf16.mxu0 %v209
  %592 = vmatmul.mubr.bf16.gmra.mrb[0].mxu0 %v208
  %v593 = vpop.f32.mrb[0].mxu0
  %v594 = vadd.f32 %v497, %v593
  %v595 = vpop.f32.mrb[0].mxu0
  %v596 = vpop.f32.mrb[0].mxu0
  %v597 = vadd.f32 %v500, %v596
  %v598 = vpop.f32.mrb[0].mxu0
  %599 = vmatprep.mubr.bf16.mxu0 %v213
  %600 = vmatmul.mubr.bf16.gmra.mrb[0].mxu0 %v212
  %v601 = vpop.f32.mrb[0].mxu0
  %v602 = vadd.f32 %v505, %v601
  %v603 = vpop.f32.mrb[0].mxu0
  %v604 = vpop.f32.mrb[0].mxu0
  %v605 = vadd.f32 %v508, %v604
  %v606 = vpop.f32.mrb[0].mxu0
  %607 = vmatprep.mubr.bf16.mxu0 %v217
  %608 = vmatmul.mubr.bf16.gmra.mrb[0].mxu0 %v216
  %v609 = vpop.f32.mrb[0].mxu0
  %v610 = vadd.f32 %v513, %v609
  %v611 = vpop.f32.mrb[0].mxu0
  %v612 = vpop.f32.mrb[0].mxu0
  %v613 = vadd.f32 %v516, %v612
  %v614 = vpop.f32.mrb[0].mxu0
  %615 = vmatprep.mubr.bf16.mxu0 %v221
  %616 = vmatmul.mubr.bf16.gmra.mrb[0].mxu0 %v220
  %v617 = vpop.f32.mrb[0].mxu0
  %v618 = vadd.f32 %v521, %v617
  %v619 = vpop.f32.mrb[0].mxu0
  %v620 = vpop.f32.mrb[0].mxu0
  %v621 = vadd.f32 %v524, %v620
  %v622 = vpop.f32.mrb[0].mxu0
  %623 = vmatprep.mubr.bf16.mxu0 %v225
  %624 = vmatmul.mubr.bf16.gmra.mrb[0].mxu0 %v224
  %v625 = vpop.f32.mrb[0].mxu0
  %v626 = vadd.f32 %v529, %v625
  %v627 = vpop.f32.mrb[0].mxu0
  %v628 = vpop.f32.mrb[0].mxu0
  %v629 = vadd.f32 %v532, %v628
  %v630 = vpop.f32.mrb[0].mxu0
  %631 = vmatprep.mubr.bf16.mxu0 %v229
  %632 = vmatmul.mubr.bf16.gmra.mrb[0].mxu0 %v228
  %v633 = vpop.f32.mrb[0].mxu0
  %v634 = vadd.f32 %v537, %v633
  %v635 = vpop.f32.mrb[0].mxu0
  %v636 = vpop.f32.mrb[0].mxu0
  %v637 = vadd.f32 %v540, %v636
  %v638 = vpop.f32.mrb[0].mxu0
  %639 = vmatprep.mubr.bf16.mxu0 %v233
  %640 = vmatmul.mubr.bf16.gmra.mrb[0].mxu0 %v232
  %v641 = vpop.f32.mrb[0].mxu0
  %v642 = vadd.f32 %v545, %v641
  %v643 = vpop.f32.mrb[0].mxu0
  %v644 = vpop.f32.mrb[0].mxu0
  %v645 = vadd.f32 %v548, %v644
  %v646 = vpop.f32.mrb[0].mxu0
  %647 = vmatprep.mubr.bf16.mxu0 %v237
  %648 = vmatmul.mubr.bf16.gmra.mrb[0].mxu0 %v236
  %v649 = vpop.f32.mrb[0].mxu0
  %v650 = vadd.f32 %v553, %v649
  %v651 = vpop.f32.mrb[0].mxu0
  %v652 = vpop.f32.mrb[0].mxu0
  %v653 = vadd.f32 %v556, %v652
  %v654 = vpop.f32.mrb[0].mxu0
  %655 = vdwg.mxu0
  %v656 = vpack.c.bf16 %v597, %v594
  %v657 = vpack.c.bf16 %v605, %v602
  %v658 = vpack.c.bf16 %v613, %v610
  %v659 = vpack.c.bf16 %v621, %v618
  %v660 = vpack.c.bf16 %v629, %v626
  %v661 = vpack.c.bf16 %v637, %v634
  %v662 = vpack.c.bf16 %v645, %v642
  %v663 = vpack.c.bf16 %v653, %v650
  %v672 = vunpack.c.l.b16 %v656
  %v673 = vunpack.c.h.b16 %v656
  %v674 = vunpack.c.l.b16 %v657
  %v675 = vunpack.c.h.b16 %v657
  %v676 = vunpack.c.l.b16 %v658
  %v677 = vunpack.c.h.b16 %v658
  %v678 = vunpack.c.l.b16 %v659
  %v679 = vunpack.c.h.b16 %v659
  %v680 = vunpack.c.l.b16 %v660
  %v681 = vunpack.c.h.b16 %v660
  %v682 = vunpack.c.l.b16 %v661
  %v683 = vunpack.c.h.b16 %v661
  %v684 = vunpack.c.l.b16 %v662
  %v685 = vunpack.c.h.b16 %v662
  %v686 = vunpack.c.l.b16 %v663
  %v687 = vunpack.c.h.b16 %v663
  %v688 = vpack.c.b16 %v672, %v672
  %v689 = vpack.c.b16 %v673, %v673
  %v690 = vpack.c.b16 %v674, %v674
  %v691 = vpack.c.b16 %v675, %v675
  %v692 = vpack.c.b16 %v676, %v676
  %v693 = vpack.c.b16 %v677, %v677
  %v694 = vpack.c.b16 %v678, %v678
  %v695 = vpack.c.b16 %v679, %v679
  %v696 = vpack.c.b16 %v680, %v680
  %v697 = vpack.c.b16 %v681, %v681
  %v698 = vpack.c.b16 %v682, %v682
  %v699 = vpack.c.b16 %v683, %v683
  %v700 = vpack.c.b16 %v684, %v684
  %v701 = vpack.c.b16 %v685, %v685
  %v702 = vpack.c.b16 %v686, %v686
  %v703 = vpack.c.b16 %v687, %v687
  %720 = vst [vmem:[%s2] sm:$0xf] %v688
  %721 = vst [vmem:[%s2 + $0x4] sm:$0xf] %v689
  %722 = vst [vmem:[%s2 + $0x8] sm:$0xf] %v690
  %723 = vst [vmem:[%s2 + $0xc] sm:$0xf] %v691
  %724 = vst [vmem:[%s2 + $0x10] sm:$0xf] %v692
  %725 = vst [vmem:[%s2 + $0x14] sm:$0xf] %v693
  %726 = vst [vmem:[%s2 + $0x18] sm:$0xf] %v694
  %727 = vst [vmem:[%s2 + $0x1c] sm:$0xf] %v695
  %728 = vst [vmem:[%s2 + $0x20] sm:$0xf] %v696
  %729 = vst [vmem:[%s2 + $0x24] sm:$0xf] %v697
  %730 = vst [vmem:[%s2 + $0x28] sm:$0xf] %v698
  %731 = vst [vmem:[%s2 + $0x2c] sm:$0xf] %v699
  %732 = vst [vmem:[%s2 + $0x30] sm:$0xf] %v700
  %733 = vst [vmem:[%s2 + $0x34] sm:$0xf] %v701
  %734 = vst [vmem:[%s2 + $0x38] sm:$0xf] %v702
  %735 = vst [vmem:[%s2 + $0x3c] sm:$0xf] %v703
  %736 = vst [vmem:[%s3] sm:$0xff] 0.0
  %v737 = vadd.f32 %v594, %v597
  %v738 = vadd.f32 %v737, %v602
  %v739 = vadd.f32 %v738, %v605
  %v740 = vadd.f32 %v739, %v610
  %v741 = vadd.f32 %v740, %v613
  %v742 = vadd.f32 %v741, %v618
  %v743 = vadd.f32 %v742, %v621
  %v744 = vadd.f32 %v743, %v626
  %v745 = vadd.f32 %v744, %v629
  %v746 = vadd.f32 %v745, %v634
  %v747 = vadd.f32 %v746, %v637
  %v748 = vadd.f32 %v747, %v642
  %v749 = vadd.f32 %v748, %v645
  %v750 = vadd.f32 %v749, %v650
  %v751 = vadd.f32 %v750, %v653
  %v752 = vrot.slane %v751, 4
  %v753 = vadd.f32 %v751, %v752
  %v754 = vrot.slane %v753, 2
  %v755 = vadd.f32 %v753, %v754
  %v756 = vrot.slane %v755, 1
  %v757 = vadd.f32 %v755, %v756
  %758 = vst [vmem:[%s3] sm:$0x1] %v757
  %v759 = vmul.f32 %v594, %v594
  %v760 = vmul.f32 %v597, %v597
  %v761 = vmul.f32 %v602, %v602
  %v762 = vmul.f32 %v605, %v605
  %v763 = vmul.f32 %v610, %v610
  %v764 = vmul.f32 %v613, %v613
  %v765 = vmul.f32 %v618, %v618
  %v766 = vmul.f32 %v621, %v621
  %v767 = vmul.f32 %v626, %v626
  %v768 = vmul.f32 %v629, %v629
  %v769 = vmul.f32 %v634, %v634
  %v770 = vmul.f32 %v637, %v637
  %v771 = vmul.f32 %v642, %v642
  %v772 = vmul.f32 %v645, %v645
  %v773 = vmul.f32 %v650, %v650
  %v774 = vmul.f32 %v653, %v653
  %v775 = vadd.f32 %v759, %v760
  %v776 = vadd.f32 %v775, %v761
  %v777 = vadd.f32 %v776, %v762
  %v778 = vadd.f32 %v777, %v763
  %v779 = vadd.f32 %v778, %v764
  %v780 = vadd.f32 %v779, %v765
  %v781 = vadd.f32 %v780, %v766
  %v782 = vadd.f32 %v781, %v767
  %v783 = vadd.f32 %v782, %v768
  %v784 = vadd.f32 %v783, %v769
  %v785 = vadd.f32 %v784, %v770
  %v786 = vadd.f32 %v785, %v771
  %v787 = vadd.f32 %v786, %v772
  %v788 = vadd.f32 %v787, %v773
  %v789 = vadd.f32 %v788, %v774
  %v790 = vrot.slane %v789, 4
  %v791 = vadd.f32 %v789, %v790
  %v792 = vrot.slane %v791, 2
  %v793 = vadd.f32 %v791, %v792
  %v794 = vrot.slane %v793, 1
  %v795 = vadd.f32 %v793, %v794
  %796 = vst [vmem:[%s3 + $0x1] sm:$0x1] %v795
  // Predicated region
  $region10: #{discriminator_forward.11} parent=0 // pred_check
    _
  $region11: #{discriminator_forward.11} parent=0 // pred_check_branch
    %798 = sbr.rel (0) target = $region13
  $region12: #{discriminator_forward.11} parent=0 // pred_region
    _
  $region13: #{discriminator_forward.11} parent=0 // pred_fallthru
    _
  // Predicated region
  $region14: #{discriminator_forward.11} parent=0 // pred_check
    _
  $region15: #{discriminator_forward.11} parent=0 // pred_check_branch
    %800 = sbr.rel (0) target = $region17
  $region16: #{discriminator_forward.11} parent=0 // pred_region
    _
  $region17: #{discriminator_forward.11} parent=0 // pred_fallthru
    _
  // Predicated region
  $region18: #{discriminator_forward.11} parent=0 // pred_check
    _
  $region19: #{discriminator_forward.11} parent=0 // pred_check_branch
    %802 = sbr.rel (0) target = $region21
  $region20: #{discriminator_forward.11} parent=0 // pred_region
    _
  $region21: #{discriminator_forward.11} parent=0 // pred_fallthru
    _
  // Predicated region
  $region22: #{discriminator_forward.11} parent=0 // pred_check
    _
  $region23: #{discriminator_forward.11} parent=0 // pred_check_branch
    %804 = sbr.rel (0) target = $region25
  $region24: #{discriminator_forward.11} parent=0 // pred_region
    _
  $region25: #{discriminator_forward.11} parent=0 // pred_fallthru
    _

// kernel: discriminator_forward.14
$region0: #{discriminator_forward.14}
  #allocation0 [shape = 'u32[]', space=smem, size = 0x4, offset = 0x4, fixed_abs, tag = 'smem constant byte address 0x4 - core index']
  #allocation1 [shape = 'u32[144,128]{1,0:T(1,128)}', space=vmem, size = 0x12000, scoped, tag = 'internal scratch']
  %s0 = inlined_call_operand.vmem [shape: bf16[32,128], index: 0, kind: input, shape index: {}, may-alias: {0,4}]
  %s1 = inlined_call_operand.vmem [shape: f32[8,128], index: 1, kind: input, shape index: {}]
  %s2 = inlined_call_operand.vmem [shape: f32[1,128], index: 2, kind: input, shape index: {}]
  %s3 = inlined_call_operand.vmem [shape: f32[1,128], index: 3, kind: input, shape index: {}]
  %s4 = inlined_call_operand.vmem [shape: bf16[32,128], index: 4, kind: output, shape index: {}, may-alias: {0,4}]
  %s5 = sld [smem:[#allocation0]]
  $region26: #{discriminator_forward.14} parent=0
    _
  %s7 = ssub.s32 1, %s5
  %s8 = scalar_select 0, %s7, %s5
  // Predicated region
  $region2: #{discriminator_forward.14} parent=0 // pred_check
    _
  $region3: #{discriminator_forward.14} parent=0 // pred_check_branch
    %10 = sbr.rel (0) target = $region5
  $region4: #{discriminator_forward.14} parent=0 // pred_region
    _
  $region5: #{discriminator_forward.14} parent=0 // pred_fallthru
    _
  // Predicated region
  $region6: #{discriminator_forward.14} parent=0 // pred_check
    _
  $region7: #{discriminator_forward.14} parent=0 // pred_check_branch
    %12 = sbr.rel (0) target = $region9
  $region8: #{discriminator_forward.14} parent=0 // pred_region
    _
  $region9: #{discriminator_forward.14} parent=0 // pred_fallthru
    _
  // Predicated region
  $region10: #{discriminator_forward.14} parent=0 // pred_check
    _
  $region11: #{discriminator_forward.14} parent=0 // pred_check_branch
    %14 = sbr.rel (0) target = $region13
  $region12: #{discriminator_forward.14} parent=0 // pred_region
    _
  $region13: #{discriminator_forward.14} parent=0 // pred_fallthru
    _
  // Predicated region
  $region14: #{discriminator_forward.14} parent=0 // pred_check
    _
  $region15: #{discriminator_forward.14} parent=0 // pred_check_branch
    %16 = sbr.rel (0) target = $region17
  $region16: #{discriminator_forward.14} parent=0 // pred_region
    _
  $region17: #{discriminator_forward.14} parent=0 // pred_fallthru
    _
  %v17 = vld [vmem:[%s0] sm:$0xf]
  %v18 = vld [vmem:[%s0 + $0x4] sm:$0xf]
  %v19 = vld [vmem:[%s0 + $0x8] sm:$0xf]
  %v20 = vld [vmem:[%s0 + $0xc] sm:$0xf]
  %v21 = vunpack.c.l.bf16 %v17
  %v22 = vunpack.c.l.bf16 %v18
  %v23 = vunpack.c.l.bf16 %v19
  %v24 = vunpack.c.l.bf16 %v20
  %v25 = vld [vmem:[%s1] sm:$0x1]
  %v26 = vmul.f32 %v25, 0.03125
  %v27 = vld [vmem:[%s1 + $0x1] sm:$0x1]
  %v28 = vmul.f32 %v27, 0.03125
  %v29 = vmul.f32 %v26, %v26
  %v30 = vsub.f32 %v28, %v29
  %v31 = vmax.f32 %v30, 0.0
  %v32 = vadd.f32 %v31, 1e-05
  %v33 = vrsqrt.pop %v32
  %v34 = vld [vmem:[%s2] sm:$0x1]
  %v35 = vmul.f32 %v33, %v34
  %v36 = vld [vmem:[%s3] sm:$0x1]
  %v37 = vmul.f32 %v26, %v35
  %v38 = vsub.f32 %v36, %v37
  %v39 = vlaneseq
  %v40 = vshrl.u32 %v39, 7
  %v41 = vsub.s32 0, %v40
  %v42 = vrot.slane %v35, %v41
  %v43 = vmul.f32 %v21, %v42
  %v44 = vmul.f32 %v22, %v42
  %v45 = vmul.f32 %v23, %v42
  %v46 = vmul.f32 %v24, %v42
  %v48 = vlaneseq
  %v49 = vshrl.u32 %v48, 7
  %v50 = vsub.s32 0, %v49
  %v51 = vrot.slane %v38, %v50
  %v53 = vadd.f32 %v43, %v51
  %v54 = vadd.f32 %v44, %v51
  %v55 = vadd.f32 %v45, %v51
  %v56 = vadd.f32 %v46, %v51
  %vm57 = vcmp.ge.f32.partialorder %v53, 0.0
  %vm58 = vcmp.ge.f32.partialorder %v54, 0.0
  %vm59 = vcmp.ge.f32.partialorder %v55, 0.0
  %vm60 = vcmp.ge.f32.partialorder %v56, 0.0
  %v61 = vmul.f32 %v53, 0.2
  %v62 = vmul.f32 %v54, 0.2
  %v63 = vmul.f32 %v55, 0.2
  %v64 = vmul.f32 %v56, 0.2
  %v65 = vsel %vm57, %v53, %v61
  %v66 = vsel %vm58, %v54, %v62
  %v67 = vsel %vm59, %v55, %v63
  %v68 = vsel %vm60, %v56, %v64
  %v69 = vpack.c.bf16 %v66, %v65
  %v70 = vpack.c.bf16 %v68, %v67
  %v73 = vunpack.c.l.b16 %v69
  %v74 = vunpack.c.h.b16 %v69
  %v75 = vunpack.c.l.b16 %v70
  %v76 = vunpack.c.h.b16 %v70
  %v77 = vpack.c.b16 %v73, %v73
  %v78 = vpack.c.b16 %v74, %v74
  %v79 = vpack.c.b16 %v75, %v75
  %v80 = vpack.c.b16 %v76, %v76
  %85 = vst [vmem:[%s4] sm:$0xf] %v77
  %86 = vst [vmem:[%s4 + $0x4] sm:$0xf] %v78
  %87 = vst [vmem:[%s4 + $0x8] sm:$0xf] %v79
  %88 = vst [vmem:[%s4 + $0xc] sm:$0xf] %v80
  // Predicated region
  $region18: #{discriminator_forward.14} parent=0 // pred_check
    _
  $region19: #{discriminator_forward.14} parent=0 // pred_check_branch
    %90 = sbr.rel (0) target = $region21
  $region20: #{discriminator_forward.14} parent=0 // pred_region
    _
  $region21: #{discriminator_forward.14} parent=0 // pred_fallthru
    _
  // Predicated region
  $region22: #{discriminator_forward.14} parent=0 // pred_check
    _
  $region23: #{discriminator_forward.14} parent=0 // pred_check_branch
    %92 = sbr.rel (0) target = $region25
  $region24: #{discriminator_forward.14} parent=0 // pred_region
    _
  $region25: #{discriminator_forward.14} parent=0 // pred_fallthru
    _

// kernel: discriminator_forward.13
$region0: #{discriminator_forward.13}
  #allocation0 [shape = 'u32[]', space=smem, size = 0x4, offset = 0x4, fixed_abs, tag = 'smem constant byte address 0x4 - core index']
  #allocation1 [shape = 'u32[144,128]{1,0:T(1,128)}', space=vmem, size = 0x12000, scoped, tag = 'internal scratch']
  %s0 = inlined_call_operand.vmem [shape: bf16[32,896], index: 0, kind: input, shape index: {}]
  %s1 = inlined_call_operand.vmem [shape: bf16[896,128], index: 1, kind: input, shape index: {}]
  %s2 = inlined_call_operand.vmem [shape: bf16[32,128], index: 2, kind: output, shape index: {0}]
  %s3 = inlined_call_operand.vmem [shape: f32[8,128], index: 3, kind: output, shape index: {1}]
  %4 = xla_tuple %s2, %s3
  %s5 = sld [smem:[#allocation0]]
  $region26: #{discriminator_forward.13} parent=0
    _
  %s7 = ssub.s32 1, %s5
  %s8 = scalar_select 0, %s7, %s5
  // Predicated region
  $region2: #{discriminator_forward.13} parent=0 // pred_check
    _
  $region3: #{discriminator_forward.13} parent=0 // pred_check_branch
    %10 = sbr.rel (0) target = $region5
  $region4: #{discriminator_forward.13} parent=0 // pred_region
    _
  $region5: #{discriminator_forward.13} parent=0 // pred_fallthru
    _
  // Predicated region
  $region6: #{discriminator_forward.13} parent=0 // pred_check
    _
  $region7: #{discriminator_forward.13} parent=0 // pred_check_branch
    %12 = sbr.rel (0) target = $region9
  $region8: #{discriminator_forward.13} parent=0 // pred_region
    _
  $region9: #{discriminator_forward.13} parent=0 // pred_fallthru
    _
  %v14 = vld [vmem:[%s0] sm:$0xff]
  %v15 = vld [vmem:[%s0 + $0x8] sm:$0xff]
  %v16 = vld [vmem:[%s0 + $0x10] sm:$0xff]
  %v17 = vld [vmem:[%s0 + $0x18] sm:$0xf]
  %v18 = vld [vmem:[%s0 + $0x1c] sm:$0xff]
  %v19 = vld [vmem:[%s0 + $0x24] sm:$0xff]
  %v20 = vld [vmem:[%s0 + $0x2c] sm:$0xff]
  %v21 = vld [vmem:[%s0 + $0x34] sm:$0xf]
  %v22 = vld [vmem:[%s0 + $0x38] sm:$0xff]
  %v23 = vld [vmem:[%s0 + $0x40] sm:$0xff]
  %v24 = vld [vmem:[%s0 + $0x48] sm:$0xff]
  %v25 = vld [vmem:[%s0 + $0x50] sm:$0xf]
  %v26 = vld [vmem:[%s0 + $0x54] sm:$0xff]
  %v27 = vld [vmem:[%s0 + $0x5c] sm:$0xff]
  %v28 = vld [vmem:[%s0 + $0x64] sm:$0xff]
  %v29 = vld [vmem:[%s0 + $0x6c] sm:$0xf]
  %v30 = vld [vmem:[%s1] sm:$0xf]
  %v31 = vld [vmem:[%s1 + $0x4] sm:$0xf]
  %v32 = vld [vmem:[%s1 + $0x8] sm:$0xf]
  %v33 = vld [vmem:[%s1 + $0xc] sm:$0xf]
  %v34 = vld [vmem:[%s1 + $0x10] sm:$0xf]
  %v35 = vld [vmem:[%s1 + $0x14] sm:$0xf]
  %v36 = vld [vmem:[%s1 + $0x18] sm:$0xf]
  %v37 = vld [vmem:[%s1 + $0x1c] sm:$0xf]
  %v38 = vld [vmem:[%s1 + $0x20] sm:$0xf]
  %v39 = vld [vmem:[%s1 + $0x24] sm:$0xf]
  %v40 = vld [vmem:[%s1 + $0x28] sm:$0xf]
  %v41 = vld [vmem:[%s1 + $0x2c] sm:$0xf]
  %v42 = vld [vmem:[%s1 + $0x30] sm:$0xf]
  %v43 = vld [vmem:[%s1 + $0x34] sm:$0xf]
  %v44 = vld [vmem:[%s1 + $0x38] sm:$0xf]
  %v45 = vld [vmem:[%s1 + $0x3c] sm:$0xf]
  %v46 = vld [vmem:[%s1 + $0x40] sm:$0xf]
  %v47 = vld [vmem:[%s1 + $0x44] sm:$0xf]
  %v48 = vld [vmem:[%s1 + $0x48] sm:$0xf]
  %v49 = vld [vmem:[%s1 + $0x4c] sm:$0xf]
  %v50 = vld [vmem:[%s1 + $0x50] sm:$0xf]
  %v51 = vld [vmem:[%s1 + $0x54] sm:$0xf]
  %v52 = vld [vmem:[%s1 + $0x58] sm:$0xf]
  %v53 = vld [vmem:[%s1 + $0x5c] sm:$0xf]
  %v54 = vld [vmem:[%s1 + $0x60] sm:$0xf]
  %v55 = vld [vmem:[%s1 + $0x64] sm:$0xf]
  %v56 = vld [vmem:[%s1 + $0x68] sm:$0xf]
  %v57 = vld [vmem:[%s1 + $0x6c] sm:$0xf]
  %v58 = vld [vmem:[%s1 + $0x70] sm:$0xf]
  %v59 = vld [vmem:[%s1 + $0x74] sm:$0xf]
  %v60 = vld [vmem:[%s1 + $0x78] sm:$0xf]
  %v61 = vld [vmem:[%s1 + $0x7c] sm:$0xf]
  %v62 = vld [vmem:[%s1 + $0x80] sm:$0xf]
  %v63 = vld [vmem:[%s1 + $0x84] sm:$0xf]
  %v64 = vld [vmem:[%s1 + $0x88] sm:$0xf]
  %v65 = vld [vmem:[%s1 + $0x8c] sm:$0xf]
  %v66 = vld [vmem:[%s1 + $0x90] sm:$0xf]
  %v67 = vld [vmem:[%s1 + $0x94] sm:$0xf]
  %v68 = vld [vmem:[%s1 + $0x98] sm:$0xf]
  %v69 = vld [vmem:[%s1 + $0x9c] sm:$0xf]
  %v70 = vld [vmem:[%s1 + $0xa0] sm:$0xf]
  %v71 = vld [vmem:[%s1 + $0xa4] sm:$0xf]
  %v72 = vld [vmem:[%s1 + $0xa8] sm:$0xf]
  %v73 = vld [vmem:[%s1 + $0xac] sm:$0xf]
  %v74 = vld [vmem:[%s1 + $0xb0] sm:$0xf]
  %v75 = vld [vmem:[%s1 + $0xb4] sm:$0xf]
  %v76 = vld [vmem:[%s1 + $0xb8] sm:$0xf]
  %v77 = vld [vmem:[%s1 + $0xbc] sm:$0xf]
  %v78 = vld [vmem:[%s1 + $0xc0] sm:$0xf]
  %v79 = vld [vmem:[%s1 + $0xc4] sm:$0xf]
  %v80 = vld [vmem:[%s1 + $0xc8] sm:$0xf]
  %v81 = vld [vmem:[%s1 + $0xcc] sm:$0xf]
  %v82 = vld [vmem:[%s1 + $0xd0] sm:$0xf]
  %v83 = vld [vmem:[%s1 + $0xd4] sm:$0xf]
  %v84 = vld [vmem:[%s1 + $0xd8] sm:$0xf]
  %v85 = vld [vmem:[%s1 + $0xdc] sm:$0xf]
  %v86 = vld [vmem:[%s1 + $0xe0] sm:$0xf]
  %v87 = vld [vmem:[%s1 + $0xe4] sm:$0xf]
  %v88 = vld [vmem:[%s1 + $0xe8] sm:$0xf]
  %v89 = vld [vmem:[%s1 + $0xec] sm:$0xf]
  %v90 = vld [vmem:[%s1 + $0xf0] sm:$0xf]
  %v91 = vld [vmem:[%s1 + $0xf4] sm:$0xf]
  %v92 = vld [vmem:[%s1 + $0xf8] sm:$0xf]
  %v93 = vld [vmem:[%s1 + $0xfc] sm:$0xf]
  %v94 = vld [vmem:[%s1 + $0x100] sm:$0xf]
  %v95 = vld [vmem:[%s1 + $0x104] sm:$0xf]
  %v96 = vld [vmem:[%s1 + $0x108] sm:$0xf]
  %v97 = vld [vmem:[%s1 + $0x10c] sm:$0xf]
  %v98 = vld [vmem:[%s1 + $0x110] sm:$0xf]
  %v99 = vld [vmem:[%s1 + $0x114] sm:$0xf]
  %v100 = vld [vmem:[%s1 + $0x118] sm:$0xf]
  %v101 = vld [vmem:[%s1 + $0x11c] sm:$0xf]
  %v102 = vld [vmem:[%s1 + $0x120] sm:$0xf]
  %v103 = vld [vmem:[%s1 + $0x124] sm:$0xf]
  %v104 = vld [vmem:[%s1 + $0x128] sm:$0xf]
  %v105 = vld [vmem:[%s1 + $0x12c] sm:$0xf]
  %v106 = vld [vmem:[%s1 + $0x130] sm:$0xf]
  %v107 = vld [vmem:[%s1 + $0x134] sm:$0xf]
  %v108 = vld [vmem:[%s1 + $0x138] sm:$0xf]
  %v109 = vld [vmem:[%s1 + $0x13c] sm:$0xf]
  %v110 = vld [vmem:[%s1 + $0x140] sm:$0xf]
  %v111 = vld [vmem:[%s1 + $0x144] sm:$0xf]
  %v112 = vld [vmem:[%s1 + $0x148] sm:$0xf]
  %v113 = vld [vmem:[%s1 + $0x14c] sm:$0xf]
  %v114 = vld [vmem:[%s1 + $0x150] sm:$0xf]
  %v115 = vld [vmem:[%s1 + $0x154] sm:$0xf]
  %v116 = vld [vmem:[%s1 + $0x158] sm:$0xf]
  %v117 = vld [vmem:[%s1 + $0x15c] sm:$0xf]
  %v118 = vld [vmem:[%s1 + $0x160] sm:$0xf]
  %v119 = vld [vmem:[%s1 + $0x164] sm:$0xf]
  %v120 = vld [vmem:[%s1 + $0x168] sm:$0xf]
  %v121 = vld [vmem:[%s1 + $0x16c] sm:$0xf]
  %v122 = vld [vmem:[%s1 + $0x170] sm:$0xf]
  %v123 = vld [vmem:[%s1 + $0x174] sm:$0xf]
  %v124 = vld [vmem:[%s1 + $0x178] sm:$0xf]
  %v125 = vld [vmem:[%s1 + $0x17c] sm:$0xf]
  %v126 = vld [vmem:[%s1 + $0x180] sm:$0xf]
  %v127 = vld [vmem:[%s1 + $0x184] sm:$0xf]
  %v128 = vld [vmem:[%s1 + $0x188] sm:$0xf]
  %v129 = vld [vmem:[%s1 + $0x18c] sm:$0xf]
  %v130 = vld [vmem:[%s1 + $0x190] sm:$0xf]
  %v131 = vld [vmem:[%s1 + $0x194] sm:$0xf]
  %v132 = vld [vmem:[%s1 + $0x198] sm:$0xf]
  %v133 = vld [vmem:[%s1 + $0x19c] sm:$0xf]
  %v134 = vld [vmem:[%s1 + $0x1a0] sm:$0xf]
  %v135 = vld [vmem:[%s1 + $0x1a4] sm:$0xf]
  %v136 = vld [vmem:[%s1 + $0x1a8] sm:$0xf]
  %v137 = vld [vmem:[%s1 + $0x1ac] sm:$0xf]
  %v138 = vld [vmem:[%s1 + $0x1b0] sm:$0xf]
  %v139 = vld [vmem:[%s1 + $0x1b4] sm:$0xf]
  %v140 = vld [vmem:[%s1 + $0x1b8] sm:$0xf]
  %v141 = vld [vmem:[%s1 + $0x1bc] sm:$0xf]
  %v158 = vunpack.c.l.b16 %v14
  %v159 = vunpack.c.h.b16 %v14
  %v160 = vunpack.c.l.b16 %v15
  %v161 = vunpack.c.h.b16 %v15
  %v162 = vunpack.c.l.b16 %v16
  %v163 = vunpack.c.h.b16 %v16
  %v164 = vunpack.c.l.b16 %v17
  %v165 = vunpack.c.l.b16 %v18
  %v166 = vunpack.c.h.b16 %v18
  %v167 = vunpack.c.l.b16 %v19
  %v168 = vunpack.c.h.b16 %v19
  %v169 = vunpack.c.l.b16 %v20
  %v170 = vunpack.c.h.b16 %v20
  %v171 = vunpack.c.l.b16 %v21
  %v172 = vunpack.c.l.b16 %v22
  %v173 = vunpack.c.h.b16 %v22
  %v174 = vunpack.c.l.b16 %v23
  %v175 = vunpack.c.h.b16 %v23
  %v176 = vunpack.c.l.b16 %v24
  %v177 = vunpack.c.h.b16 %v24
  %v178 = vunpack.c.l.b16 %v25
  %v179 = vunpack.c.l.b16 %v26
  %v180 = vunpack.c.h.b16 %v26
  %v181 = vunpack.c.l.b16 %v27
  %v182 = vunpack.c.h.b16 %v27
  %v183 = vunpack.c.l.b16 %v28
  %v184 = vunpack.c.h.b16 %v28
  %v185 = vunpack.c.l.b16 %v29
  %v186 = vpack.c.b16 %v165, %v158
  %v187 = vpack.c.b16 %v166, %v159
  %v188 = vpack.c.b16 %v167, %v160
  %v189 = vpack.c.b16 %v168, %v161
  %v190 = vpack.c.b16 %v169, %v162
  %v191 = vpack.c.b16 %v170, %v163
  %v192 = vpack.c.b16 %v171, %v164
  %v193 = vpack.c.b16 %v179, %v172
  %v194 = vpack.c.b16 %v180, %v173
  %v195 = vpack.c.b16 %v181, %v174
  %v196 = vpack.c.b16 %v182, %v175
  %v197 = vpack.c.b16 %v183, %v176
  %v198 = vpack.c.b16 %v184, %v177
  %v199 = vpack.c.b16 %v185, %v178
  %v326 = vunpack.c.l.b16 %v30
  %v327 = vunpack.c.l.b16 %v31
  %v328 = vunpack.c.l.b16 %v32
  %v329 = vunpack.c.l.b16 %v33
  %v330 = vunpack.c.l.b16 %v34
  %v331 = vunpack.c.l.b16 %v35
  %v332 = vunpack.c.l.b16 %v36
  %v333 = vunpack.c.l.b16 %v37
  %v334 = vunpack.c.l.b16 %v38
  %v335 = vunpack.c.l.b16 %v39
  %v336 = vunpack.c.l.b16 %v40
  %v337 = vunpack.c.l.b16 %v41
  %v338 = vunpack.c.l.b16 %v42
  %v339 = vunpack.c.l.b16 %v43
  %v340 = vunpack.c.l.b16 %v44
  %v341 = vunpack.c.l.b16 %v45
  %v342 = vunpack.c.l.b16 %v46
  %v343 = vunpack.c.l.b16 %v47
  %v344 = vunpack.c.l.b16 %v48
  %v345 = vunpack.c.l.b16 %v49
  %v346 = vunpack.c.l.b16 %v50
  %v347 = vunpack.c.l.b16 %v51
  %v348 = vunpack.c.l.b16 %v52
  %v349 = vunpack.c.l.b16 %v53
  %v350 = vunpack.c.l.b16 %v54
  %v351 = vunpack.c.l.b16 %v55
  %v352 = vunpack.c.l.b16 %v56
  %v353 = vunpack.c.l.b16 %v57
  %v354 = vunpack.c.l.b16 %v58
  %v355 = vunpack.c.l.b16 %v59
  %v356 = vunpack.c.l.b16 %v60
  %v357 = vunpack.c.l.b16 %v61
  %v358 = vunpack.c.l.b16 %v62
  %v359 = vunpack.c.l.b16 %v63
  %v360 = vunpack.c.l.b16 %v64
  %v361 = vunpack.c.l.b16 %v65
  %v362 = vunpack.c.l.b16 %v66
  %v363 = vunpack.c.l.b16 %v67
  %v364 = vunpack.c.l.b16 %v68
  %v365 = vunpack.c.l.b16 %v69
  %v366 = vunpack.c.l.b16 %v70
  %v367 = vunpack.c.l.b16 %v71
  %v368 = vunpack.c.l.b16 %v72
  %v369 = vunpack.c.l.b16 %v73
  %v370 = vunpack.c.l.b16 %v74
  %v371 = vunpack.c.l.b16 %v75
  %v372 = vunpack.c.l.b16 %v76
  %v373 = vunpack.c.l.b16 %v77
  %v374 = vunpack.c.l.b16 %v78
  %v375 = vunpack.c.l.b16 %v79
  %v376 = vunpack.c.l.b16 %v80
  %v377 = vunpack.c.l.b16 %v81
  %v378 = vunpack.c.l.b16 %v82
  %v379 = vunpack.c.l.b16 %v83
  %v380 = vunpack.c.l.b16 %v84
  %v381 = vunpack.c.l.b16 %v85
  %v382 = vunpack.c.l.b16 %v86
  %v383 = vunpack.c.l.b16 %v87
  %v384 = vunpack.c.l.b16 %v88
  %v385 = vunpack.c.l.b16 %v89
  %v386 = vunpack.c.l.b16 %v90
  %v387 = vunpack.c.l.b16 %v91
  %v388 = vunpack.c.l.b16 %v92
  %v389 = vunpack.c.l.b16 %v93
  %v390 = vunpack.c.l.b16 %v94
  %v391 = vunpack.c.l.b16 %v95
  %v392 = vunpack.c.l.b16 %v96
  %v393 = vunpack.c.l.b16 %v97
  %v394 = vunpack.c.l.b16 %v98
  %v395 = vunpack.c.l.b16 %v99
  %v396 = vunpack.c.l.b16 %v100
  %v397 = vunpack.c.l.b16 %v101
  %v398 = vunpack.c.l.b16 %v102
  %v399 = vunpack.c.l.b16 %v103
  %v400 = vunpack.c.l.b16 %v104
  %v401 = vunpack.c.l.b16 %v105
  %v402 = vunpack.c.l.b16 %v106
  %v403 = vunpack.c.l.b16 %v107
  %v404 = vunpack.c.l.b16 %v108
  %v405 = vunpack.c.l.b16 %v109
  %v406 = vunpack.c.l.b16 %v110
  %v407 = vunpack.c.l.b16 %v111
  %v408 = vunpack.c.l.b16 %v112
  %v409 = vunpack.c.l.b16 %v113
  %v410 = vunpack.c.l.b16 %v114
  %v411 = vunpack.c.l.b16 %v115
  %v412 = vunpack.c.l.b16 %v116
  %v413 = vunpack.c.l.b16 %v117
  %v414 = vunpack.c.l.b16 %v118
  %v415 = vunpack.c.l.b16 %v119
  %v416 = vunpack.c.l.b16 %v120
  %v417 = vunpack.c.l.b16 %v121
  %v418 = vunpack.c.l.b16 %v122
  %v419 = vunpack.c.l.b16 %v123
  %v420 = vunpack.c.l.b16 %v124
  %v421 = vunpack.c.l.b16 %v125
  %v422 = vunpack.c.l.b16 %v126
  %v423 = vunpack.c.l.b16 %v127
  %v424 = vunpack.c.l.b16 %v128
  %v425 = vunpack.c.l.b16 %v129
  %v426 = vunpack.c.l.b16 %v130
  %v427 = vunpack.c.l.b16 %v131
  %v428 = vunpack.c.l.b16 %v132
  %v429 = vunpack.c.l.b16 %v133
  %v430 = vunpack.c.l.b16 %v134
  %v431 = vunpack.c.l.b16 %v135
  %v432 = vunpack.c.l.b16 %v136
  %v433 = vunpack.c.l.b16 %v137
  %v434 = vunpack.c.l.b16 %v138
  %v435 = vunpack.c.l.b16 %v139
  %v436 = vunpack.c.l.b16 %v140
  %v437 = vunpack.c.l.b16 %v141
  %v438 = vpack.c.b16 %v327, %v326
  %v439 = vpack.c.b16 %v329, %v328
  %v440 = vpack.c.b16 %v331, %v330
  %v441 = vpack.c.b16 %v333, %v332
  %v442 = vpack.c.b16 %v335, %v334
  %v443 = vpack.c.b16 %v337, %v336
  %v444 = vpack.c.b16 %v339, %v338
  %v445 = vpack.c.b16 %v341, %v340
  %v446 = vpack.c.b16 %v343, %v342
  %v447 = vpack.c.b16 %v345, %v344
  %v448 = vpack.c.b16 %v347, %v346
  %v449 = vpack.c.b16 %v349, %v348
  %v450 = vpack.c.b16 %v351, %v350
  %v451 = vpack.c.b16 %v353, %v352
  %v452 = vpack.c.b16 %v355, %v354
  %v453 = vpack.c.b16 %v357, %v356
  %v454 = vpack.c.b16 %v359, %v358
  %v455 = vpack.c.b16 %v361, %v360
  %v456 = vpack.c.b16 %v363, %v362
  %v457 = vpack.c.b16 %v365, %v364
  %v458 = vpack.c.b16 %v367, %v366
  %v459 = vpack.c.b16 %v369, %v368
  %v460 = vpack.c.b16 %v371, %v370
  %v461 = vpack.c.b16 %v373, %v372
  %v462 = vpack.c.b16 %v375, %v374
  %v463 = vpack.c.b16 %v377, %v376
  %v464 = vpack.c.b16 %v379, %v378
  %v465 = vpack.c.b16 %v381, %v380
  %v466 = vpack.c.b16 %v383, %v382
  %v467 = vpack.c.b16 %v385, %v384
  %v468 = vpack.c.b16 %v387, %v386
  %v469 = vpack.c.b16 %v389, %v388
  %v470 = vpack.c.b16 %v391, %v390
  %v471 = vpack.c.b16 %v393, %v392
  %v472 = vpack.c.b16 %v395, %v394
  %v473 = vpack.c.b16 %v397, %v396
  %v474 = vpack.c.b16 %v399, %v398
  %v475 = vpack.c.b16 %v401, %v400
  %v476 = vpack.c.b16 %v403, %v402
  %v477 = vpack.c.b16 %v405, %v404
  %v478 = vpack.c.b16 %v407, %v406
  %v479 = vpack.c.b16 %v409, %v408
  %v480 = vpack.c.b16 %v411, %v410
  %v481 = vpack.c.b16 %v413, %v412
  %v482 = vpack.c.b16 %v415, %v414
  %v483 = vpack.c.b16 %v417, %v416
  %v484 = vpack.c.b16 %v419, %v418
  %v485 = vpack.c.b16 %v421, %v420
  %v486 = vpack.c.b16 %v423, %v422
  %v487 = vpack.c.b16 %v425, %v424
  %v488 = vpack.c.b16 %v427, %v426
  %v489 = vpack.c.b16 %v429, %v428
  %v490 = vpack.c.b16 %v431, %v430
  %v491 = vpack.c.b16 %v433, %v432
  %v492 = vpack.c.b16 %v435, %v434
  %v493 = vpack.c.b16 %v437, %v436
  %550 = vmatprep.subr.bf16.mxu0 0
  %551 = vmatpush1.bf16.msra.mxu0 %v438
  %552 = vmatprep.subr.bf16.mxu0 0
  %553 = vmatpush1.bf16.msra.mxu0 %v439
  %554 = vmatprep.subr.bf16.mxu0 0
  %555 = vmatpush1.bf16.msra.mxu0 %v440
  %556 = vmatprep.subr.bf16.mxu0 0
  %557 = vmatpush1.bf16.msra.mxu0 %v441
  %558 = vmatprep.subr.bf16.mxu0 0
  %559 = vmatpush1.bf16.msra.mxu0 %v442
  %560 = vmatprep.subr.bf16.mxu0 0
  %561 = vmatpush1.bf16.msra.mxu0 %v443
  %562 = vmatprep.subr.bf16.mxu0 0
  %563 = vmatpush1.bf16.msra.mxu0 %v444
  %564 = vmatprep.subr.bf16.mxu0 0
  %565 = vmatpush1.bf16.msra.mxu0 %v445
  %566 = vmatprep.subr.bf16.mxu0 0
  %567 = vmatpush1.bf16.msra.mxu0 %v446
  %568 = vmatprep.subr.bf16.mxu0 0
  %569 = vmatpush1.bf16.msra.mxu0 %v447
  %570 = vmatprep.subr.bf16.mxu0 0
  %571 = vmatpush1.bf16.msra.mxu0 %v448
  %572 = vmatprep.subr.bf16.mxu0 0
  %573 = vmatpush1.bf16.msra.mxu0 %v449
  %574 = vmatprep.subr.bf16.mxu0 0
  %575 = vmatpush1.bf16.msra.mxu0 %v450
  %576 = vmatprep.subr.bf16.mxu0 0
  %577 = vmatpush1.bf16.msra.mxu0 %v451
  %578 = vmatprep.subr.bf16.mxu0 0
  %579 = vmatpush1.bf16.msra.mxu0 %v452
  %580 = vmatprep.subr.bf16.mxu0 0
  %581 = vmatpush1.bf16.msra.mxu0 %v453
  %582 = vmatprep.mubr.bf16.mxu0 %v187
  %583 = vmatmul.mubr.bf16.gmra.mrb[0].mxu0 %v186
  %v584 = vpop.f32.mrb[0].mxu0
  %v585 = vadd.f32 0.0, %v584
  %v586 = vpop.f32.mrb[0].mxu0
  %v587 = vpop.f32.mrb[0].mxu0
  %v588 = vadd.f32 0.0, %v587
  %v589 = vpop.f32.mrb[0].mxu0
  %590 = vmatprep.mubr.bf16.mxu0 %v194
  %591 = vmatmul.mubr.bf16.gmra.mrb[0].mxu0 %v193
  %v592 = vpop.f32.mrb[0].mxu0
  %v593 = vadd.f32 0.0, %v592
  %v594 = vpop.f32.mrb[0].mxu0
  %v595 = vpop.f32.mrb[0].mxu0
  %v596 = vadd.f32 0.0, %v595
  %v597 = vpop.f32.mrb[0].mxu0
  %598 = vdwg.mxu0
  %599 = vmatprep.subr.bf16.mxu0 0
  %600 = vmatpush1.bf16.msra.mxu0 %v454
  %601 = vmatprep.subr.bf16.mxu0 0
  %602 = vmatpush1.bf16.msra.mxu0 %v455
  %603 = vmatprep.subr.bf16.mxu0 0
  %604 = vmatpush1.bf16.msra.mxu0 %v456
  %605 = vmatprep.subr.bf16.mxu0 0
  %606 = vmatpush1.bf16.msra.mxu0 %v457
  %607 = vmatprep.subr.bf16.mxu0 0
  %608 = vmatpush1.bf16.msra.mxu0 %v458
  %609 = vmatprep.subr.bf16.mxu0 0
  %610 = vmatpush1.bf16.msra.mxu0 %v459
  %611 = vmatprep.subr.bf16.mxu0 0
  %612 = vmatpush1.bf16.msra.mxu0 %v460
  %613 = vmatprep.subr.bf16.mxu0 0
  %614 = vmatpush1.bf16.msra.mxu0 %v461
  %615 = vmatprep.subr.bf16.mxu0 0
  %616 = vmatpush1.bf16.msra.mxu0 %v462
  %617 = vmatprep.subr.bf16.mxu0 0
  %618 = vmatpush1.bf16.msra.mxu0 %v463
  %619 = vmatprep.subr.bf16.mxu0 0
  %620 = vmatpush1.bf16.msra.mxu0 %v464
  %621 = vmatprep.subr.bf16.mxu0 0
  %622 = vmatpush1.bf16.msra.mxu0 %v465
  %623 = vmatprep.subr.bf16.mxu0 0
  %624 = vmatpush1.bf16.msra.mxu0 %v466
  %625 = vmatprep.subr.bf16.mxu0 0
  %626 = vmatpush1.bf16.msra.mxu0 %v467
  %627 = vmatprep.subr.bf16.mxu0 0
  %628 = vmatpush1.bf16.msra.mxu0 %v468
  %629 = vmatprep.subr.bf16.mxu0 0
  %630 = vmatpush1.bf16.msra.mxu0 %v469
  %631 = vmatprep.mubr.bf16.mxu0 %v189
  %632 = vmatmul.mubr.bf16.gmra.mrb[0].mxu0 %v188
  %v633 = vpop.f32.mrb[0].mxu0
  %v634 = vadd.f32 %v585, %v633
  %v635 = vpop.f32.mrb[0].mxu0
  %v636 = vpop.f32.mrb[0].mxu0
  %v637 = vadd.f32 %v588, %v636
  %v638 = vpop.f32.mrb[0].mxu0
  %639 = vmatprep.mubr.bf16.mxu0 %v196
  %640 = vmatmul.mubr.bf16.gmra.mrb[0].mxu0 %v195
  %v641 = vpop.f32.mrb[0].mxu0
  %v642 = vadd.f32 %v593, %v641
  %v643 = vpop.f32.mrb[0].mxu0
  %v644 = vpop.f32.mrb[0].mxu0
  %v645 = vadd.f32 %v596, %v644
  %v646 = vpop.f32.mrb[0].mxu0
  %647 = vdwg.mxu0
  %648 = vmatprep.subr.bf16.mxu0 0
  %649 = vmatpush1.bf16.msra.mxu0 %v470
  %650 = vmatprep.subr.bf16.mxu0 0
  %651 = vmatpush1.bf16.msra.mxu0 %v471
  %652 = vmatprep.subr.bf16.mxu0 0
  %653 = vmatpush1.bf16.msra.mxu0 %v472
  %654 = vmatprep.subr.bf16.mxu0 0
  %655 = vmatpush1.bf16.msra.mxu0 %v473
  %656 = vmatprep.subr.bf16.mxu0 0
  %657 = vmatpush1.bf16.msra.mxu0 %v474
  %658 = vmatprep.subr.bf16.mxu0 0
  %659 = vmatpush1.bf16.msra.mxu0 %v475
  %660 = vmatprep.subr.bf16.mxu0 0
  %661 = vmatpush1.bf16.msra.mxu0 %v476
  %662 = vmatprep.subr.bf16.mxu0 0
  %663 = vmatpush1.bf16.msra.mxu0 %v477
  %664 = vmatprep.subr.bf16.mxu0 0
  %665 = vmatpush1.bf16.msra.mxu0 %v478
  %666 = vmatprep.subr.bf16.mxu0 0
  %667 = vmatpush1.bf16.msra.mxu0 %v479
  %668 = vmatprep.subr.bf16.mxu0 0
  %669 = vmatpush1.bf16.msra.mxu0 %v480
  %670 = vmatprep.subr.bf16.mxu0 0
  %671 = vmatpush1.bf16.msra.mxu0 %v481
  %672 = vmatprep.subr.bf16.mxu0 0
  %673 = vmatpush1.bf16.msra.mxu0 %v482
  %674 = vmatprep.subr.bf16.mxu0 0
  %675 = vmatpush1.bf16.msra.mxu0 %v483
  %676 = vmatprep.subr.bf16.mxu0 0
  %677 = vmatpush1.bf16.msra.mxu0 %v484
  %678 = vmatprep.subr.bf16.mxu0 0
  %679 = vmatpush1.bf16.msra.mxu0 %v485
  %680 = vmatprep.mubr.bf16.mxu0 %v191
  %681 = vmatmul.mubr.bf16.gmra.mrb[0].mxu0 %v190
  %v682 = vpop.f32.mrb[0].mxu0
  %v683 = vadd.f32 %v634, %v682
  %v684 = vpop.f32.mrb[0].mxu0
  %v685 = vpop.f32.mrb[0].mxu0
  %v686 = vadd.f32 %v637, %v685
  %v687 = vpop.f32.mrb[0].mxu0
  %688 = vmatprep.mubr.bf16.mxu0 %v198
  %689 = vmatmul.mubr.bf16.gmra.mrb[0].mxu0 %v197
  %v690 = vpop.f32.mrb[0].mxu0
  %v691 = vadd.f32 %v642, %v690
  %v692 = vpop.f32.mrb[0].mxu0
  %v693 = vpop.f32.mrb[0].mxu0
  %v694 = vadd.f32 %v645, %v693
  %v695 = vpop.f32.mrb[0].mxu0
  %696 = vdwg.mxu0
  %697 = vmatprep.subr.bf16.mxu0 0
  %698 = vmatpush1.bf16.msra.mxu0 %v486
  %699 = vmatprep.subr.bf16.mxu0 0
  %700 = vmatpush1.bf16.msra.mxu0 %v487
  %701 = vmatprep.subr.bf16.mxu0 0
  %702 = vmatpush1.bf16.msra.mxu0 %v488
  %703 = vmatprep.subr.bf16.mxu0 0
  %704 = vmatpush1.bf16.msra.mxu0 %v489
  %705 = vmatprep.subr.bf16.mxu0 0
  %706 = vmatpush1.bf16.msra.mxu0 %v490
  %707 = vmatprep.subr.bf16.mxu0 0
  %708 = vmatpush1.bf16.msra.mxu0 %v491
  %709 = vmatprep.subr.bf16.mxu0 0
  %710 = vmatpush1.bf16.msra.mxu0 %v492
  %711 = vmatprep.subr.bf16.mxu0 0
  %712 = vmatpush1.bf16.msra.mxu0 %v493
  %713 = vmatprep.subr.bf16.mxu0 0
  %714 = vmatpush1.bf16.msra.mxu0 0
  %715 = vmatprep.subr.bf16.mxu0 0
  %716 = vmatpush1.bf16.msra.mxu0 0
  %717 = vmatprep.subr.bf16.mxu0 0
  %718 = vmatpush1.bf16.msra.mxu0 0
  %719 = vmatprep.subr.bf16.mxu0 0
  %720 = vmatpush1.bf16.msra.mxu0 0
  %721 = vmatprep.subr.bf16.mxu0 0
  %722 = vmatpush1.bf16.msra.mxu0 0
  %723 = vmatprep.subr.bf16.mxu0 0
  %724 = vmatpush1.bf16.msra.mxu0 0
  %725 = vmatprep.subr.bf16.mxu0 0
  %726 = vmatpush1.bf16.msra.mxu0 0
  %727 = vmatprep.subr.bf16.mxu0 0
  %728 = vmatpush1.bf16.msra.mxu0 0
  %729 = vmatprep.mubr.bf16.mxu0 0
  %730 = vmatmul.mubr.bf16.gmra.mrb[0].mxu0 %v192
  %v731 = vpop.f32.mrb[0].mxu0
  %v732 = vadd.f32 %v683, %v731
  %v733 = vpop.f32.mrb[0].mxu0
  %v734 = vpop.f32.mrb[0].mxu0
  %v735 = vadd.f32 %v686, %v734
  %v736 = vpop.f32.mrb[0].mxu0
  %737 = vmatprep.mubr.bf16.mxu0 0
  %738 = vmatmul.mubr.bf16.gmra.mrb[0].mxu0 %v199
  %v739 = vpop.f32.mrb[0].mxu0
  %v740 = vadd.f32 %v691, %v739
  %v741 = vpop.f32.mrb[0].mxu0
  %v742 = vpop.f32.mrb[0].mxu0
  %v743 = vadd.f32 %v694, %v742
  %v744 = vpop.f32.mrb[0].mxu0
  %745 = vdwg.mxu0
  %v746 = vpack.c.bf16 %v735, %v732
  %v747 = vpack.c.bf16 %v743, %v740
  %v750 = vunpack.c.l.b16 %v746
  %v751 = vunpack.c.h.b16 %v746
  %v752 = vunpack.c.l.b16 %v747
  %v753 = vunpack.c.h.b16 %v747
  %v754 = vpack.c.b16 %v750, %v750
  %v755 = vpack.c.b16 %v751, %v751
  %v756 = vpack.c.b16 %v752, %v752
  %v757 = vpack.c.b16 %v753, %v753
  %762 = vst [vmem:[%s2] sm:$0xf] %v754
  %763 = vst [vmem:[%s2 + $0x4] sm:$0xf] %v755
  %764 = vst [vmem:[%s2 + $0x8] sm:$0xf] %v756
  %765 = vst [vmem:[%s2 + $0xc] sm:$0xf] %v757
  %766 = vst [vmem:[%s3] sm:$0xff] 0.0
  %v767 = vadd.f32 %v732, %v735
  %v768 = vadd.f32 %v767, %v740
  %v769 = vadd.f32 %v768, %v743
  %v770 = vrot.slane %v769, 4
  %v771 = vadd.f32 %v769, %v770
  %v772 = vrot.slane %v771, 2
  %v773 = vadd.f32 %v771, %v772
  %v774 = vrot.slane %v773, 1
  %v775 = vadd.f32 %v773, %v774
  %776 = vst [vmem:[%s3] sm:$0x1] %v775
  %v777 = vmul.f32 %v732, %v732
  %v778 = vmul.f32 %v735, %v735
  %v779 = vmul.f32 %v740, %v740
  %v780 = vmul.f32 %v743, %v743
  %v781 = vadd.f32 %v777, %v778
  %v782 = vadd.f32 %v781, %v779
  %v783 = vadd.f32 %v782, %v780
  %v784 = vrot.slane %v783, 4
  %v785 = vadd.f32 %v783, %v784
  %v786 = vrot.slane %v785, 2
  %v787 = vadd.f32 %v785, %v786
  %v788 = vrot.slane %v787, 1
  %v789 = vadd.f32 %v787, %v788
  %790 = vst [vmem:[%s3 + $0x1] sm:$0x1] %v789
  // Predicated region
  $region10: #{discriminator_forward.13} parent=0 // pred_check
    _
  $region11: #{discriminator_forward.13} parent=0 // pred_check_branch
    %792 = sbr.rel (0) target = $region13
  $region12: #{discriminator_forward.13} parent=0 // pred_region
    _
  $region13: #{discriminator_forward.13} parent=0 // pred_fallthru
    _
  // Predicated region
  $region14: #{discriminator_forward.13} parent=0 // pred_check
    _
  $region15: #{discriminator_forward.13} parent=0 // pred_check_branch
    %794 = sbr.rel (0) target = $region17
  $region16: #{discriminator_forward.13} parent=0 // pred_region
    _
  $region17: #{discriminator_forward.13} parent=0 // pred_fallthru
    _
  // Predicated region
  $region18: #{discriminator_forward.13} parent=0 // pred_check
    _
  $region19: #{discriminator_forward.13} parent=0 // pred_check_branch
    %796 = sbr.rel (0) target = $region21
  $region20: #{discriminator_forward.13} parent=0 // pred_region
    _
  $region21: #{discriminator_forward.13} parent=0 // pred_fallthru
    _
  // Predicated region
  $region22: #{discriminator_forward.13} parent=0 // pred_check
    _
  $region23: #{discriminator_forward.13} parent=0 // pred_check_branch
    %798 = sbr.rel (0) target = $region25
  $region24: #{discriminator_forward.13} parent=0 // pred_region
    _
  $region25: #{discriminator_forward.13} parent=0 // pred_fallthru
    _

// kernel: discriminator_forward.15
$region0: #{discriminator_forward.15}
  #allocation0 [shape = 'u32[]', space=smem, size = 0x4, offset = 0x4, fixed_abs, tag = 'smem constant byte address 0x4 - core index']
  #allocation1 [shape = 'u32[144,128]{1,0:T(1,128)}', space=vmem, size = 0x12000, scoped, tag = 'internal scratch']
  %s0 = inlined_call_operand.vmem [shape: bf16[16,1024], index: 0, kind: input, shape index: {}]
  %s1 = inlined_call_operand.vmem [shape: bf16[1024,128], index: 1, kind: input, shape index: {}]
  %s2 = inlined_call_operand.vmem [shape: f32[1,128], index: 2, kind: input, shape index: {}]
  %s3 = inlined_call_operand.vmem [shape: f32[16,128], index: 3, kind: output, shape index: {}]
  %s4 = sld [smem:[#allocation0]]
  $region22: #{discriminator_forward.15} parent=0
    _
  %s6 = ssub.s32 1, %s4
  %s7 = scalar_select 0, %s6, %s4
  // Predicated region
  $region2: #{discriminator_forward.15} parent=0 // pred_check
    _
  $region3: #{discriminator_forward.15} parent=0 // pred_check_branch
    %9 = sbr.rel (0) target = $region5
  $region4: #{discriminator_forward.15} parent=0 // pred_region
    _
  $region5: #{discriminator_forward.15} parent=0 // pred_fallthru
    _
  // Predicated region
  $region6: #{discriminator_forward.15} parent=0 // pred_check
    _
  $region7: #{discriminator_forward.15} parent=0 // pred_check_branch
    %11 = sbr.rel (0) target = $region9
  $region8: #{discriminator_forward.15} parent=0 // pred_region
    _
  $region9: #{discriminator_forward.15} parent=0 // pred_fallthru
    _
  // Predicated region
  $region10: #{discriminator_forward.15} parent=0 // pred_check
    _
  $region11: #{discriminator_forward.15} parent=0 // pred_check_branch
    %13 = sbr.rel (0) target = $region13
  $region12: #{discriminator_forward.15} parent=0 // pred_region
    _
  $region13: #{discriminator_forward.15} parent=0 // pred_fallthru
    _
  %v15 = vld [vmem:[%s0] sm:$0xff]
  %v16 = vld [vmem:[%s0 + $0x8] sm:$0xff]
  %v17 = vld [vmem:[%s0 + $0x10] sm:$0xff]
  %v18 = vld [vmem:[%s0 + $0x18] sm:$0xff]
  %v19 = vld [vmem:[%s0 + $0x20] sm:$0xff]
  %v20 = vld [vmem:[%s0 + $0x28] sm:$0xff]
  %v21 = vld [vmem:[%s0 + $0x30] sm:$0xff]
  %v22 = vld [vmem:[%s0 + $0x38] sm:$0xff]
  %v23 = vld [vmem:[%s1] sm:$0xf]
  %v24 = vld [vmem:[%s1 + $0x4] sm:$0xf]
  %v25 = vld [vmem:[%s1 + $0x8] sm:$0xf]
  %v26 = vld [vmem:[%s1 + $0xc] sm:$0xf]
  %v27 = vld [vmem:[%s1 + $0x10] sm:$0xf]
  %v28 = vld [vmem:[%s1 + $0x14] sm:$0xf]
  %v29 = vld [vmem:[%s1 + $0x18] sm:$0xf]
  %v30 = vld [vmem:[%s1 + $0x1c] sm:$0xf]
  %v31 = vld [vmem:[%s1 + $0x20] sm:$0xf]
  %v32 = vld [vmem:[%s1 + $0x24] sm:$0xf]
  %v33 = vld [vmem:[%s1 + $0x28] sm:$0xf]
  %v34 = vld [vmem:[%s1 + $0x2c] sm:$0xf]
  %v35 = vld [vmem:[%s1 + $0x30] sm:$0xf]
  %v36 = vld [vmem:[%s1 + $0x34] sm:$0xf]
  %v37 = vld [vmem:[%s1 + $0x38] sm:$0xf]
  %v38 = vld [vmem:[%s1 + $0x3c] sm:$0xf]
  %v39 = vld [vmem:[%s1 + $0x40] sm:$0xf]
  %v40 = vld [vmem:[%s1 + $0x44] sm:$0xf]
  %v41 = vld [vmem:[%s1 + $0x48] sm:$0xf]
  %v42 = vld [vmem:[%s1 + $0x4c] sm:$0xf]
  %v43 = vld [vmem:[%s1 + $0x50] sm:$0xf]
  %v44 = vld [vmem:[%s1 + $0x54] sm:$0xf]
  %v45 = vld [vmem:[%s1 + $0x58] sm:$0xf]
  %v46 = vld [vmem:[%s1 + $0x5c] sm:$0xf]
  %v47 = vld [vmem:[%s1 + $0x60] sm:$0xf]
  %v48 = vld [vmem:[%s1 + $0x64] sm:$0xf]
  %v49 = vld [vmem:[%s1 + $0x68] sm:$0xf]
  %v50 = vld [vmem:[%s1 + $0x6c] sm:$0xf]
  %v51 = vld [vmem:[%s1 + $0x70] sm:$0xf]
  %v52 = vld [vmem:[%s1 + $0x74] sm:$0xf]
  %v53 = vld [vmem:[%s1 + $0x78] sm:$0xf]
  %v54 = vld [vmem:[%s1 + $0x7c] sm:$0xf]
  %v55 = vld [vmem:[%s1 + $0x80] sm:$0xf]
  %v56 = vld [vmem:[%s1 + $0x84] sm:$0xf]
  %v57 = vld [vmem:[%s1 + $0x88] sm:$0xf]
  %v58 = vld [vmem:[%s1 + $0x8c] sm:$0xf]
  %v59 = vld [vmem:[%s1 + $0x90] sm:$0xf]
  %v60 = vld [vmem:[%s1 + $0x94] sm:$0xf]
  %v61 = vld [vmem:[%s1 + $0x98] sm:$0xf]
  %v62 = vld [vmem:[%s1 + $0x9c] sm:$0xf]
  %v63 = vld [vmem:[%s1 + $0xa0] sm:$0xf]
  %v64 = vld [vmem:[%s1 + $0xa4] sm:$0xf]
  %v65 = vld [vmem:[%s1 + $0xa8] sm:$0xf]
  %v66 = vld [vmem:[%s1 + $0xac] sm:$0xf]
  %v67 = vld [vmem:[%s1 + $0xb0] sm:$0xf]
  %v68 = vld [vmem:[%s1 + $0xb4] sm:$0xf]
  %v69 = vld [vmem:[%s1 + $0xb8] sm:$0xf]
  %v70 = vld [vmem:[%s1 + $0xbc] sm:$0xf]
  %v71 = vld [vmem:[%s1 + $0xc0] sm:$0xf]
  %v72 = vld [vmem:[%s1 + $0xc4] sm:$0xf]
  %v73 = vld [vmem:[%s1 + $0xc8] sm:$0xf]
  %v74 = vld [vmem:[%s1 + $0xcc] sm:$0xf]
  %v75 = vld [vmem:[%s1 + $0xd0] sm:$0xf]
  %v76 = vld [vmem:[%s1 + $0xd4] sm:$0xf]
  %v77 = vld [vmem:[%s1 + $0xd8] sm:$0xf]
  %v78 = vld [vmem:[%s1 + $0xdc] sm:$0xf]
  %v79 = vld [vmem:[%s1 + $0xe0] sm:$0xf]
  %v80 = vld [vmem:[%s1 + $0xe4] sm:$0xf]
  %v81 = vld [vmem:[%s1 + $0xe8] sm:$0xf]
  %v82 = vld [vmem:[%s1 + $0xec] sm:$0xf]
  %v83 = vld [vmem:[%s1 + $0xf0] sm:$0xf]
  %v84 = vld [vmem:[%s1 + $0xf4] sm:$0xf]
  %v85 = vld [vmem:[%s1 + $0xf8] sm:$0xf]
  %v86 = vld [vmem:[%s1 + $0xfc] sm:$0xf]
  %v87 = vld [vmem:[%s1 + $0x100] sm:$0xf]
  %v88 = vld [vmem:[%s1 + $0x104] sm:$0xf]
  %v89 = vld [vmem:[%s1 + $0x108] sm:$0xf]
  %v90 = vld [vmem:[%s1 + $0x10c] sm:$0xf]
  %v91 = vld [vmem:[%s1 + $0x110] sm:$0xf]
  %v92 = vld [vmem:[%s1 + $0x114] sm:$0xf]
  %v93 = vld [vmem:[%s1 + $0x118] sm:$0xf]
  %v94 = vld [vmem:[%s1 + $0x11c] sm:$0xf]
  %v95 = vld [vmem:[%s1 + $0x120] sm:$0xf]
  %v96 = vld [vmem:[%s1 + $0x124] sm:$0xf]
  %v97 = vld [vmem:[%s1 + $0x128] sm:$0xf]
  %v98 = vld [vmem:[%s1 + $0x12c] sm:$0xf]
  %v99 = vld [vmem:[%s1 + $0x130] sm:$0xf]
  %v100 = vld [vmem:[%s1 + $0x134] sm:$0xf]
  %v101 = vld [vmem:[%s1 + $0x138] sm:$0xf]
  %v102 = vld [vmem:[%s1 + $0x13c] sm:$0xf]
  %v103 = vld [vmem:[%s1 + $0x140] sm:$0xf]
  %v104 = vld [vmem:[%s1 + $0x144] sm:$0xf]
  %v105 = vld [vmem:[%s1 + $0x148] sm:$0xf]
  %v106 = vld [vmem:[%s1 + $0x14c] sm:$0xf]
  %v107 = vld [vmem:[%s1 + $0x150] sm:$0xf]
  %v108 = vld [vmem:[%s1 + $0x154] sm:$0xf]
  %v109 = vld [vmem:[%s1 + $0x158] sm:$0xf]
  %v110 = vld [vmem:[%s1 + $0x15c] sm:$0xf]
  %v111 = vld [vmem:[%s1 + $0x160] sm:$0xf]
  %v112 = vld [vmem:[%s1 + $0x164] sm:$0xf]
  %v113 = vld [vmem:[%s1 + $0x168] sm:$0xf]
  %v114 = vld [vmem:[%s1 + $0x16c] sm:$0xf]
  %v115 = vld [vmem:[%s1 + $0x170] sm:$0xf]
  %v116 = vld [vmem:[%s1 + $0x174] sm:$0xf]
  %v117 = vld [vmem:[%s1 + $0x178] sm:$0xf]
  %v118 = vld [vmem:[%s1 + $0x17c] sm:$0xf]
  %v119 = vld [vmem:[%s1 + $0x180] sm:$0xf]
  %v120 = vld [vmem:[%s1 + $0x184] sm:$0xf]
  %v121 = vld [vmem:[%s1 + $0x188] sm:$0xf]
  %v122 = vld [vmem:[%s1 + $0x18c] sm:$0xf]
  %v123 = vld [vmem:[%s1 + $0x190] sm:$0xf]
  %v124 = vld [vmem:[%s1 + $0x194] sm:$0xf]
  %v125 = vld [vmem:[%s1 + $0x198] sm:$0xf]
  %v126 = vld [vmem:[%s1 + $0x19c] sm:$0xf]
  %v127 = vld [vmem:[%s1 + $0x1a0] sm:$0xf]
  %v128 = vld [vmem:[%s1 + $0x1a4] sm:$0xf]
  %v129 = vld [vmem:[%s1 + $0x1a8] sm:$0xf]
  %v130 = vld [vmem:[%s1 + $0x1ac] sm:$0xf]
  %v131 = vld [vmem:[%s1 + $0x1b0] sm:$0xf]
  %v132 = vld [vmem:[%s1 + $0x1b4] sm:$0xf]
  %v133 = vld [vmem:[%s1 + $0x1b8] sm:$0xf]
  %v134 = vld [vmem:[%s1 + $0x1bc] sm:$0xf]
  %v135 = vld [vmem:[%s1 + $0x1c0] sm:$0xf]
  %v136 = vld [vmem:[%s1 + $0x1c4] sm:$0xf]
  %v137 = vld [vmem:[%s1 + $0x1c8] sm:$0xf]
  %v138 = vld [vmem:[%s1 + $0x1cc] sm:$0xf]
  %v139 = vld [vmem:[%s1 + $0x1d0] sm:$0xf]
  %v140 = vld [vmem:[%s1 + $0x1d4] sm:$0xf]
  %v141 = vld [vmem:[%s1 + $0x1d8] sm:$0xf]
  %v142 = vld [vmem:[%s1 + $0x1dc] sm:$0xf]
  %v143 = vld [vmem:[%s1 + $0x1e0] sm:$0xf]
  %v144 = vld [vmem:[%s1 + $0x1e4] sm:$0xf]
  %v145 = vld [vmem:[%s1 + $0x1e8] sm:$0xf]
  %v146 = vld [vmem:[%s1 + $0x1ec] sm:$0xf]
  %v147 = vld [vmem:[%s1 + $0x1f0] sm:$0xf]
  %v148 = vld [vmem:[%s1 + $0x1f4] sm:$0xf]
  %v149 = vld [vmem:[%s1 + $0x1f8] sm:$0xf]
  %v150 = vld [vmem:[%s1 + $0x1fc] sm:$0xf]
  %v151 = vld [vmem:[%s2] sm:$0x1]
  %v153 = vlaneseq
  %v154 = vshrl.u32 %v153, 7
  %v155 = vsub.s32 0, %v154
  %v156 = vrot.slane %v151, %v155
  %v166 = vunpack.c.l.b16 %v15
  %v167 = vunpack.c.h.b16 %v15
  %v168 = vunpack.c.l.b16 %v16
  %v169 = vunpack.c.h.b16 %v16
  %v170 = vunpack.c.l.b16 %v17
  %v171 = vunpack.c.h.b16 %v17
  %v172 = vunpack.c.l.b16 %v18
  %v173 = vunpack.c.h.b16 %v18
  %v174 = vunpack.c.l.b16 %v19
  %v175 = vunpack.c.h.b16 %v19
  %v176 = vunpack.c.l.b16 %v20
  %v177 = vunpack.c.h.b16 %v20
  %v178 = vunpack.c.l.b16 %v21
  %v179 = vunpack.c.h.b16 %v21
  %v180 = vunpack.c.l.b16 %v22
  %v181 = vunpack.c.h.b16 %v22
  %v182 = vpack.c.b16 %v174, %v166
  %v183 = vpack.c.b16 %v175, %v167
  %v184 = vpack.c.b16 %v176, %v168
  %v185 = vpack.c.b16 %v177, %v169
  %v186 = vpack.c.b16 %v178, %v170
  %v187 = vpack.c.b16 %v179, %v171
  %v188 = vpack.c.b16 %v180, %v172
  %v189 = vpack.c.b16 %v181, %v173
  %v326 = vunpack.c.l.b16 %v23
  %v327 = vunpack.c.l.b16 %v24
  %v328 = vunpack.c.l.b16 %v25
  %v329 = vunpack.c.l.b16 %v26
  %v330 = vunpack.c.l.b16 %v27
  %v331 = vunpack.c.l.b16 %v28
  %v332 = vunpack.c.l.b16 %v29
  %v333 = vunpack.c.l.b16 %v30
  %v334 = vunpack.c.l.b16 %v31
  %v335 = vunpack.c.l.b16 %v32
  %v336 = vunpack.c.l.b16 %v33
  %v337 = vunpack.c.l.b16 %v34
  %v338 = vunpack.c.l.b16 %v35
  %v339 = vunpack.c.l.b16 %v36
  %v340 = vunpack.c.l.b16 %v37
  %v341 = vunpack.c.l.b16 %v38
  %v342 = vunpack.c.l.b16 %v39
  %v343 = vunpack.c.l.b16 %v40
  %v344 = vunpack.c.l.b16 %v41
  %v345 = vunpack.c.l.b16 %v42
  %v346 = vunpack.c.l.b16 %v43
  %v347 = vunpack.c.l.b16 %v44
  %v348 = vunpack.c.l.b16 %v45
  %v349 = vunpack.c.l.b16 %v46
  %v350 = vunpack.c.l.b16 %v47
  %v351 = vunpack.c.l.b16 %v48
  %v352 = vunpack.c.l.b16 %v49
  %v353 = vunpack.c.l.b16 %v50
  %v354 = vunpack.c.l.b16 %v51
  %v355 = vunpack.c.l.b16 %v52
  %v356 = vunpack.c.l.b16 %v53
  %v357 = vunpack.c.l.b16 %v54
  %v358 = vunpack.c.l.b16 %v55
  %v359 = vunpack.c.l.b16 %v56
  %v360 = vunpack.c.l.b16 %v57
  %v361 = vunpack.c.l.b16 %v58
  %v362 = vunpack.c.l.b16 %v59
  %v363 = vunpack.c.l.b16 %v60
  %v364 = vunpack.c.l.b16 %v61
  %v365 = vunpack.c.l.b16 %v62
  %v366 = vunpack.c.l.b16 %v63
  %v367 = vunpack.c.l.b16 %v64
  %v368 = vunpack.c.l.b16 %v65
  %v369 = vunpack.c.l.b16 %v66
  %v370 = vunpack.c.l.b16 %v67
  %v371 = vunpack.c.l.b16 %v68
  %v372 = vunpack.c.l.b16 %v69
  %v373 = vunpack.c.l.b16 %v70
  %v374 = vunpack.c.l.b16 %v71
  %v375 = vunpack.c.l.b16 %v72
  %v376 = vunpack.c.l.b16 %v73
  %v377 = vunpack.c.l.b16 %v74
  %v378 = vunpack.c.l.b16 %v75
  %v379 = vunpack.c.l.b16 %v76
  %v380 = vunpack.c.l.b16 %v77
  %v381 = vunpack.c.l.b16 %v78
  %v382 = vunpack.c.l.b16 %v79
  %v383 = vunpack.c.l.b16 %v80
  %v384 = vunpack.c.l.b16 %v81
  %v385 = vunpack.c.l.b16 %v82
  %v386 = vunpack.c.l.b16 %v83
  %v387 = vunpack.c.l.b16 %v84
  %v388 = vunpack.c.l.b16 %v85
  %v389 = vunpack.c.l.b16 %v86
  %v390 = vunpack.c.l.b16 %v87
  %v391 = vunpack.c.l.b16 %v88
  %v392 = vunpack.c.l.b16 %v89
  %v393 = vunpack.c.l.b16 %v90
  %v394 = vunpack.c.l.b16 %v91
  %v395 = vunpack.c.l.b16 %v92
  %v396 = vunpack.c.l.b16 %v93
  %v397 = vunpack.c.l.b16 %v94
  %v398 = vunpack.c.l.b16 %v95
  %v399 = vunpack.c.l.b16 %v96
  %v400 = vunpack.c.l.b16 %v97
  %v401 = vunpack.c.l.b16 %v98
  %v402 = vunpack.c.l.b16 %v99
  %v403 = vunpack.c.l.b16 %v100
  %v404 = vunpack.c.l.b16 %v101
  %v405 = vunpack.c.l.b16 %v102
  %v406 = vunpack.c.l.b16 %v103
  %v407 = vunpack.c.l.b16 %v104
  %v408 = vunpack.c.l.b16 %v105
  %v409 = vunpack.c.l.b16 %v106
  %v410 = vunpack.c.l.b16 %v107
  %v411 = vunpack.c.l.b16 %v108
  %v412 = vunpack.c.l.b16 %v109
  %v413 = vunpack.c.l.b16 %v110
  %v414 = vunpack.c.l.b16 %v111
  %v415 = vunpack.c.l.b16 %v112
  %v416 = vunpack.c.l.b16 %v113
  %v417 = vunpack.c.l.b16 %v114
  %v418 = vunpack.c.l.b16 %v115
  %v419 = vunpack.c.l.b16 %v116
  %v420 = vunpack.c.l.b16 %v117
  %v421 = vunpack.c.l.b16 %v118
  %v422 = vunpack.c.l.b16 %v119
  %v423 = vunpack.c.l.b16 %v120
  %v424 = vunpack.c.l.b16 %v121
  %v425 = vunpack.c.l.b16 %v122
  %v426 = vunpack.c.l.b16 %v123
  %v427 = vunpack.c.l.b16 %v124
  %v428 = vunpack.c.l.b16 %v125
  %v429 = vunpack.c.l.b16 %v126
  %v430 = vunpack.c.l.b16 %v127
  %v431 = vunpack.c.l.b16 %v128
  %v432 = vunpack.c.l.b16 %v129
  %v433 = vunpack.c.l.b16 %v130
  %v434 = vunpack.c.l.b16 %v131
  %v435 = vunpack.c.l.b16 %v132
  %v436 = vunpack.c.l.b16 %v133
  %v437 = vunpack.c.l.b16 %v134
  %v438 = vunpack.c.l.b16 %v135
  %v439 = vunpack.c.l.b16 %v136
  %v440 = vunpack.c.l.b16 %v137
  %v441 = vunpack.c.l.b16 %v138
  %v442 = vunpack.c.l.b16 %v139
  %v443 = vunpack.c.l.b16 %v140
  %v444 = vunpack.c.l.b16 %v141
  %v445 = vunpack.c.l.b16 %v142
  %v446 = vunpack.c.l.b16 %v143
  %v447 = vunpack.c.l.b16 %v144
  %v448 = vunpack.c.l.b16 %v145
  %v449 = vunpack.c.l.b16 %v146
  %v450 = vunpack.c.l.b16 %v147
  %v451 = vunpack.c.l.b16 %v148
  %v452 = vunpack.c.l.b16 %v149
  %v453 = vunpack.c.l.b16 %v150
  %v454 = vpack.c.b16 %v327, %v326
  %v455 = vpack.c.b16 %v329, %v328
  %v456 = vpack.c.b16 %v331, %v330
  %v457 = vpack.c.b16 %v333, %v332
  %v458 = vpack.c.b16 %v335, %v334
  %v459 = vpack.c.b16 %v337, %v336
  %v460 = vpack.c.b16 %v339, %v338
  %v461 = vpack.c.b16 %v341, %v340
  %v462 = vpack.c.b16 %v343, %v342
  %v463 = vpack.c.b16 %v345, %v344
  %v464 = vpack.c.b16 %v347, %v346
  %v465 = vpack.c.b16 %v349, %v348
  %v466 = vpack.c.b16 %v351, %v350
  %v467 = vpack.c.b16 %v353, %v352
  %v468 = vpack.c.b16 %v355, %v354
  %v469 = vpack.c.b16 %v357, %v356
  %v470 = vpack.c.b16 %v359, %v358
  %v471 = vpack.c.b16 %v361, %v360
  %v472 = vpack.c.b16 %v363, %v362
  %v473 = vpack.c.b16 %v365, %v364
  %v474 = vpack.c.b16 %v367, %v366
  %v475 = vpack.c.b16 %v369, %v368
  %v476 = vpack.c.b16 %v371, %v370
  %v477 = vpack.c.b16 %v373, %v372
  %v478 = vpack.c.b16 %v375, %v374
  %v479 = vpack.c.b16 %v377, %v376
  %v480 = vpack.c.b16 %v379, %v378
  %v481 = vpack.c.b16 %v381, %v380
  %v482 = vpack.c.b16 %v383, %v382
  %v483 = vpack.c.b16 %v385, %v384
  %v484 = vpack.c.b16 %v387, %v386
  %v485 = vpack.c.b16 %v389, %v388
  %v486 = vpack.c.b16 %v391, %v390
  %v487 = vpack.c.b16 %v393, %v392
  %v488 = vpack.c.b16 %v395, %v394
  %v489 = vpack.c.b16 %v397, %v396
  %v490 = vpack.c.b16 %v399, %v398
  %v491 = vpack.c.b16 %v401, %v400
  %v492 = vpack.c.b16 %v403, %v402
  %v493 = vpack.c.b16 %v405, %v404
  %v494 = vpack.c.b16 %v407, %v406
  %v495 = vpack.c.b16 %v409, %v408
  %v496 = vpack.c.b16 %v411, %v410
  %v497 = vpack.c.b16 %v413, %v412
  %v498 = vpack.c.b16 %v415, %v414
  %v499 = vpack.c.b16 %v417, %v416
  %v500 = vpack.c.b16 %v419, %v418
  %v501 = vpack.c.b16 %v421, %v420
  %v502 = vpack.c.b16 %v423, %v422
  %v503 = vpack.c.b16 %v425, %v424
  %v504 = vpack.c.b16 %v427, %v426
  %v505 = vpack.c.b16 %v429, %v428
  %v506 = vpack.c.b16 %v431, %v430
  %v507 = vpack.c.b16 %v433, %v432
  %v508 = vpack.c.b16 %v435, %v434
  %v509 = vpack.c.b16 %v437, %v436
  %v510 = vpack.c.b16 %v439, %v438
  %v511 = vpack.c.b16 %v441, %v440
  %v512 = vpack.c.b16 %v443, %v442
  %v513 = vpack.c.b16 %v445, %v444
  %v514 = vpack.c.b16 %v447, %v446
  %v515 = vpack.c.b16 %v449, %v448
  %v516 = vpack.c.b16 %v451, %v450
  %v517 = vpack.c.b16 %v453, %v452
  %582 = vmatprep.subr.bf16.mxu0 0
  %583 = vmatpush1.bf16.msra.mxu0 %v454
  %584 = vmatprep.subr.bf16.mxu0 0
  %585 = vmatpush1.bf16.msra.mxu0 %v455
  %586 = vmatprep.subr.bf16.mxu0 0
  %587 = vmatpush1.bf16.msra.mxu0 %v456
  %588 = vmatprep.subr.bf16.mxu0 0
  %589 = vmatpush1.bf16.msra.mxu0 %v457
  %590 = vmatprep.subr.bf16.mxu0 0
  %591 = vmatpush1.bf16.msra.mxu0 %v458
  %592 = vmatprep.subr.bf16.mxu0 0
  %593 = vmatpush1.bf16.msra.mxu0 %v459
  %594 = vmatprep.subr.bf16.mxu0 0
  %595 = vmatpush1.bf16.msra.mxu0 %v460
  %596 = vmatprep.subr.bf16.mxu0 0
  %597 = vmatpush1.bf16.msra.mxu0 %v461
  %598 = vmatprep.subr.bf16.mxu0 0
  %599 = vmatpush1.bf16.msra.mxu0 %v462
  %600 = vmatprep.subr.bf16.mxu0 0
  %601 = vmatpush1.bf16.msra.mxu0 %v463
  %602 = vmatprep.subr.bf16.mxu0 0
  %603 = vmatpush1.bf16.msra.mxu0 %v464
  %604 = vmatprep.subr.bf16.mxu0 0
  %605 = vmatpush1.bf16.msra.mxu0 %v465
  %606 = vmatprep.subr.bf16.mxu0 0
  %607 = vmatpush1.bf16.msra.mxu0 %v466
  %608 = vmatprep.subr.bf16.mxu0 0
  %609 = vmatpush1.bf16.msra.mxu0 %v467
  %610 = vmatprep.subr.bf16.mxu0 0
  %611 = vmatpush1.bf16.msra.mxu0 %v468
  %612 = vmatprep.subr.bf16.mxu0 0
  %613 = vmatpush1.bf16.msra.mxu0 %v469
  %614 = vmatprep.mubr.bf16.mxu0 %v183
  %615 = vmatmul.mubr.bf16.gmra.mrb[0].mxu0 %v182
  %v616 = vpop.f32.mrb[0].mxu0
  %v617 = vadd.f32 %v156, %v616
  %v618 = vpop.f32.mrb[0].mxu0
  %v619 = vpop.f32.mrb[0].mxu0
  %v620 = vadd.f32 %v156, %v619
  %v621 = vpop.f32.mrb[0].mxu0
  %622 = vdwg.mxu0
  %623 = vmatprep.subr.bf16.mxu0 0
  %624 = vmatpush1.bf16.msra.mxu0 %v470
  %625 = vmatprep.subr.bf16.mxu0 0
  %626 = vmatpush1.bf16.msra.mxu0 %v471
  %627 = vmatprep.subr.bf16.mxu0 0
  %628 = vmatpush1.bf16.msra.mxu0 %v472
  %629 = vmatprep.subr.bf16.mxu0 0
  %630 = vmatpush1.bf16.msra.mxu0 %v473
  %631 = vmatprep.subr.bf16.mxu0 0
  %632 = vmatpush1.bf16.msra.mxu0 %v474
  %633 = vmatprep.subr.bf16.mxu0 0
  %634 = vmatpush1.bf16.msra.mxu0 %v475
  %635 = vmatprep.subr.bf16.mxu0 0
  %636 = vmatpush1.bf16.msra.mxu0 %v476
  %637 = vmatprep.subr.bf16.mxu0 0
  %638 = vmatpush1.bf16.msra.mxu0 %v477
  %639 = vmatprep.subr.bf16.mxu0 0
  %640 = vmatpush1.bf16.msra.mxu0 %v478
  %641 = vmatprep.subr.bf16.mxu0 0
  %642 = vmatpush1.bf16.msra.mxu0 %v479
  %643 = vmatprep.subr.bf16.mxu0 0
  %644 = vmatpush1.bf16.msra.mxu0 %v480
  %645 = vmatprep.subr.bf16.mxu0 0
  %646 = vmatpush1.bf16.msra.mxu0 %v481
  %647 = vmatprep.subr.bf16.mxu0 0
  %648 = vmatpush1.bf16.msra.mxu0 %v482
  %649 = vmatprep.subr.bf16.mxu0 0
  %650 = vmatpush1.bf16.msra.mxu0 %v483
  %651 = vmatprep.subr.bf16.mxu0 0
  %652 = vmatpush1.bf16.msra.mxu0 %v484
  %653 = vmatprep.subr.bf16.mxu0 0
  %654 = vmatpush1.bf16.msra.mxu0 %v485
  %655 = vmatprep.mubr.bf16.mxu0 %v185
  %656 = vmatmul.mubr.bf16.gmra.mrb[0].mxu0 %v184
  %v657 = vpop.f32.mrb[0].mxu0
  %v658 = vadd.f32 %v617, %v657
  %v659 = vpop.f32.mrb[0].mxu0
  %v660 = vpop.f32.mrb[0].mxu0
  %v661 = vadd.f32 %v620, %v660
  %v662 = vpop.f32.mrb[0].mxu0
  %663 = vdwg.mxu0
  %664 = vmatprep.subr.bf16.mxu0 0
  %665 = vmatpush1.bf16.msra.mxu0 %v486
  %666 = vmatprep.subr.bf16.mxu0 0
  %667 = vmatpush1.bf16.msra.mxu0 %v487
  %668 = vmatprep.subr.bf16.mxu0 0
  %669 = vmatpush1.bf16.msra.mxu0 %v488
  %670 = vmatprep.subr.bf16.mxu0 0
  %671 = vmatpush1.bf16.msra.mxu0 %v489
  %672 = vmatprep.subr.bf16.mxu0 0
  %673 = vmatpush1.bf16.msra.mxu0 %v490
  %674 = vmatprep.subr.bf16.mxu0 0
  %675 = vmatpush1.bf16.msra.mxu0 %v491
  %676 = vmatprep.subr.bf16.mxu0 0
  %677 = vmatpush1.bf16.msra.mxu0 %v492
  %678 = vmatprep.subr.bf16.mxu0 0
  %679 = vmatpush1.bf16.msra.mxu0 %v493
  %680 = vmatprep.subr.bf16.mxu0 0
  %681 = vmatpush1.bf16.msra.mxu0 %v494
  %682 = vmatprep.subr.bf16.mxu0 0
  %683 = vmatpush1.bf16.msra.mxu0 %v495
  %684 = vmatprep.subr.bf16.mxu0 0
  %685 = vmatpush1.bf16.msra.mxu0 %v496
  %686 = vmatprep.subr.bf16.mxu0 0
  %687 = vmatpush1.bf16.msra.mxu0 %v497
  %688 = vmatprep.subr.bf16.mxu0 0
  %689 = vmatpush1.bf16.msra.mxu0 %v498
  %690 = vmatprep.subr.bf16.mxu0 0
  %691 = vmatpush1.bf16.msra.mxu0 %v499
  %692 = vmatprep.subr.bf16.mxu0 0
  %693 = vmatpush1.bf16.msra.mxu0 %v500
  %694 = vmatprep.subr.bf16.mxu0 0
  %695 = vmatpush1.bf16.msra.mxu0 %v501
  %696 = vmatprep.mubr.bf16.mxu0 %v187
  %697 = vmatmul.mubr.bf16.gmra.mrb[0].mxu0 %v186
  %v698 = vpop.f32.mrb[0].mxu0
  %v699 = vadd.f32 %v658, %v698
  %v700 = vpop.f32.mrb[0].mxu0
  %v701 = vpop.f32.mrb[0].mxu0
  %v702 = vadd.f32 %v661, %v701
  %v703 = vpop.f32.mrb[0].mxu0
  %704 = vdwg.mxu0
  %705 = vmatprep.subr.bf16.mxu0 0
  %706 = vmatpush1.bf16.msra.mxu0 %v502
  %707 = vmatprep.subr.bf16.mxu0 0
  %708 = vmatpush1.bf16.msra.mxu0 %v503
  %709 = vmatprep.subr.bf16.mxu0 0
  %710 = vmatpush1.bf16.msra.mxu0 %v504
  %711 = vmatprep.subr.bf16.mxu0 0
  %712 = vmatpush1.bf16.msra.mxu0 %v505
  %713 = vmatprep.subr.bf16.mxu0 0
  %714 = vmatpush1.bf16.msra.mxu0 %v506
  %715 = vmatprep.subr.bf16.mxu0 0
  %716 = vmatpush1.bf16.msra.mxu0 %v507
  %717 = vmatprep.subr.bf16.mxu0 0
  %718 = vmatpush1.bf16.msra.mxu0 %v508
  %719 = vmatprep.subr.bf16.mxu0 0
  %720 = vmatpush1.bf16.msra.mxu0 %v509
  %721 = vmatprep.subr.bf16.mxu0 0
  %722 = vmatpush1.bf16.msra.mxu0 %v510
  %723 = vmatprep.subr.bf16.mxu0 0
  %724 = vmatpush1.bf16.msra.mxu0 %v511
  %725 = vmatprep.subr.bf16.mxu0 0
  %726 = vmatpush1.bf16.msra.mxu0 %v512
  %727 = vmatprep.subr.bf16.mxu0 0
  %728 = vmatpush1.bf16.msra.mxu0 %v513
  %729 = vmatprep.subr.bf16.mxu0 0
  %730 = vmatpush1.bf16.msra.mxu0 %v514
  %731 = vmatprep.subr.bf16.mxu0 0
  %732 = vmatpush1.bf16.msra.mxu0 %v515
  %733 = vmatprep.subr.bf16.mxu0 0
  %734 = vmatpush1.bf16.msra.mxu0 %v516
  %735 = vmatprep.subr.bf16.mxu0 0
  %736 = vmatpush1.bf16.msra.mxu0 %v517
  %737 = vmatprep.mubr.bf16.mxu0 %v189
  %738 = vmatmul.mubr.bf16.gmra.mrb[0].mxu0 %v188
  %v739 = vpop.f32.mrb[0].mxu0
  %v740 = vadd.f32 %v699, %v739
  %v741 = vpop.f32.mrb[0].mxu0
  %v742 = vpop.f32.mrb[0].mxu0
  %v743 = vadd.f32 %v702, %v742
  %v744 = vpop.f32.mrb[0].mxu0
  %745 = vdwg.mxu0
  %v746 = vsub.f32 0.0, %v740
  %v747 = vsub.f32 0.0, %v743
  %v748 = vmul.f32 %v746, 1.442695
  %v749 = vpow.pop %v748
  %v750 = vmul.f32 %v747, 1.442695
  %v751 = vpow.pop %v750
  %v752 = vadd.f32 %v749, 1.0
  %v753 = vadd.f32 %v751, 1.0
  %v754 = vrcp.pop %v752
  %v755 = vmul.f32 1.0, %v754
  %v756 = vrcp.pop %v753
  %v757 = vmul.f32 1.0, %v756
  %758 = vst [vmem:[%s3] sm:$0xff] %v755
  %759 = vst [vmem:[%s3 + $0x8] sm:$0xff] %v757
  // Predicated region
  $region14: #{discriminator_forward.15} parent=0 // pred_check
    _
  $region15: #{discriminator_forward.15} parent=0 // pred_check_branch
    %761 = sbr.rel (0) target = $region17
  $region16: #{discriminator_forward.15} parent=0 // pred_region
    _
  $region17: #{discriminator_forward.15} parent=0 // pred_fallthru
    _
  // Predicated region
  $region18: #{discriminator_forward.15} parent=0 // pred_check
    _
  $region19: #{discriminator_forward.15} parent=0 // pred_check_branch
    %763 = sbr.rel (0) target = $region21
  $region20: #{discriminator_forward.15} parent=0 // pred_region
    _
  $region21: #{discriminator_forward.15} parent=0 // pred_fallthru
    _

</llo_original>
